<compile_context>
chip_gen: v7x
topology: tpu7x:2x2x1
jax: 0.10.0
libtpu: 0.0.40
codegen_flags: <defaults>
</compile_context>

<pallas_src>
import functools

import jax
import jax.numpy as jnp
from jax import lax
from jax.experimental import pallas as pl
from jax.experimental.pallas import tpu as pltpu

EPS = 1e-5  # PyTorch BatchNorm2d default eps


def _bottleneck_kernel(x_ref, w1_ref, s1_ref, b1_ref,
                       w2_ref, s2_ref, b2_ref,
                       w3_ref, s3_ref, b3_ref,
                       o_ref, pad_ref, *, H, W, Cin, P):
    """One batch element.  x_ref: (1,H,W,Cin) bf16, o_ref: (1,H,W,4P) bf16."""
    Cout = 4 * P
    f32 = jnp.float32
    bf16 = jnp.bfloat16

    # ---- conv1 (1x1) + bn1 + relu :  (H*W, Cin) @ (Cin, P) on the MXU ----
    xm = x_ref[0].reshape(H * W, Cin)                                  # bf16
    h1 = jnp.dot(xm, w1_ref[...], preferred_element_type=f32)
    h1 = jnp.maximum(h1 * s1_ref[...] + b1_ref[...], 0.0)              # f32 (H*W, P)

    # ---- conv2 (3x3, stride=1, pad=1) + bn2 + relu via im2col ----
    # Zero only the 1-pixel halo strips (cheap; safe under megacore grid splitting).
    pad_ref[0:1, :, :] = jnp.zeros((1, W + 2, P), bf16)
    pad_ref[H + 1:H + 2, :, :] = jnp.zeros((1, W + 2, P), bf16)
    pad_ref[:, 0:1, :] = jnp.zeros((H + 2, 1, P), bf16)
    pad_ref[:, W + 1:W + 2, :] = jnp.zeros((H + 2, 1, P), bf16)
    # Interior is fully overwritten every step.
    pad_ref[1:H + 1, 1:W + 1, :] = h1.astype(bf16).reshape(H, W, P)

    # im2col slab: (H*W, 9P); tap order k = dy*3 + dx matches w2 row blocks k*P + cin.
    col = jnp.concatenate(
        [pad_ref[dy:dy + H, dx:dx + W, :].reshape(H * W, P)
         for dy in range(3) for dx in range(3)],
        axis=-1)                                                       # bf16 (H*W, 9P)
    h2 = jnp.dot(col, w2_ref[...], preferred_element_type=f32)         # (H*W, P) f32
    h2 = jnp.maximum(h2 * s2_ref[...] + b2_ref[...], 0.0)

    # ---- conv3 (1x1) + bn3 ----
    h3 = jnp.dot(h2.astype(bf16), w3_ref[...], preferred_element_type=f32)
    h3 = h3 * s3_ref[...] + b3_ref[...]                                # (H*W, 4P) f32

    # ---- residual add + relu (downsample is None => Cin == 4P) ----
    res = x_ref[0].astype(f32)                 # re-read the VMEM-resident input block
    out = jnp.maximum(h3.reshape(H, W, Cout) + res, 0.0)
    o_ref[0] = out.astype(o_ref.dtype)


def bottleneck_forward_nhwc(x_nhwc, params):
    """x_nhwc: (N, H, W, Cin), Cin == 4 * planes.  Returns bf16 NHWC output."""
    N, H, W, Cin = x_nhwc.shape
    P = params["w1"].shape[1]
    assert Cin == 4 * P, "residual add requires inplanes == planes * expansion"

    x_bf16 = x_nhwc.astype(jnp.bfloat16)
    kernel = functools.partial(_bottleneck_kernel, H=H, W=W, Cin=Cin, P=P)

    def full_spec(a):
        zeros = (0,) * a.ndim
        return pl.BlockSpec(a.shape, lambda n, _z=zeros: _z)

    weights = (params["w1"], params["s1"], params["b1"],
               params["w2"], params["s2"], params["b2"],
               params["w3"], params["s3"], params["b3"])

    flops = 2 * N * H * W * (Cin * P + 9 * P * P + P * 4 * P)
    bytes_accessed = (x_bf16.size + N * H * W * 4 * P) * 2 + sum(
        int(w.size) * w.dtype.itemsize for w in weights)

    out_nhwc = pl.pallas_call(
        kernel,
        out_shape=jax.ShapeDtypeStruct((N, H, W, 4 * P), jnp.bfloat16),
        grid=(N,),
        in_specs=[pl.BlockSpec((1, H, W, Cin), lambda n: (n, 0, 0, 0))]
                + [full_spec(w) for w in weights],
        out_specs=pl.BlockSpec((1, H, W, 4 * P), lambda n: (n, 0, 0, 0)),
        scratch_shapes=[pltpu.VMEM((H + 2, W + 2, P), jnp.bfloat16)],
        compiler_params=pltpu.CompilerParams(
            dimension_semantics=("parallel",),
            vmem_limit_bytes=64 * 1024 * 1024),
        cost_estimate=pl.CostEstimate(
            flops=flops, transcendentals=0, bytes_accessed=bytes_accessed),
    )(x_bf16, *weights)
    return out_nhwc


def bottleneck_forward(x_nchw, params):
    """PyTorch-layout compatibility wrapper: (N, Cin, H, W) -> (N, Cin, H, W).
    In a real NHWC model stack call bottleneck_forward_nhwc directly to avoid
    the boundary transposes (one full HBM pass each)."""
    x_nhwc = jnp.transpose(x_nchw, (0, 2, 3, 1))
    out_nhwc = bottleneck_forward_nhwc(x_nhwc, params)
    return jnp.transpose(out_nhwc, (0, 3, 1, 2)).astype(x_nchw.dtype)


# ----------------------- parameter construction (deterministic) -----------------------

def make_params(key, inplanes, planes):
    ks = jax.random.split(key, 12)
    f32 = jnp.float32
    bf16 = jnp.bfloat16

    conv1_w = jax.random.normal(ks[0], (planes, inplanes, 1, 1), f32) * 0.1
    conv2_w = jax.random.normal(ks[1], (planes, planes, 3, 3), f32) * 0.1
    conv3_w = jax.random.normal(ks[2], (4 * planes, planes, 1, 1), f32) * 0.1

    def bn_params(k, c):
        k1, k2, k3, k4 = jax.random.split(k, 4)
        gamma = jax.random.uniform(k1, (c,), f32, 0.5, 1.5)
        beta = jax.random.normal(k2, (c,), f32) * 0.1
        mean = jax.random.normal(k3, (c,), f32) * 0.1
        var = jax.random.uniform(k4, (c,), f32, 0.5, 1.5)
        return gamma, beta, mean, var

    bn1 = bn_params(ks[3], planes)
    bn2 = bn_params(ks[4], planes)
    bn3 = bn_params(ks[5], 4 * planes)

    def fold(bn):
        gamma, beta, mean, var = bn
        scale = gamma / jnp.sqrt(var + EPS)
        bias = beta - mean * scale
        return scale.reshape(1, -1), bias.reshape(1, -1)

    s1, b1 = fold(bn1)
    s2, b2 = fold(bn2)
    s3, b3 = fold(bn3)

    kernel_params = {
        # 1x1 convs as channel matmuls: (Cin, Cout), bf16 weights for the MXU
        "w1": jnp.transpose(conv1_w.reshape(planes, inplanes), (1, 0)).astype(bf16),
        # 3x3 conv as one im2col matmul: (9*Cin, Cout), row = (ky*3+kx)*Cin + cin
        "w2": jnp.transpose(conv2_w, (2, 3, 1, 0)).reshape(9 * planes, planes).astype(bf16),
        "w3": jnp.transpose(conv3_w.reshape(4 * planes, planes), (1, 0)).astype(bf16),
        # folded BatchNorm scale/bias stay in f32
        "s1": s1, "b1": b1, "s2": s2, "b2": b2, "s3": s3, "b3": b3,
    }
    torch_like = {
        "conv1_w": conv1_w, "conv2_w": conv2_w, "conv3_w": conv3_w,
        "bn1": bn1, "bn2": bn2, "bn3": bn3,
    }
    return kernel_params, torch_like


# ----------------------- pure-JAX reference (mirrors PyTorch forward) -----------------------

def ref_bottleneck(x, tp):
    dn = ("NCHW", "OIHW", "NCHW")

    def bn(y, p):
        gamma, beta, mean, var = p
        sh = (1, -1, 1, 1)
        return (y - mean.reshape(sh)) / jnp.sqrt(var.reshape(sh) + EPS) * \
            gamma.reshape(sh) + beta.reshape(sh)

    out = lax.conv_general_dilated(x, tp["conv1_w"], (1, 1), "VALID",
                                   dimension_numbers=dn)
    out = jnp.maximum(bn(out, tp["bn1"]), 0.0)
    out = lax.conv_general_dilated(out, tp["conv2_w"], (1, 1), ((1, 1), (1, 1)),
                                   dimension_numbers=dn)
    out = jnp.maximum(bn(out, tp["bn2"]), 0.0)
    out = lax.conv_general_dilated(out, tp["conv3_w"], (1, 1), "VALID",
                                   dimension_numbers=dn)
    out = bn(out, tp["bn3"])
    return jnp.maximum(out + x, 0.0)


if __name__ == "__main__":
    # NOTE: toy channel counts (P=8, Cin=32) under-fill the 128-lane axis; benchmark
    # and tune with real ResNet widths (P>=64, 4P>=256) for lane-dense stores.
    N, planes, H, W = 2, 8, 16, 16
    inplanes = planes * 4  # expansion=4; required for the identity residual path

    key = jax.random.PRNGKey(0)
    kx, kp = jax.random.split(key)
    x = jax.random.normal(kx, (N, inplanes, H, W), jnp.float32)

    kernel_params, torch_params = make_params(kp, inplanes, planes)

    out = bottleneck_forward(x, kernel_params)
    out = jax.block_until_ready(out)

    ref = jax.block_until_ready(ref_bottleneck(x, torch_params))
    assert out.shape == ref.shape == (N, inplanes, H, W)
    # bf16 matmul inputs / bf16 output => compare with bf16-appropriate tolerance.
    assert jnp.allclose(out, ref, rtol=5e-2, atol=5e-2), \
        f"max abs err = {jnp.max(jnp.abs(out - ref))}"

    print("KERNEL_OK")
</pallas_src>

<mosaic_0001>
module attributes {stable_mosaic.version = 11 : i64} {
  func.func @_bottleneck_kernel(%arg0: i32, %arg1: memref<1x16x16x32xbf16, #tpu.memory_space<vmem>>, %arg2: memref<32x8xbf16, #tpu.memory_space<vmem>>, %arg3: memref<1x8xf32, #tpu.memory_space<vmem>>, %arg4: memref<1x8xf32, #tpu.memory_space<vmem>>, %arg5: memref<72x8xbf16, #tpu.memory_space<vmem>>, %arg6: memref<1x8xf32, #tpu.memory_space<vmem>>, %arg7: memref<1x8xf32, #tpu.memory_space<vmem>>, %arg8: memref<8x32xbf16, #tpu.memory_space<vmem>>, %arg9: memref<1x32xf32, #tpu.memory_space<vmem>>, %arg10: memref<1x32xf32, #tpu.memory_space<vmem>>, %arg11: memref<1x16x16x32xbf16, #tpu.memory_space<vmem>>, %arg12: memref<18x18x8xbf16, #tpu.memory_space<vmem>>) attributes {dimension_semantics = [#tpu.dimension_semantics<parallel>], iteration_bounds = array<i64: 2>, scalar_prefetch = 0 : i64, scratch_operands = 1 : i64, tpu.core_type = #tpu.core_type<tc>, window_params = [{transform_indices = @transform_0, window_bounds = array<i64: 1, 16, 16, 32>}, {pipeline_mode = #tpu.pipeline_mode<synchronous>, transform_indices = @transform_1, window_bounds = array<i64: 32, 8>}, {pipeline_mode = #tpu.pipeline_mode<synchronous>, transform_indices = @transform_2, window_bounds = array<i64: 1, 8>}, {pipeline_mode = #tpu.pipeline_mode<synchronous>, transform_indices = @transform_3, window_bounds = array<i64: 1, 8>}, {pipeline_mode = #tpu.pipeline_mode<synchronous>, transform_indices = @transform_4, window_bounds = array<i64: 72, 8>}, {pipeline_mode = #tpu.pipeline_mode<synchronous>, transform_indices = @transform_5, window_bounds = array<i64: 1, 8>}, {pipeline_mode = #tpu.pipeline_mode<synchronous>, transform_indices = @transform_6, window_bounds = array<i64: 1, 8>}, {pipeline_mode = #tpu.pipeline_mode<synchronous>, transform_indices = @transform_7, window_bounds = array<i64: 8, 32>}, {pipeline_mode = #tpu.pipeline_mode<synchronous>, transform_indices = @transform_8, window_bounds = array<i64: 1, 32>}, {pipeline_mode = #tpu.pipeline_mode<synchronous>, transform_indices = @transform_9, window_bounds = array<i64: 1, 32>}, {transform_indices = @transform_10, window_bounds = array<i64: 1, 16, 16, 32>}]} {
    %c0 = arith.constant 0 : index
    %c0_0 = arith.constant 0 : index
    %c0_1 = arith.constant 0 : index
    %c0_2 = arith.constant 0 : index
    %0 = vector.load %arg1[%c0, %c0_0, %c0_1, %c0_2] : memref<1x16x16x32xbf16, #tpu.memory_space<vmem>>, vector<1x16x16x32xbf16>
    %1 = vector.shape_cast %0 : vector<1x16x16x32xbf16> to vector<16x16x32xbf16>
    %2 = vector.shape_cast %1 : vector<16x16x32xbf16> to vector<256x32xbf16>
    %c0_3 = arith.constant 0 : index
    %c0_4 = arith.constant 0 : index
    %3 = vector.load %arg2[%c0_3, %c0_4] : memref<32x8xbf16, #tpu.memory_space<vmem>>, vector<32x8xbf16>
    %cst = arith.constant dense<0.000000e+00> : vector<256x8xf32>
    %4 = tpu.matmul %2, %3, %cst {dimension_numbers = #tpu.dot_dimension_numbers<[1], [0], [0], [1], [0, 0, 1, 1], [], []>} : vector<256x32xbf16>, vector<32x8xbf16>, vector<256x8xf32> -> vector<256x8xf32>
    %c0_5 = arith.constant 0 : index
    %c0_6 = arith.constant 0 : index
    %5 = vector.load %arg3[%c0_5, %c0_6] : memref<1x8xf32, #tpu.memory_space<vmem>>, vector<1x8xf32>
    %6 = vector.broadcast %5 : vector<1x8xf32> to vector<256x8xf32>
    %7 = arith.mulf %4, %6 : vector<256x8xf32>
    %c0_7 = arith.constant 0 : index
    %c0_8 = arith.constant 0 : index
    %8 = vector.load %arg4[%c0_7, %c0_8] : memref<1x8xf32, #tpu.memory_space<vmem>>, vector<1x8xf32>
    %9 = vector.broadcast %8 : vector<1x8xf32> to vector<256x8xf32>
    %10 = arith.addf %7, %9 : vector<256x8xf32>
    %cst_9 = arith.constant 0.000000e+00 : f32
    %11 = vector.broadcast %cst_9 : f32 to vector<256x8xf32>
    %12 = arith.maximumf %10, %11 : vector<256x8xf32>
    %cst_10 = arith.constant 0.000000e+00 : bf16
    %13 = vector.broadcast %cst_10 : bf16 to vector<1x18x8xbf16>
    %c0_11 = arith.constant 0 : index
    %c0_12 = arith.constant 0 : index
    %c0_13 = arith.constant 0 : index
    %14 = vector.load %arg12[%c0_11, %c0_12, %c0_13] : memref<18x18x8xbf16, #tpu.memory_space<vmem>>, vector<1x18x8xbf16>
    tpu.vector_store %arg12[%c0_11, %c0_12, %c0_13], %13 {strides = array<i32>} : memref<18x18x8xbf16, #tpu.memory_space<vmem>>, vector<1x18x8xbf16>,
    %cst_14 = arith.constant 0.000000e+00 : bf16
    %15 = vector.broadcast %cst_14 : bf16 to vector<1x18x8xbf16>
    %c17 = arith.constant 17 : index
    %c0_15 = arith.constant 0 : index
    %c0_16 = arith.constant 0 : index
    %16 = vector.load %arg12[%c17, %c0_15, %c0_16] : memref<18x18x8xbf16, #tpu.memory_space<vmem>>, vector<1x18x8xbf16>
    tpu.vector_store %arg12[%c17, %c0_15, %c0_16], %15 {strides = array<i32>} : memref<18x18x8xbf16, #tpu.memory_space<vmem>>, vector<1x18x8xbf16>,
    %cst_17 = arith.constant 0.000000e+00 : bf16
    %17 = vector.broadcast %cst_17 : bf16 to vector<18x1x8xbf16>
    %c0_18 = arith.constant 0 : index
    %c0_19 = arith.constant 0 : index
    %c0_20 = arith.constant 0 : index
    %18 = vector.load %arg12[%c0_18, %c0_19, %c0_20] : memref<18x18x8xbf16, #tpu.memory_space<vmem>>, vector<18x1x8xbf16>
    tpu.vector_store %arg12[%c0_18, %c0_19, %c0_20], %17 {strides = array<i32>} : memref<18x18x8xbf16, #tpu.memory_space<vmem>>, vector<18x1x8xbf16>,
    %cst_21 = arith.constant 0.000000e+00 : bf16
    %19 = vector.broadcast %cst_21 : bf16 to vector<18x1x8xbf16>
    %c0_22 = arith.constant 0 : index
    %c17_23 = arith.constant 17 : index
    %c0_24 = arith.constant 0 : index
    %20 = vector.load %arg12[%c0_22, %c17_23, %c0_24] : memref<18x18x8xbf16, #tpu.memory_space<vmem>>, vector<18x1x8xbf16>
    tpu.vector_store %arg12[%c0_22, %c17_23, %c0_24], %19 {strides = array<i32>} : memref<18x18x8xbf16, #tpu.memory_space<vmem>>, vector<18x1x8xbf16>,
    %21 = arith.truncf %12 : vector<256x8xf32> to vector<256x8xbf16>
    %22 = vector.shape_cast %21 : vector<256x8xbf16> to vector<16x16x8xbf16>
    %c1 = arith.constant 1 : index
    %c1_25 = arith.constant 1 : index
    %c0_26 = arith.constant 0 : index
    %23 = vector.load %arg12[%c1, %c1_25, %c0_26] : memref<18x18x8xbf16, #tpu.memory_space<vmem>>, vector<16x16x8xbf16>
    tpu.vector_store %arg12[%c1, %c1_25, %c0_26], %22 {strides = array<i32>} : memref<18x18x8xbf16, #tpu.memory_space<vmem>>, vector<16x16x8xbf16>,
    %c0_27 = arith.constant 0 : index
    %c0_28 = arith.constant 0 : index
    %c0_29 = arith.constant 0 : index
    %24 = vector.load %arg12[%c0_27, %c0_28, %c0_29] : memref<18x18x8xbf16, #tpu.memory_space<vmem>>, vector<16x16x8xbf16>
    %25 = vector.shape_cast %24 : vector<16x16x8xbf16> to vector<256x8xbf16>
    %c0_30 = arith.constant 0 : index
    %c1_31 = arith.constant 1 : index
    %c0_32 = arith.constant 0 : index
    %26 = vector.load %arg12[%c0_30, %c1_31, %c0_32] : memref<18x18x8xbf16, #tpu.memory_space<vmem>>, vector<16x16x8xbf16>
    %27 = vector.shape_cast %26 : vector<16x16x8xbf16> to vector<256x8xbf16>
    %c0_33 = arith.constant 0 : index
    %c2 = arith.constant 2 : index
    %c0_34 = arith.constant 0 : index
    %28 = vector.load %arg12[%c0_33, %c2, %c0_34] : memref<18x18x8xbf16, #tpu.memory_space<vmem>>, vector<16x16x8xbf16>
    %29 = vector.shape_cast %28 : vector<16x16x8xbf16> to vector<256x8xbf16>
    %c1_35 = arith.constant 1 : index
    %c0_36 = arith.constant 0 : index
    %c0_37 = arith.constant 0 : index
    %30 = vector.load %arg12[%c1_35, %c0_36, %c0_37] : memref<18x18x8xbf16, #tpu.memory_space<vmem>>, vector<16x16x8xbf16>
    %31 = vector.shape_cast %30 : vector<16x16x8xbf16> to vector<256x8xbf16>
    %c1_38 = arith.constant 1 : index
    %c1_39 = arith.constant 1 : index
    %c0_40 = arith.constant 0 : index
    %32 = vector.load %arg12[%c1_38, %c1_39, %c0_40] : memref<18x18x8xbf16, #tpu.memory_space<vmem>>, vector<16x16x8xbf16>
    %33 = vector.shape_cast %32 : vector<16x16x8xbf16> to vector<256x8xbf16>
    %c1_41 = arith.constant 1 : index
    %c2_42 = arith.constant 2 : index
    %c0_43 = arith.constant 0 : index
    %34 = vector.load %arg12[%c1_41, %c2_42, %c0_43] : memref<18x18x8xbf16, #tpu.memory_space<vmem>>, vector<16x16x8xbf16>
    %35 = vector.shape_cast %34 : vector<16x16x8xbf16> to vector<256x8xbf16>
    %c2_44 = arith.constant 2 : index
    %c0_45 = arith.constant 0 : index
    %c0_46 = arith.constant 0 : index
    %36 = vector.load %arg12[%c2_44, %c0_45, %c0_46] : memref<18x18x8xbf16, #tpu.memory_space<vmem>>, vector<16x16x8xbf16>
    %37 = vector.shape_cast %36 : vector<16x16x8xbf16> to vector<256x8xbf16>
    %c2_47 = arith.constant 2 : index
    %c1_48 = arith.constant 1 : index
    %c0_49 = arith.constant 0 : index
    %38 = vector.load %arg12[%c2_47, %c1_48, %c0_49] : memref<18x18x8xbf16, #tpu.memory_space<vmem>>, vector<16x16x8xbf16>
    %39 = vector.shape_cast %38 : vector<16x16x8xbf16> to vector<256x8xbf16>
    %c2_50 = arith.constant 2 : index
    %c2_51 = arith.constant 2 : index
    %c0_52 = arith.constant 0 : index
    %40 = vector.load %arg12[%c2_50, %c2_51, %c0_52] : memref<18x18x8xbf16, #tpu.memory_space<vmem>>, vector<16x16x8xbf16>
    %41 = vector.shape_cast %40 : vector<16x16x8xbf16> to vector<256x8xbf16>
    %42 = tpu.concatenate %25, %27, %29, %31, %33, %35, %37, %39, %41 in 1 : vector<256x8xbf16>, vector<256x8xbf16>, vector<256x8xbf16>, vector<256x8xbf16>, vector<256x8xbf16>, vector<256x8xbf16>, vector<256x8xbf16>, vector<256x8xbf16>, vector<256x8xbf16> -> vector<256x72xbf16>
    %c0_53 = arith.constant 0 : index
    %c0_54 = arith.constant 0 : index
    %43 = vector.load %arg5[%c0_53, %c0_54] : memref<72x8xbf16, #tpu.memory_space<vmem>>, vector<72x8xbf16>
    %cst_55 = arith.constant dense<0.000000e+00> : vector<256x8xf32>
    %44 = tpu.matmul %42, %43, %cst_55 {dimension_numbers = #tpu.dot_dimension_numbers<[1], [0], [0], [1], [0, 0, 1, 1], [], []>} : vector<256x72xbf16>, vector<72x8xbf16>, vector<256x8xf32> -> vector<256x8xf32>
    %c0_56 = arith.constant 0 : index
    %c0_57 = arith.constant 0 : index
    %45 = vector.load %arg6[%c0_56, %c0_57] : memref<1x8xf32, #tpu.memory_space<vmem>>, vector<1x8xf32>
    %46 = vector.broadcast %45 : vector<1x8xf32> to vector<256x8xf32>
    %47 = arith.mulf %44, %46 : vector<256x8xf32>
    %c0_58 = arith.constant 0 : index
    %c0_59 = arith.constant 0 : index
    %48 = vector.load %arg7[%c0_58, %c0_59] : memref<1x8xf32, #tpu.memory_space<vmem>>, vector<1x8xf32>
    %49 = vector.broadcast %48 : vector<1x8xf32> to vector<256x8xf32>
    %50 = arith.addf %47, %49 : vector<256x8xf32>
    %cst_60 = arith.constant 0.000000e+00 : f32
    %51 = vector.broadcast %cst_60 : f32 to vector<256x8xf32>
    %52 = arith.maximumf %50, %51 : vector<256x8xf32>
    %53 = arith.truncf %52 : vector<256x8xf32> to vector<256x8xbf16>
    %c0_61 = arith.constant 0 : index
    %c0_62 = arith.constant 0 : index
    %54 = vector.load %arg8[%c0_61, %c0_62] : memref<8x32xbf16, #tpu.memory_space<vmem>>, vector<8x32xbf16>
    %cst_63 = arith.constant dense<0.000000e+00> : vector<256x32xf32>
    %55 = tpu.matmul %53, %54, %cst_63 {dimension_numbers = #tpu.dot_dimension_numbers<[1], [0], [0], [1], [0, 0, 1, 1], [], []>} : vector<256x8xbf16>, vector<8x32xbf16>, vector<256x32xf32> -> vector<256x32xf32>
    %c0_64 = arith.constant 0 : index
    %c0_65 = arith.constant 0 : index
    %56 = vector.load %arg9[%c0_64, %c0_65] : memref<1x32xf32, #tpu.memory_space<vmem>>, vector<1x32xf32>
    %57 = vector.broadcast %56 : vector<1x32xf32> to vector<256x32xf32>
    %58 = arith.mulf %55, %57 : vector<256x32xf32>
    %c0_66 = arith.constant 0 : index
    %c0_67 = arith.constant 0 : index
    %59 = vector.load %arg10[%c0_66, %c0_67] : memref<1x32xf32, #tpu.memory_space<vmem>>, vector<1x32xf32>
    %60 = vector.broadcast %59 : vector<1x32xf32> to vector<256x32xf32>
    %61 = arith.addf %58, %60 : vector<256x32xf32>
    %c0_68 = arith.constant 0 : index
    %c0_69 = arith.constant 0 : index
    %c0_70 = arith.constant 0 : index
    %c0_71 = arith.constant 0 : index
    %62 = vector.load %arg1[%c0_68, %c0_69, %c0_70, %c0_71] : memref<1x16x16x32xbf16, #tpu.memory_space<vmem>>, vector<1x16x16x32xbf16>
    %63 = vector.shape_cast %62 : vector<1x16x16x32xbf16> to vector<16x16x32xbf16>
    %64 = arith.extf %63 : vector<16x16x32xbf16> to vector<16x16x32xf32>
    %65 = vector.shape_cast %61 : vector<256x32xf32> to vector<16x16x32xf32>
    %66 = arith.addf %65, %64 : vector<16x16x32xf32>
    %cst_72 = arith.constant 0.000000e+00 : f32
    %67 = vector.broadcast %cst_72 : f32 to vector<16x16x32xf32>
    %68 = arith.maximumf %66, %67 : vector<16x16x32xf32>
    %69 = arith.truncf %68 : vector<16x16x32xf32> to vector<16x16x32xbf16>
    %c0_73 = arith.constant 0 : index
    %c0_74 = arith.constant 0 : index
    %c0_75 = arith.constant 0 : index
    %c0_76 = arith.constant 0 : index
    %70 = vector.load %arg11[%c0_73, %c0_74, %c0_75, %c0_76] : memref<1x16x16x32xbf16, #tpu.memory_space<vmem>>, vector<1x16x16x32xbf16>
    %71 = vector.shape_cast %70 : vector<1x16x16x32xbf16> to vector<16x16x32xbf16>
    %72 = vector.shape_cast %69 : vector<16x16x32xbf16> to vector<1x16x16x32xbf16>
    tpu.vector_store %arg11[%c0_73, %c0_74, %c0_75, %c0_76], %72 {strides = array<i32>} : memref<1x16x16x32xbf16, #tpu.memory_space<vmem>>, vector<1x16x16x32xbf16>,
    return
  }
  func.func @transform_0(%arg0: i32) -> (i32, i32, i32, i32) {
    %c0_i32 = arith.constant 0 : i32
    %c0_i32_0 = arith.constant 0 : i32
    %c0_i32_1 = arith.constant 0 : i32
    %c0_i32_2 = arith.constant 0 : i32
    return %arg0, %c0_i32, %c0_i32_0, %c0_i32_1 : i32, i32, i32, i32
  }
  func.func @transform_1(%arg0: i32) -> (i32, i32) {
    %c0_i32 = arith.constant 0 : i32
    %c0_i32_0 = arith.constant 0 : i32
    %c0_i32_1 = arith.constant 0 : i32
    return %c0_i32, %c0_i32_0 : i32, i32
  }
  func.func @transform_2(%arg0: i32) -> (i32, i32) {
    %c0_i32 = arith.constant 0 : i32
    %c0_i32_0 = arith.constant 0 : i32
    %c0_i32_1 = arith.constant 0 : i32
    return %c0_i32, %c0_i32_0 : i32, i32
  }
  func.func @transform_3(%arg0: i32) -> (i32, i32) {
    %c0_i32 = arith.constant 0 : i32
    %c0_i32_0 = arith.constant 0 : i32
    %c0_i32_1 = arith.constant 0 : i32
    return %c0_i32, %c0_i32_0 : i32, i32
  }
  func.func @transform_4(%arg0: i32) -> (i32, i32) {
    %c0_i32 = arith.constant 0 : i32
    %c0_i32_0 = arith.constant 0 : i32
    %c0_i32_1 = arith.constant 0 : i32
    return %c0_i32, %c0_i32_0 : i32, i32
  }
  func.func @transform_5(%arg0: i32) -> (i32, i32) {
    %c0_i32 = arith.constant 0 : i32
    %c0_i32_0 = arith.constant 0 : i32
    %c0_i32_1 = arith.constant 0 : i32
    return %c0_i32, %c0_i32_0 : i32, i32
  }
  func.func @transform_6(%arg0: i32) -> (i32, i32) {
    %c0_i32 = arith.constant 0 : i32
    %c0_i32_0 = arith.constant 0 : i32
    %c0_i32_1 = arith.constant 0 : i32
    return %c0_i32, %c0_i32_0 : i32, i32
  }
  func.func @transform_7(%arg0: i32) -> (i32, i32) {
    %c0_i32 = arith.constant 0 : i32
    %c0_i32_0 = arith.constant 0 : i32
    %c0_i32_1 = arith.constant 0 : i32
    return %c0_i32, %c0_i32_0 : i32, i32
  }
  func.func @transform_8(%arg0: i32) -> (i32, i32) {
    %c0_i32 = arith.constant 0 : i32
    %c0_i32_0 = arith.constant 0 : i32
    %c0_i32_1 = arith.constant 0 : i32
    return %c0_i32, %c0_i32_0 : i32, i32
  }
  func.func @transform_9(%arg0: i32) -> (i32, i32) {
    %c0_i32 = arith.constant 0 : i32
    %c0_i32_0 = arith.constant 0 : i32
    %c0_i32_1 = arith.constant 0 : i32
    return %c0_i32, %c0_i32_0 : i32, i32
  }
  func.func @transform_10(%arg0: i32) -> (i32, i32, i32, i32) {
    %c0_i32 = arith.constant 0 : i32
    %c0_i32_0 = arith.constant 0 : i32
    %c0_i32_1 = arith.constant 0 : i32
    %c0_i32_2 = arith.constant 0 : i32
    return %arg0, %c0_i32, %c0_i32_0, %c0_i32_1 : i32, i32, i32, i32
  }
}

</mosaic_0001>

<llo_original>
// kernel: tpu_custom_call.1
$region0: #{tpu_custom_call.1}
  #allocation0 [shape = 'u32[]', space=smem, size = 0x4, offset = 0x4, fixed_abs, tag = 'smem constant byte address 0x4 - core index']
  #allocation1 [shape = 'u32[144,128]{1,0:T(1,128)}', space=vmem, size = 0x12000, scoped, tag = 'internal scratch']
  #allocation2 [shape = 'bf16[18,18,8]{2,1,0:T(8,128)(2,1)}', space=vmem, size = 0x1b000, scoped, tag = 'scratch operand']
  %s0 = inlined_call_operand.hbm [shape: bf16[2,16,16,32], index: 0, kind: input, shape index: {}]
  %s1 = inlined_call_operand.hbm [shape: bf16[32,8], index: 1, kind: input, shape index: {}]
  %s2 = inlined_call_operand.hbm [shape: f32[1,8], index: 2, kind: input, shape index: {}]
  %s3 = inlined_call_operand.hbm [shape: f32[1,8], index: 3, kind: input, shape index: {}]
  %s4 = inlined_call_operand.hbm [shape: bf16[72,8], index: 4, kind: input, shape index: {}]
  %s5 = inlined_call_operand.hbm [shape: f32[1,8], index: 5, kind: input, shape index: {}]
  %s6 = inlined_call_operand.hbm [shape: f32[1,8], index: 6, kind: input, shape index: {}]
  %s7 = inlined_call_operand.hbm [shape: bf16[8,32], index: 7, kind: input, shape index: {}]
  %s8 = inlined_call_operand.hbm [shape: f32[1,32], index: 8, kind: input, shape index: {}]
  %s9 = inlined_call_operand.hbm [shape: f32[1,32], index: 9, kind: input, shape index: {}]
  %s10 = inlined_call_operand.hbm [shape: bf16[2,16,16,32], index: 10, kind: output, shape index: {}]
  %s11 = sld [smem:[#allocation0]]
  $region113: #{tpu_custom_call.1} parent=0
    _
  %s13 = ssub.s32 1, %s11
  %s14 = scalar_select 0, %s13, %s11
  $region1: #{tpu_custom_call.1} parent=0
    #allocation3 [shape = 'u8[131072]{0}', space=vmem, size = 0x20000, scoped, tag = 'input window, operand 0']
    #allocation4 [shape = 's32[2]{0}', space=sflag, size = 0x8, scoped, tag = 'scoped memory for tpu_custom_call.1']
    #allocation5 [shape = 's32[2]{0}', space=sflag, size = 0x8, scoped, tag = 'scoped memory for tpu_custom_call.1']
    #allocation6 [shape = 'u8[8192]{0}', space=vmem, size = 0x2000, scoped, tag = 'input window, operand 1, single buffered']
    #allocation7 [shape = 's32[1]{0}', space=sflag, size = 0x4, scoped, tag = 'scoped memory for tpu_custom_call.1']
    #allocation8 [shape = 'u8[512]{0}', space=vmem, size = 0x400, scoped, tag = 'input window, operand 2, single buffered']
    #allocation9 [shape = 'u8[512]{0}', space=vmem, size = 0x400, scoped, tag = 'input window, operand 3, single buffered']
    #allocation10 [shape = 's32[1]{0}', space=sflag, size = 0x4, scoped, tag = 'scoped memory for tpu_custom_call.1']
    #allocation11 [shape = 'u8[18432]{0}', space=vmem, size = 0x4800, scoped, tag = 'input window, operand 4, single buffered']
    #allocation12 [shape = 'u8[512]{0}', space=vmem, size = 0x400, scoped, tag = 'input window, operand 5, single buffered']
    #allocation13 [shape = 's32[1]{0}', space=sflag, size = 0x4, scoped, tag = 'scoped memory for tpu_custom_call.1']
    #allocation14 [shape = 'u8[512]{0}', space=vmem, size = 0x400, scoped, tag = 'input window, operand 6, single buffered']
    #allocation15 [shape = 'u8[2048]{0}', space=vmem, size = 0x800, scoped, tag = 'input window, operand 7, single buffered']
    #allocation16 [shape = 's32[1]{0}', space=sflag, size = 0x4, scoped, tag = 'scoped memory for tpu_custom_call.1']
    #allocation17 [shape = 'u8[512]{0}', space=vmem, size = 0x400, scoped, tag = 'input window, operand 8, single buffered']
    #allocation18 [shape = 'u8[512]{0}', space=vmem, size = 0x400, scoped, tag = 'input window, operand 9, single buffered']
    #allocation19 [shape = 's32[1]{0}', space=sflag, size = 0x4, scoped, tag = 'scoped memory for tpu_custom_call.1']
    #allocation20 [shape = 'u8[131072]{0}', space=vmem, size = 0x20000, scoped, tag = 'output window, operand 0']
    %15 = vsyncpa [#allocation4], 0
    %s16 = scalar_lea.sflag [#allocation4], 1
    %17 = vsyncpa %s16, 0
    %18 = vsyncpa [#allocation7], 0
    %19 = vsyncpa [#allocation10], 0
    %20 = vsyncpa [#allocation13], 0
    %21 = vsyncpa [#allocation16], 0
    %22 = vsyncpa [#allocation19], 0
    %23 = vsyncpa [#allocation5], 0
    %s24 = scalar_lea.sflag [#allocation5], 1
    %25 = vsyncpa %s24, 0
    loop: start=0, step=1, limit=4
    $region2: #{tpu_custom_call.1} parent=1 // loop_pre_header
      _
    $region3: #{tpu_custom_call.1} parent=1 // loop_header
      %s27 = sphi 0, %s31
      %p28 = scmp.ge.s32.totalorder %s27, 4
      %s37 = sphi 0, %s39
      %s40 = sphi 0, %s37
      %s41 = sphi 0, %s40
      %s57 = sphi 0, %s41
      %s61 = sphi 0, %s61
      %s63 = sphi 0, %s61
      %s64 = sphi 0, %s63
      %s78 = sphi 0, %s64
      %s82 = sphi 0, %s82
      %s84 = sphi 0, %s82
      %s85 = sphi 0, %s84
      %s99 = sphi 0, %s85
      %s103 = sphi 0, %s103
      %s105 = sphi 0, %s103
      %s106 = sphi 0, %s105
      %s120 = sphi 0, %s106
      %s124 = sphi 0, %s124
      %s126 = sphi 0, %s124
      %s127 = sphi 0, %s126
      %s141 = sphi 0, %s127
      %s145 = sphi 0, %s145
      %s147 = sphi 0, %s145
      %s148 = sphi 0, %s147
      %s162 = sphi 0, %s148
      %s166 = sphi 0, %s166
      %s168 = sphi 0, %s166
      %s169 = sphi 0, %s168
      %s183 = sphi 0, %s169
      %s187 = sphi 0, %s187
      %s189 = sphi 0, %s187
      %s190 = sphi 0, %s189
      %s204 = sphi 0, %s190
      %s208 = sphi 0, %s208
      %s210 = sphi 0, %s208
      %s211 = sphi 0, %s210
      %s225 = sphi 0, %s211
      %s229 = sphi 0, %s229
      %s231 = sphi 0, %s229
      %s232 = sphi 0, %s231
      %s246 = sphi 0, %s232
      %s252 = sphi 0, %s254
      %s255 = sphi 0, %s252
      %s256 = sphi 0, %s255
      %s272 = sphi 0, %s256
    $region4: #{tpu_custom_call.1} parent=1 // loop_header_branch
      %30 = sbr.rel (%p28) target = $region8
    $region5: #{tpu_custom_call.1} parent=1 // loop_body
      %s32 = ssub.s32 %s27, 1
      %s33 = ssub.s32 %s27, 2
      %s34 = sadd.s32 %s27, 1
      %s35 = ssub.s32 %s27, %s34
      %p36 = scmp.eq.s32.totalorder %s35, 0
      %s38 = sadd.s32 %s37, 1
      %s39 = scalar_select %p36, %s37, %s38
      %p42 = pneg %p36
      %p43 = scmp.eq.s32.totalorder %s27, 1
      %p44 = por %p42, %p43
      %p45 = scmp.ne.s32.totalorder %s37, %s40
      %p46 = scmp.eq.s32.totalorder %s27, 0
      %p47 = por %p45, %p46
      %p48 = scmp.ne.s32.totalorder %s37, %s40
      %p49 = scmp.eq.s32.totalorder %s32, 1
      %p50 = por %p48, %p49
      %p51 = scmp.ne.s32.totalorder %s40, %s41
      %p52 = scmp.eq.s32.totalorder %s32, 0
      %p53 = por %p51, %p52
      %p54 = scmp.ne.s32.totalorder %s40, %s41
      %p55 = scmp.eq.s32.totalorder %s33, 1
      %p56 = por %p54, %p55
      %p58 = scmp.ne.s32.totalorder %s41, %s57
      %p59 = scmp.eq.s32.totalorder %s33, 0
      %p60 = por %p58, %p59
      %s62 = sadd.s32 %s61, 1
      %p65 = scmp.eq.s32.totalorder %s27, 1
      %p66 = scmp.ne.s32.totalorder %s61, %s63
      %p67 = scmp.eq.s32.totalorder %s27, 0
      %p68 = por %p66, %p67
      %p69 = scmp.ne.s32.totalorder %s61, %s63
      %p70 = scmp.eq.s32.totalorder %s32, 1
      %p71 = por %p69, %p70
      %p72 = scmp.ne.s32.totalorder %s63, %s64
      %p73 = scmp.eq.s32.totalorder %s32, 0
      %p74 = por %p72, %p73
      %p75 = scmp.ne.s32.totalorder %s63, %s64
      %p76 = scmp.eq.s32.totalorder %s33, 1
      %p77 = por %p75, %p76
      %p79 = scmp.ne.s32.totalorder %s64, %s78
      %p80 = scmp.eq.s32.totalorder %s33, 0
      %p81 = por %p79, %p80
      %s83 = sadd.s32 %s82, 1
      %p86 = scmp.eq.s32.totalorder %s27, 1
      %p87 = scmp.ne.s32.totalorder %s82, %s84
      %p88 = scmp.eq.s32.totalorder %s27, 0
      %p89 = por %p87, %p88
      %p90 = scmp.ne.s32.totalorder %s82, %s84
      %p91 = scmp.eq.s32.totalorder %s32, 1
      %p92 = por %p90, %p91
      %p93 = scmp.ne.s32.totalorder %s84, %s85
      %p94 = scmp.eq.s32.totalorder %s32, 0
      %p95 = por %p93, %p94
      %p96 = scmp.ne.s32.totalorder %s84, %s85
      %p97 = scmp.eq.s32.totalorder %s33, 1
      %p98 = por %p96, %p97
      %p100 = scmp.ne.s32.totalorder %s85, %s99
      %p101 = scmp.eq.s32.totalorder %s33, 0
      %p102 = por %p100, %p101
      %s104 = sadd.s32 %s103, 1
      %p107 = scmp.eq.s32.totalorder %s27, 1
      %p108 = scmp.ne.s32.totalorder %s103, %s105
      %p109 = scmp.eq.s32.totalorder %s27, 0
      %p110 = por %p108, %p109
      %p111 = scmp.ne.s32.totalorder %s103, %s105
      %p112 = scmp.eq.s32.totalorder %s32, 1
      %p113 = por %p111, %p112
      %p114 = scmp.ne.s32.totalorder %s105, %s106
      %p115 = scmp.eq.s32.totalorder %s32, 0
      %p116 = por %p114, %p115
      %p117 = scmp.ne.s32.totalorder %s105, %s106
      %p118 = scmp.eq.s32.totalorder %s33, 1
      %p119 = por %p117, %p118
      %p121 = scmp.ne.s32.totalorder %s106, %s120
      %p122 = scmp.eq.s32.totalorder %s33, 0
      %p123 = por %p121, %p122
      %s125 = sadd.s32 %s124, 1
      %p128 = scmp.eq.s32.totalorder %s27, 1
      %p129 = scmp.ne.s32.totalorder %s124, %s126
      %p130 = scmp.eq.s32.totalorder %s27, 0
      %p131 = por %p129, %p130
      %p132 = scmp.ne.s32.totalorder %s124, %s126
      %p133 = scmp.eq.s32.totalorder %s32, 1
      %p134 = por %p132, %p133
      %p135 = scmp.ne.s32.totalorder %s126, %s127
      %p136 = scmp.eq.s32.totalorder %s32, 0
      %p137 = por %p135, %p136
      %p138 = scmp.ne.s32.totalorder %s126, %s127
      %p139 = scmp.eq.s32.totalorder %s33, 1
      %p140 = por %p138, %p139
      %p142 = scmp.ne.s32.totalorder %s127, %s141
      %p143 = scmp.eq.s32.totalorder %s33, 0
      %p144 = por %p142, %p143
      %s146 = sadd.s32 %s145, 1
      %p149 = scmp.eq.s32.totalorder %s27, 1
      %p150 = scmp.ne.s32.totalorder %s145, %s147
      %p151 = scmp.eq.s32.totalorder %s27, 0
      %p152 = por %p150, %p151
      %p153 = scmp.ne.s32.totalorder %s145, %s147
      %p154 = scmp.eq.s32.totalorder %s32, 1
      %p155 = por %p153, %p154
      %p156 = scmp.ne.s32.totalorder %s147, %s148
      %p157 = scmp.eq.s32.totalorder %s32, 0
      %p158 = por %p156, %p157
      %p159 = scmp.ne.s32.totalorder %s147, %s148
      %p160 = scmp.eq.s32.totalorder %s33, 1
      %p161 = por %p159, %p160
      %p163 = scmp.ne.s32.totalorder %s148, %s162
      %p164 = scmp.eq.s32.totalorder %s33, 0
      %p165 = por %p163, %p164
      %s167 = sadd.s32 %s166, 1
      %p170 = scmp.eq.s32.totalorder %s27, 1
      %p171 = scmp.ne.s32.totalorder %s166, %s168
      %p172 = scmp.eq.s32.totalorder %s27, 0
      %p173 = por %p171, %p172
      %p174 = scmp.ne.s32.totalorder %s166, %s168
      %p175 = scmp.eq.s32.totalorder %s32, 1
      %p176 = por %p174, %p175
      %p177 = scmp.ne.s32.totalorder %s168, %s169
      %p178 = scmp.eq.s32.totalorder %s32, 0
      %p179 = por %p177, %p178
      %p180 = scmp.ne.s32.totalorder %s168, %s169
      %p181 = scmp.eq.s32.totalorder %s33, 1
      %p182 = por %p180, %p181
      %p184 = scmp.ne.s32.totalorder %s169, %s183
      %p185 = scmp.eq.s32.totalorder %s33, 0
      %p186 = por %p184, %p185
      %s188 = sadd.s32 %s187, 1
      %p191 = scmp.eq.s32.totalorder %s27, 1
      %p192 = scmp.ne.s32.totalorder %s187, %s189
      %p193 = scmp.eq.s32.totalorder %s27, 0
      %p194 = por %p192, %p193
      %p195 = scmp.ne.s32.totalorder %s187, %s189
      %p196 = scmp.eq.s32.totalorder %s32, 1
      %p197 = por %p195, %p196
      %p198 = scmp.ne.s32.totalorder %s189, %s190
      %p199 = scmp.eq.s32.totalorder %s32, 0
      %p200 = por %p198, %p199
      %p201 = scmp.ne.s32.totalorder %s189, %s190
      %p202 = scmp.eq.s32.totalorder %s33, 1
      %p203 = por %p201, %p202
      %p205 = scmp.ne.s32.totalorder %s190, %s204
      %p206 = scmp.eq.s32.totalorder %s33, 0
      %p207 = por %p205, %p206
      %s209 = sadd.s32 %s208, 1
      %p212 = scmp.eq.s32.totalorder %s27, 1
      %p213 = scmp.ne.s32.totalorder %s208, %s210
      %p214 = scmp.eq.s32.totalorder %s27, 0
      %p215 = por %p213, %p214
      %p216 = scmp.ne.s32.totalorder %s208, %s210
      %p217 = scmp.eq.s32.totalorder %s32, 1
      %p218 = por %p216, %p217
      %p219 = scmp.ne.s32.totalorder %s210, %s211
      %p220 = scmp.eq.s32.totalorder %s32, 0
      %p221 = por %p219, %p220
      %p222 = scmp.ne.s32.totalorder %s210, %s211
      %p223 = scmp.eq.s32.totalorder %s33, 1
      %p224 = por %p222, %p223
      %p226 = scmp.ne.s32.totalorder %s211, %s225
      %p227 = scmp.eq.s32.totalorder %s33, 0
      %p228 = por %p226, %p227
      %s230 = sadd.s32 %s229, 1
      %p233 = scmp.eq.s32.totalorder %s27, 1
      %p234 = scmp.ne.s32.totalorder %s229, %s231
      %p235 = scmp.eq.s32.totalorder %s27, 0
      %p236 = por %p234, %p235
      %p237 = scmp.ne.s32.totalorder %s229, %s231
      %p238 = scmp.eq.s32.totalorder %s32, 1
      %p239 = por %p237, %p238
      %p240 = scmp.ne.s32.totalorder %s231, %s232
      %p241 = scmp.eq.s32.totalorder %s32, 0
      %p242 = por %p240, %p241
      %p243 = scmp.ne.s32.totalorder %s231, %s232
      %p244 = scmp.eq.s32.totalorder %s33, 1
      %p245 = por %p243, %p244
      %p247 = scmp.ne.s32.totalorder %s232, %s246
      %p248 = scmp.eq.s32.totalorder %s33, 0
      %p249 = por %p247, %p248
      %s250 = ssub.s32 %s27, %s34
      %p251 = scmp.eq.s32.totalorder %s250, 0
      %s253 = sadd.s32 %s252, 1
      %s254 = scalar_select %p251, %s252, %s253
      %p257 = pneg %p251
      %p258 = scmp.eq.s32.totalorder %s27, 1
      %p259 = por %p257, %p258
      %p260 = scmp.ne.s32.totalorder %s252, %s255
      %p261 = scmp.eq.s32.totalorder %s27, 0
      %p262 = por %p260, %p261
      %p263 = scmp.ne.s32.totalorder %s252, %s255
      %p264 = scmp.eq.s32.totalorder %s32, 1
      %p265 = por %p263, %p264
      %p266 = scmp.ne.s32.totalorder %s255, %s256
      %p267 = scmp.eq.s32.totalorder %s32, 0
      %p268 = por %p266, %p267
      %p269 = scmp.ne.s32.totalorder %s255, %s256
      %p270 = scmp.eq.s32.totalorder %s33, 1
      %p271 = por %p269, %p270
      %p273 = scmp.ne.s32.totalorder %s256, %s272
      %p274 = scmp.eq.s32.totalorder %s33, 0
      %p275 = por %p273, %p274
      %p276 = scmp.le.s32.totalorder 1, %s27
      %p277 = scmp.lt.s32.totalorder %s27, 3
      %p278 = pnand %p276, %p277
      %p279 = pneg %p278
      // Predicated region
      $region9: #{tpu_custom_call.1} parent=5 // pred_check
        _
      $region10: #{tpu_custom_call.1} parent=5 // pred_check_branch
        %281 = sbr.rel (%p278) target = $region12
      $region11: #{tpu_custom_call.1} parent=5 // pred_region
        %s282 = ssub.s32 %s27, 1
        // Predicated region
        $region13: #{tpu_custom_call.1} parent=11 // pred_check
          %p283 = pneg %p74
        $region14: #{tpu_custom_call.1} parent=11 // pred_check_branch
          %285 = sbr.rel (%p283) target = $region16
        $region15: #{tpu_custom_call.1} parent=11 // pred_region
          %s287 = ssub.s32 256, 256
          %288 = vsyncadd [#allocation7], %s287
          %s289 = sshll.u32 [#allocation6], 4
          %s290 = int_to_ptr.vmem [resolvable:$true] %s289
          %295 = dma.hbm_to_vmem [thread:$0]  %s1, 256, %s290, [#allocation7], 64, 64, 4
        $region16: #{tpu_custom_call.1} parent=11 // pred_fallthru
          _
        // Predicated region
        $region17: #{tpu_custom_call.1} parent=11 // pred_check
          %p296 = pneg %p95
        $region18: #{tpu_custom_call.1} parent=11 // pred_check_branch
          %298 = sbr.rel (%p296) target = $region20
        $region19: #{tpu_custom_call.1} parent=11 // pred_region
          %s300 = ssub.s32 16, 16
          %301 = vsyncadd [#allocation7], %s300
          %s303 = sshll.u32 [#allocation8], 4
          %s304 = int_to_ptr.vmem [resolvable:$true] %s303
          %306 = dma.hbm_to_vmem [thread:$0]  %s2, 16, %s304, [#allocation7]
        $region20: #{tpu_custom_call.1} parent=11 // pred_fallthru
          _
        // Predicated region
        $region21: #{tpu_custom_call.1} parent=11 // pred_check
          %p307 = pneg %p116
        $region22: #{tpu_custom_call.1} parent=11 // pred_check_branch
          %309 = sbr.rel (%p307) target = $region24
        $region23: #{tpu_custom_call.1} parent=11 // pred_region
          %s311 = ssub.s32 16, 16
          %312 = vsyncadd [#allocation10], %s311
          %s314 = sshll.u32 [#allocation9], 4
          %s315 = int_to_ptr.vmem [resolvable:$true] %s314
          %317 = dma.hbm_to_vmem [thread:$0]  %s3, 16, %s315, [#allocation10]
        $region24: #{tpu_custom_call.1} parent=11 // pred_fallthru
          _
        // Predicated region
        $region25: #{tpu_custom_call.1} parent=11 // pred_check
          %p318 = pneg %p137
        $region26: #{tpu_custom_call.1} parent=11 // pred_check_branch
          %320 = sbr.rel (%p318) target = $region28
        $region27: #{tpu_custom_call.1} parent=11 // pred_region
          %s322 = ssub.s32 576, 576
          %323 = vsyncadd [#allocation10], %s322
          %s324 = sshll.u32 [#allocation11], 4
          %s325 = int_to_ptr.vmem [resolvable:$true] %s324
          %330 = dma.hbm_to_vmem [thread:$0]  %s4, 576, %s325, [#allocation10], 64, 64, 4
        $region28: #{tpu_custom_call.1} parent=11 // pred_fallthru
          _
        // Predicated region
        $region29: #{tpu_custom_call.1} parent=11 // pred_check
          %p331 = pneg %p158
        $region30: #{tpu_custom_call.1} parent=11 // pred_check_branch
          %333 = sbr.rel (%p331) target = $region32
        $region31: #{tpu_custom_call.1} parent=11 // pred_region
          %s335 = ssub.s32 16, 16
          %336 = vsyncadd [#allocation13], %s335
          %s338 = sshll.u32 [#allocation12], 4
          %s339 = int_to_ptr.vmem [resolvable:$true] %s338
          %341 = dma.hbm_to_vmem [thread:$0]  %s5, 16, %s339, [#allocation13]
        $region32: #{tpu_custom_call.1} parent=11 // pred_fallthru
          _
        // Predicated region
        $region33: #{tpu_custom_call.1} parent=11 // pred_check
          %p342 = pneg %p179
        $region34: #{tpu_custom_call.1} parent=11 // pred_check_branch
          %344 = sbr.rel (%p342) target = $region36
        $region35: #{tpu_custom_call.1} parent=11 // pred_region
          %s346 = ssub.s32 16, 16
          %347 = vsyncadd [#allocation13], %s346
          %s349 = sshll.u32 [#allocation14], 4
          %s350 = int_to_ptr.vmem [resolvable:$true] %s349
          %352 = dma.hbm_to_vmem [thread:$0]  %s6, 16, %s350, [#allocation13]
        $region36: #{tpu_custom_call.1} parent=11 // pred_fallthru
          _
        // Predicated region
        $region37: #{tpu_custom_call.1} parent=11 // pred_check
          %p353 = pneg %p200
        $region38: #{tpu_custom_call.1} parent=11 // pred_check_branch
          %355 = sbr.rel (%p353) target = $region40
        $region39: #{tpu_custom_call.1} parent=11 // pred_region
          %s357 = ssub.s32 64, 64
          %358 = vsyncadd [#allocation16], %s357
          %s360 = sshll.u32 [#allocation15], 4
          %s361 = int_to_ptr.vmem [resolvable:$true] %s360
          %363 = dma.hbm_to_vmem [thread:$0]  %s7, 64, %s361, [#allocation16]
        $region40: #{tpu_custom_call.1} parent=11 // pred_fallthru
          _
        // Predicated region
        $region41: #{tpu_custom_call.1} parent=11 // pred_check
          %p364 = pneg %p221
        $region42: #{tpu_custom_call.1} parent=11 // pred_check_branch
          %366 = sbr.rel (%p364) target = $region44
        $region43: #{tpu_custom_call.1} parent=11 // pred_region
          %s368 = ssub.s32 16, 16
          %369 = vsyncadd [#allocation16], %s368
          %s371 = sshll.u32 [#allocation17], 4
          %s372 = int_to_ptr.vmem [resolvable:$true] %s371
          %374 = dma.hbm_to_vmem [thread:$0]  %s8, 16, %s372, [#allocation16]
        $region44: #{tpu_custom_call.1} parent=11 // pred_fallthru
          _
        // Predicated region
        $region45: #{tpu_custom_call.1} parent=11 // pred_check
          %p375 = pneg %p242
        $region46: #{tpu_custom_call.1} parent=11 // pred_check_branch
          %377 = sbr.rel (%p375) target = $region48
        $region47: #{tpu_custom_call.1} parent=11 // pred_region
          %s379 = ssub.s32 16, 16
          %380 = vsyncadd [#allocation19], %s379
          %s382 = sshll.u32 [#allocation18], 4
          %s383 = int_to_ptr.vmem [resolvable:$true] %s382
          %385 = dma.hbm_to_vmem [thread:$0]  %s9, 16, %s383, [#allocation19]
        $region48: #{tpu_custom_call.1} parent=11 // pred_fallthru
          _
      $region12: #{tpu_custom_call.1} parent=5 // pred_fallthru
        _
      %p386 = scmp.lt.s32.totalorder %s27, 2
      // Predicated region
      $region49: #{tpu_custom_call.1} parent=5 // pred_check
        %p387 = pneg %p386
      $region50: #{tpu_custom_call.1} parent=5 // pred_check_branch
        %389 = sbr.rel (%p387) target = $region52
      $region51: #{tpu_custom_call.1} parent=5 // pred_region
        // Predicated region
        $region53: #{tpu_custom_call.1} parent=51 // pred_check
          %p390 = pneg %p47
        $region54: #{tpu_custom_call.1} parent=51 // pred_check_branch
          %392 = sbr.rel (%p390) target = $region56
        $region55: #{tpu_custom_call.1} parent=51 // pred_region
          %s393 = sand.u32 %s37, 1
          %s394 = scalar_lea.sflag [#allocation4], %s393
          %s395 = sand.u32 %s37, 1
          %s396 = smul.addr %s395, 128
          %s397 = scalar_lea.vmem [#allocation3], %s396
          %s399 = ssub.s32 2048, 2048
          %400 = vsyncadd %s394, %s399
          %s401 = smul.addr %s27, 32
          %s402 = smul.addr %s401, 64
          %s403 = scalar_lea.hbm %s0, %s402
          %s404 = sshll.u32 %s397, 4
          %s405 = int_to_ptr.vmem [resolvable:$true] %s404
          %410 = dma.hbm_to_vmem [thread:$0]  %s403, 2048, %s405, %s394, 64, 64, 4
        $region56: #{tpu_custom_call.1} parent=51 // pred_fallthru
          _
      $region52: #{tpu_custom_call.1} parent=5 // pred_fallthru
        _
      %p411 = scmp.le.s32.totalorder 1, %s27
      %p412 = scmp.lt.s32.totalorder %s27, 3
      %p413 = pnand %p411, %p412
      %p414 = pneg %p413
      // Predicated region
      $region57: #{tpu_custom_call.1} parent=5 // pred_check
        _
      $region58: #{tpu_custom_call.1} parent=5 // pred_check_branch
        %416 = sbr.rel (%p413) target = $region60
      $region59: #{tpu_custom_call.1} parent=5 // pred_region
        %s417 = ssub.s32 %s27, 1
        %s418 = sand.u32 %s40, 1
        %s419 = scalar_lea.sflag [#allocation4], %s418
        %s420 = sand.u32 %s40, 1
        %s421 = smul.addr %s420, 128
        %s422 = scalar_lea.vmem [#allocation3], %s421
        // Predicated region
        $region61: #{tpu_custom_call.1} parent=59 // pred_check
          %p423 = pneg %p53
        $region62: #{tpu_custom_call.1} parent=59 // pred_check_branch
          %425 = sbr.rel (%p423) target = $region64
        $region63: #{tpu_custom_call.1} parent=59 // pred_region
          %426 = dma.done %s419, 2048
        $region64: #{tpu_custom_call.1} parent=59 // pred_fallthru
          _
        // Predicated region
        $region65: #{tpu_custom_call.1} parent=59 // pred_check
          %p427 = pneg %p74
        $region66: #{tpu_custom_call.1} parent=59 // pred_check_branch
          %429 = sbr.rel (%p427) target = $region68
        $region67: #{tpu_custom_call.1} parent=59 // pred_region
          %430 = dma.done [#allocation7], 256
        $region68: #{tpu_custom_call.1} parent=59 // pred_fallthru
          _
        // Predicated region
        $region69: #{tpu_custom_call.1} parent=59 // pred_check
          %p431 = pneg %p95
        $region70: #{tpu_custom_call.1} parent=59 // pred_check_branch
          %433 = sbr.rel (%p431) target = $region72
        $region71: #{tpu_custom_call.1} parent=59 // pred_region
          %434 = dma.done [#allocation7], 16
        $region72: #{tpu_custom_call.1} parent=59 // pred_fallthru
          _
        // Predicated region
        $region73: #{tpu_custom_call.1} parent=59 // pred_check
          %p435 = pneg %p116
        $region74: #{tpu_custom_call.1} parent=59 // pred_check_branch
          %437 = sbr.rel (%p435) target = $region76
        $region75: #{tpu_custom_call.1} parent=59 // pred_region
          %438 = dma.done [#allocation10], 16
        $region76: #{tpu_custom_call.1} parent=59 // pred_fallthru
          _
        // Predicated region
        $region77: #{tpu_custom_call.1} parent=59 // pred_check
          %p439 = pneg %p137
        $region78: #{tpu_custom_call.1} parent=59 // pred_check_branch
          %441 = sbr.rel (%p439) target = $region80
        $region79: #{tpu_custom_call.1} parent=59 // pred_region
          %442 = dma.done [#allocation10], 576
        $region80: #{tpu_custom_call.1} parent=59 // pred_fallthru
          _
        // Predicated region
        $region81: #{tpu_custom_call.1} parent=59 // pred_check
          %p443 = pneg %p158
        $region82: #{tpu_custom_call.1} parent=59 // pred_check_branch
          %445 = sbr.rel (%p443) target = $region84
        $region83: #{tpu_custom_call.1} parent=59 // pred_region
          %446 = dma.done [#allocation13], 16
        $region84: #{tpu_custom_call.1} parent=59 // pred_fallthru
          _
        // Predicated region
        $region85: #{tpu_custom_call.1} parent=59 // pred_check
          %p447 = pneg %p179
        $region86: #{tpu_custom_call.1} parent=59 // pred_check_branch
          %449 = sbr.rel (%p447) target = $region88
        $region87: #{tpu_custom_call.1} parent=59 // pred_region
          %450 = dma.done [#allocation13], 16
        $region88: #{tpu_custom_call.1} parent=59 // pred_fallthru
          _
        // Predicated region
        $region89: #{tpu_custom_call.1} parent=59 // pred_check
          %p451 = pneg %p200
        $region90: #{tpu_custom_call.1} parent=59 // pred_check_branch
          %453 = sbr.rel (%p451) target = $region92
        $region91: #{tpu_custom_call.1} parent=59 // pred_region
          %454 = dma.done [#allocation16], 64
        $region92: #{tpu_custom_call.1} parent=59 // pred_fallthru
          _
        // Predicated region
        $region93: #{tpu_custom_call.1} parent=59 // pred_check
          %p455 = pneg %p221
        $region94: #{tpu_custom_call.1} parent=59 // pred_check_branch
          %457 = sbr.rel (%p455) target = $region96
        $region95: #{tpu_custom_call.1} parent=59 // pred_region
          %458 = dma.done [#allocation16], 16
        $region96: #{tpu_custom_call.1} parent=59 // pred_fallthru
          _
        // Predicated region
        $region97: #{tpu_custom_call.1} parent=59 // pred_check
          %p459 = pneg %p242
        $region98: #{tpu_custom_call.1} parent=59 // pred_check_branch
          %461 = sbr.rel (%p459) target = $region100
        $region99: #{tpu_custom_call.1} parent=59 // pred_region
          %462 = dma.done [#allocation19], 16
        $region100: #{tpu_custom_call.1} parent=59 // pred_fallthru
          _
        %s463 = sand.u32 %s40, 1
        %s464 = scalar_lea.sflag [#allocation4], %s463
        %s465 = sand.u32 %s40, 1
        %s466 = smul.addr %s465, 128
        %s467 = scalar_lea.vmem [#allocation3], %s466
        %p468 = pneg %p53
        %p469 = pneg %p50
        %p470 = pneg %p74
        %p471 = pneg %p71
        %p472 = pneg %p95
        %p473 = pneg %p92
        %p474 = pneg %p116
        %p475 = pneg %p113
        %p476 = pneg %p137
        %p477 = pneg %p134
        %p478 = pneg %p158
        %p479 = pneg %p155
        %p480 = pneg %p179
        %p481 = pneg %p176
        %p482 = pneg %p200
        %p483 = pneg %p197
        %p484 = pneg %p221
        %p485 = pneg %p218
        %p486 = pneg %p242
        %p487 = pneg %p239
        %p488 = pneg %p268
        %p489 = pneg %p265
        %s490 = sand.u32 %s255, 1
        %s491 = scalar_lea.sflag [#allocation5], %s490
        %s492 = sand.u32 %s255, 1
        %s493 = smul.addr %s492, 128
        %s494 = scalar_lea.vmem [#allocation20], %s493
        %v496 = vld [vmem:[%s422] sm:$0xf]
        %v497 = vld [vmem:[%s422 + $0x4] sm:$0xf]
        %v498 = vld [vmem:[%s422 + $0x8] sm:$0xf]
        %v499 = vld [vmem:[%s422 + $0xc] sm:$0xf]
        %v500 = vld [vmem:[%s422 + $0x10] sm:$0xf]
        %v501 = vld [vmem:[%s422 + $0x14] sm:$0xf]
        %v502 = vld [vmem:[%s422 + $0x18] sm:$0xf]
        %v503 = vld [vmem:[%s422 + $0x1c] sm:$0xf]
        %v504 = vld [vmem:[%s422 + $0x20] sm:$0xf]
        %v505 = vld [vmem:[%s422 + $0x24] sm:$0xf]
        %v506 = vld [vmem:[%s422 + $0x28] sm:$0xf]
        %v507 = vld [vmem:[%s422 + $0x2c] sm:$0xf]
        %v508 = vld [vmem:[%s422 + $0x30] sm:$0xf]
        %v509 = vld [vmem:[%s422 + $0x34] sm:$0xf]
        %v510 = vld [vmem:[%s422 + $0x38] sm:$0xf]
        %v511 = vld [vmem:[%s422 + $0x3c] sm:$0xf]
        %v512 = vld [vmem:[%s422 + $0x40] sm:$0xf]
        %v513 = vld [vmem:[%s422 + $0x44] sm:$0xf]
        %v514 = vld [vmem:[%s422 + $0x48] sm:$0xf]
        %v515 = vld [vmem:[%s422 + $0x4c] sm:$0xf]
        %v516 = vld [vmem:[%s422 + $0x50] sm:$0xf]
        %v517 = vld [vmem:[%s422 + $0x54] sm:$0xf]
        %v518 = vld [vmem:[%s422 + $0x58] sm:$0xf]
        %v519 = vld [vmem:[%s422 + $0x5c] sm:$0xf]
        %v520 = vld [vmem:[%s422 + $0x60] sm:$0xf]
        %v521 = vld [vmem:[%s422 + $0x64] sm:$0xf]
        %v522 = vld [vmem:[%s422 + $0x68] sm:$0xf]
        %v523 = vld [vmem:[%s422 + $0x6c] sm:$0xf]
        %v524 = vld [vmem:[%s422 + $0x70] sm:$0xf]
        %v525 = vld [vmem:[%s422 + $0x74] sm:$0xf]
        %v526 = vld [vmem:[%s422 + $0x78] sm:$0xf]
        %v527 = vld [vmem:[%s422 + $0x7c] sm:$0xf]
        %v528 = vld [vmem:[#allocation6] sm:$0xf]
        %v529 = vld [vmem:[#allocation6 + $0x4] sm:$0xf]
        %v530 = vld [vmem:[#allocation6 + $0x8] sm:$0xf]
        %v531 = vld [vmem:[#allocation6 + $0xc] sm:$0xf]
        %v564 = vunpack.c.l.b16 %v496
        %v565 = vunpack.c.l.b16 %v497
        %v566 = vunpack.c.l.b16 %v498
        %v567 = vunpack.c.l.b16 %v499
        %v568 = vunpack.c.l.b16 %v500
        %v569 = vunpack.c.l.b16 %v501
        %v570 = vunpack.c.l.b16 %v502
        %v571 = vunpack.c.l.b16 %v503
        %v572 = vunpack.c.l.b16 %v504
        %v573 = vunpack.c.l.b16 %v505
        %v574 = vunpack.c.l.b16 %v506
        %v575 = vunpack.c.l.b16 %v507
        %v576 = vunpack.c.l.b16 %v508
        %v577 = vunpack.c.l.b16 %v509
        %v578 = vunpack.c.l.b16 %v510
        %v579 = vunpack.c.l.b16 %v511
        %v580 = vunpack.c.l.b16 %v512
        %v581 = vunpack.c.l.b16 %v513
        %v582 = vunpack.c.l.b16 %v514
        %v583 = vunpack.c.l.b16 %v515
        %v584 = vunpack.c.l.b16 %v516
        %v585 = vunpack.c.l.b16 %v517
        %v586 = vunpack.c.l.b16 %v518
        %v587 = vunpack.c.l.b16 %v519
        %v588 = vunpack.c.l.b16 %v520
        %v589 = vunpack.c.l.b16 %v521
        %v590 = vunpack.c.l.b16 %v522
        %v591 = vunpack.c.l.b16 %v523
        %v592 = vunpack.c.l.b16 %v524
        %v593 = vunpack.c.l.b16 %v525
        %v594 = vunpack.c.l.b16 %v526
        %v595 = vunpack.c.l.b16 %v527
        %v596 = vpack.c.b16 %v565, %v564
        %v597 = vpack.c.b16 %v567, %v566
        %v598 = vpack.c.b16 %v569, %v568
        %v599 = vpack.c.b16 %v571, %v570
        %v600 = vpack.c.b16 %v573, %v572
        %v601 = vpack.c.b16 %v575, %v574
        %v602 = vpack.c.b16 %v577, %v576
        %v603 = vpack.c.b16 %v579, %v578
        %v604 = vpack.c.b16 %v581, %v580
        %v605 = vpack.c.b16 %v583, %v582
        %v606 = vpack.c.b16 %v585, %v584
        %v607 = vpack.c.b16 %v587, %v586
        %v608 = vpack.c.b16 %v589, %v588
        %v609 = vpack.c.b16 %v591, %v590
        %v610 = vpack.c.b16 %v593, %v592
        %v611 = vpack.c.b16 %v595, %v594
        %v616 = vunpack.c.l.b16 %v528
        %v617 = vunpack.c.l.b16 %v529
        %v618 = vunpack.c.l.b16 %v530
        %v619 = vunpack.c.l.b16 %v531
        %v620 = vpack.c.b16 %v617, %v616
        %v621 = vpack.c.b16 %v619, %v618
        %vm624 = vcmask 261120
        %v626 = vsel %vm624, %v596, 0
        %v629 = vsel %vm624, %v597, 0
        %v632 = vsel %vm624, %v598, 0
        %v635 = vsel %vm624, %v599, 0
        %v638 = vsel %vm624, %v600, 0
        %v641 = vsel %vm624, %v601, 0
        %v644 = vsel %vm624, %v602, 0
        %v647 = vsel %vm624, %v603, 0
        %v650 = vsel %vm624, %v604, 0
        %v653 = vsel %vm624, %v605, 0
        %v656 = vsel %vm624, %v606, 0
        %v659 = vsel %vm624, %v607, 0
        %v662 = vsel %vm624, %v608, 0
        %v665 = vsel %vm624, %v609, 0
        %v668 = vsel %vm624, %v610, 0
        %v671 = vsel %vm624, %v611, 0
        %673 = vmatprep.subr.bf16.mxu0 0
        %674 = vmatpush1.bf16.msra.mxu0 %v620
        %675 = vmatprep.subr.bf16.mxu0 0
        %676 = vmatpush1.bf16.msra.mxu0 %v621
        %677 = vmatprep.subr.bf16.mxu0 0
        %678 = vmatpush1.bf16.msra.mxu0 0
        %679 = vmatprep.subr.bf16.mxu0 0
        %680 = vmatpush1.bf16.msra.mxu0 0
        %681 = vmatprep.subr.bf16.mxu0 0
        %682 = vmatpush1.bf16.msra.mxu0 0
        %683 = vmatprep.subr.bf16.mxu0 0
        %684 = vmatpush1.bf16.msra.mxu0 0
        %685 = vmatprep.subr.bf16.mxu0 0
        %686 = vmatpush1.bf16.msra.mxu0 0
        %687 = vmatprep.subr.bf16.mxu0 0
        %688 = vmatpush1.bf16.msra.mxu0 0
        %689 = vmatprep.subr.bf16.mxu0 0
        %690 = vmatpush1.bf16.msra.mxu0 0
        %691 = vmatprep.subr.bf16.mxu0 0
        %692 = vmatpush1.bf16.msra.mxu0 0
        %693 = vmatprep.subr.bf16.mxu0 0
        %694 = vmatpush1.bf16.msra.mxu0 0
        %695 = vmatprep.subr.bf16.mxu0 0
        %696 = vmatpush1.bf16.msra.mxu0 0
        %697 = vmatprep.subr.bf16.mxu0 0
        %698 = vmatpush1.bf16.msra.mxu0 0
        %699 = vmatprep.subr.bf16.mxu0 0
        %700 = vmatpush1.bf16.msra.mxu0 0
        %701 = vmatprep.subr.bf16.mxu0 0
        %702 = vmatpush1.bf16.msra.mxu0 0
        %703 = vmatprep.subr.bf16.mxu0 0
        %704 = vmatpush1.bf16.msra.mxu0 0
        %705 = vmatprep.mubr.bf16.mxu0 0
        %706 = vmatmul.mubr.bf16.gmra.mrb[0].mxu0 %v626
        %v707 = vpop.f32.mrb[0].mxu0
        %v708 = vadd.f32 0.0, %v707
        %v709 = vpop.f32.mrb[0].mxu0
        %v710 = vpop.f32.mrb[0].mxu0
        %v711 = vadd.f32 0.0, %v710
        %v712 = vpop.f32.mrb[0].mxu0
        %713 = vmatprep.mubr.bf16.mxu0 0
        %714 = vmatmul.mubr.bf16.gmra.mrb[0].mxu0 %v629
        %v715 = vpop.f32.mrb[0].mxu0
        %v716 = vadd.f32 0.0, %v715
        %v717 = vpop.f32.mrb[0].mxu0
        %v718 = vpop.f32.mrb[0].mxu0
        %v719 = vadd.f32 0.0, %v718
        %v720 = vpop.f32.mrb[0].mxu0
        %721 = vmatprep.mubr.bf16.mxu0 0
        %722 = vmatmul.mubr.bf16.gmra.mrb[0].mxu0 %v632
        %v723 = vpop.f32.mrb[0].mxu0
        %v724 = vadd.f32 0.0, %v723
        %v725 = vpop.f32.mrb[0].mxu0
        %v726 = vpop.f32.mrb[0].mxu0
        %v727 = vadd.f32 0.0, %v726
        %v728 = vpop.f32.mrb[0].mxu0
        %729 = vmatprep.mubr.bf16.mxu0 0
        %730 = vmatmul.mubr.bf16.gmra.mrb[0].mxu0 %v635
        %v731 = vpop.f32.mrb[0].mxu0
        %v732 = vadd.f32 0.0, %v731
        %v733 = vpop.f32.mrb[0].mxu0
        %v734 = vpop.f32.mrb[0].mxu0
        %v735 = vadd.f32 0.0, %v734
        %v736 = vpop.f32.mrb[0].mxu0
        %737 = vmatprep.mubr.bf16.mxu0 0
        %738 = vmatmul.mubr.bf16.gmra.mrb[0].mxu0 %v638
        %v739 = vpop.f32.mrb[0].mxu0
        %v740 = vadd.f32 0.0, %v739
        %v741 = vpop.f32.mrb[0].mxu0
        %v742 = vpop.f32.mrb[0].mxu0
        %v743 = vadd.f32 0.0, %v742
        %v744 = vpop.f32.mrb[0].mxu0
        %745 = vmatprep.mubr.bf16.mxu0 0
        %746 = vmatmul.mubr.bf16.gmra.mrb[0].mxu0 %v641
        %v747 = vpop.f32.mrb[0].mxu0
        %v748 = vadd.f32 0.0, %v747
        %v749 = vpop.f32.mrb[0].mxu0
        %v750 = vpop.f32.mrb[0].mxu0
        %v751 = vadd.f32 0.0, %v750
        %v752 = vpop.f32.mrb[0].mxu0
        %753 = vmatprep.mubr.bf16.mxu0 0
        %754 = vmatmul.mubr.bf16.gmra.mrb[0].mxu0 %v644
        %v755 = vpop.f32.mrb[0].mxu0
        %v756 = vadd.f32 0.0, %v755
        %v757 = vpop.f32.mrb[0].mxu0
        %v758 = vpop.f32.mrb[0].mxu0
        %v759 = vadd.f32 0.0, %v758
        %v760 = vpop.f32.mrb[0].mxu0
        %761 = vmatprep.mubr.bf16.mxu0 0
        %762 = vmatmul.mubr.bf16.gmra.mrb[0].mxu0 %v647
        %v763 = vpop.f32.mrb[0].mxu0
        %v764 = vadd.f32 0.0, %v763
        %v765 = vpop.f32.mrb[0].mxu0
        %v766 = vpop.f32.mrb[0].mxu0
        %v767 = vadd.f32 0.0, %v766
        %v768 = vpop.f32.mrb[0].mxu0
        %769 = vmatprep.mubr.bf16.mxu0 0
        %770 = vmatmul.mubr.bf16.gmra.mrb[0].mxu0 %v650
        %v771 = vpop.f32.mrb[0].mxu0
        %v772 = vadd.f32 0.0, %v771
        %v773 = vpop.f32.mrb[0].mxu0
        %v774 = vpop.f32.mrb[0].mxu0
        %v775 = vadd.f32 0.0, %v774
        %v776 = vpop.f32.mrb[0].mxu0
        %777 = vmatprep.mubr.bf16.mxu0 0
        %778 = vmatmul.mubr.bf16.gmra.mrb[0].mxu0 %v653
        %v779 = vpop.f32.mrb[0].mxu0
        %v780 = vadd.f32 0.0, %v779
        %v781 = vpop.f32.mrb[0].mxu0
        %v782 = vpop.f32.mrb[0].mxu0
        %v783 = vadd.f32 0.0, %v782
        %v784 = vpop.f32.mrb[0].mxu0
        %785 = vmatprep.mubr.bf16.mxu0 0
        %786 = vmatmul.mubr.bf16.gmra.mrb[0].mxu0 %v656
        %v787 = vpop.f32.mrb[0].mxu0
        %v788 = vadd.f32 0.0, %v787
        %v789 = vpop.f32.mrb[0].mxu0
        %v790 = vpop.f32.mrb[0].mxu0
        %v791 = vadd.f32 0.0, %v790
        %v792 = vpop.f32.mrb[0].mxu0
        %793 = vmatprep.mubr.bf16.mxu0 0
        %794 = vmatmul.mubr.bf16.gmra.mrb[0].mxu0 %v659
        %v795 = vpop.f32.mrb[0].mxu0
        %v796 = vadd.f32 0.0, %v795
        %v797 = vpop.f32.mrb[0].mxu0
        %v798 = vpop.f32.mrb[0].mxu0
        %v799 = vadd.f32 0.0, %v798
        %v800 = vpop.f32.mrb[0].mxu0
        %801 = vmatprep.mubr.bf16.mxu0 0
        %802 = vmatmul.mubr.bf16.gmra.mrb[0].mxu0 %v662
        %v803 = vpop.f32.mrb[0].mxu0
        %v804 = vadd.f32 0.0, %v803
        %v805 = vpop.f32.mrb[0].mxu0
        %v806 = vpop.f32.mrb[0].mxu0
        %v807 = vadd.f32 0.0, %v806
        %v808 = vpop.f32.mrb[0].mxu0
        %809 = vmatprep.mubr.bf16.mxu0 0
        %810 = vmatmul.mubr.bf16.gmra.mrb[0].mxu0 %v665
        %v811 = vpop.f32.mrb[0].mxu0
        %v812 = vadd.f32 0.0, %v811
        %v813 = vpop.f32.mrb[0].mxu0
        %v814 = vpop.f32.mrb[0].mxu0
        %v815 = vadd.f32 0.0, %v814
        %v816 = vpop.f32.mrb[0].mxu0
        %817 = vmatprep.mubr.bf16.mxu0 0
        %818 = vmatmul.mubr.bf16.gmra.mrb[0].mxu0 %v668
        %v819 = vpop.f32.mrb[0].mxu0
        %v820 = vadd.f32 0.0, %v819
        %v821 = vpop.f32.mrb[0].mxu0
        %v822 = vpop.f32.mrb[0].mxu0
        %v823 = vadd.f32 0.0, %v822
        %v824 = vpop.f32.mrb[0].mxu0
        %825 = vmatprep.mubr.bf16.mxu0 0
        %826 = vmatmul.mubr.bf16.gmra.mrb[0].mxu0 %v671
        %v827 = vpop.f32.mrb[0].mxu0
        %v828 = vadd.f32 0.0, %v827
        %v829 = vpop.f32.mrb[0].mxu0
        %v830 = vpop.f32.mrb[0].mxu0
        %v831 = vadd.f32 0.0, %v830
        %v832 = vpop.f32.mrb[0].mxu0
        %833 = vdwg.mxu0
        %v834 = vld [vmem:[#allocation8] sm:$0x1]
        %v836 = vlaneseq
        %v837 = vshrl.u32 %v836, 7
        %v838 = vsub.s32 0, %v837
        %v839 = vrot.slane %v834, %v838
        %v841 = vmul.f32 %v708, %v839
        %v842 = vmul.f32 %v711, %v839
        %v843 = vmul.f32 %v716, %v839
        %v844 = vmul.f32 %v719, %v839
        %v845 = vmul.f32 %v724, %v839
        %v846 = vmul.f32 %v727, %v839
        %v847 = vmul.f32 %v732, %v839
        %v848 = vmul.f32 %v735, %v839
        %v849 = vmul.f32 %v740, %v839
        %v850 = vmul.f32 %v743, %v839
        %v851 = vmul.f32 %v748, %v839
        %v852 = vmul.f32 %v751, %v839
        %v853 = vmul.f32 %v756, %v839
        %v854 = vmul.f32 %v759, %v839
        %v855 = vmul.f32 %v764, %v839
        %v856 = vmul.f32 %v767, %v839
        %v857 = vmul.f32 %v772, %v839
        %v858 = vmul.f32 %v775, %v839
        %v859 = vmul.f32 %v780, %v839
        %v860 = vmul.f32 %v783, %v839
        %v861 = vmul.f32 %v788, %v839
        %v862 = vmul.f32 %v791, %v839
        %v863 = vmul.f32 %v796, %v839
        %v864 = vmul.f32 %v799, %v839
        %v865 = vmul.f32 %v804, %v839
        %v866 = vmul.f32 %v807, %v839
        %v867 = vmul.f32 %v812, %v839
        %v868 = vmul.f32 %v815, %v839
        %v869 = vmul.f32 %v820, %v839
        %v870 = vmul.f32 %v823, %v839
        %v871 = vmul.f32 %v828, %v839
        %v872 = vmul.f32 %v831, %v839
        %v873 = vld [vmem:[#allocation9] sm:$0x1]
        %v875 = vlaneseq
        %v876 = vshrl.u32 %v875, 7
        %v877 = vsub.s32 0, %v876
        %v878 = vrot.slane %v873, %v877
        %v880 = vadd.f32 %v841, %v878
        %v881 = vadd.f32 %v842, %v878
        %v882 = vadd.f32 %v843, %v878
        %v883 = vadd.f32 %v844, %v878
        %v884 = vadd.f32 %v845, %v878
        %v885 = vadd.f32 %v846, %v878
        %v886 = vadd.f32 %v847, %v878
        %v887 = vadd.f32 %v848, %v878
        %v888 = vadd.f32 %v849, %v878
        %v889 = vadd.f32 %v850, %v878
        %v890 = vadd.f32 %v851, %v878
        %v891 = vadd.f32 %v852, %v878
        %v892 = vadd.f32 %v853, %v878
        %v893 = vadd.f32 %v854, %v878
        %v894 = vadd.f32 %v855, %v878
        %v895 = vadd.f32 %v856, %v878
        %v896 = vadd.f32 %v857, %v878
        %v897 = vadd.f32 %v858, %v878
        %v898 = vadd.f32 %v859, %v878
        %v899 = vadd.f32 %v860, %v878
        %v900 = vadd.f32 %v861, %v878
        %v901 = vadd.f32 %v862, %v878
        %v902 = vadd.f32 %v863, %v878
        %v903 = vadd.f32 %v864, %v878
        %v904 = vadd.f32 %v865, %v878
        %v905 = vadd.f32 %v866, %v878
        %v906 = vadd.f32 %v867, %v878
        %v907 = vadd.f32 %v868, %v878
        %v908 = vadd.f32 %v869, %v878
        %v909 = vadd.f32 %v870, %v878
        %v910 = vadd.f32 %v871, %v878
        %v911 = vadd.f32 %v872, %v878
        %v912 = vmax.f32 %v880, 0.0
        %v913 = vmax.f32 %v881, 0.0
        %v914 = vmax.f32 %v882, 0.0
        %v915 = vmax.f32 %v883, 0.0
        %v916 = vmax.f32 %v884, 0.0
        %v917 = vmax.f32 %v885, 0.0
        %v918 = vmax.f32 %v886, 0.0
        %v919 = vmax.f32 %v887, 0.0
        %v920 = vmax.f32 %v888, 0.0
        %v921 = vmax.f32 %v889, 0.0
        %v922 = vmax.f32 %v890, 0.0
        %v923 = vmax.f32 %v891, 0.0
        %v924 = vmax.f32 %v892, 0.0
        %v925 = vmax.f32 %v893, 0.0
        %v926 = vmax.f32 %v894, 0.0
        %v927 = vmax.f32 %v895, 0.0
        %v928 = vmax.f32 %v896, 0.0
        %v929 = vmax.f32 %v897, 0.0
        %v930 = vmax.f32 %v898, 0.0
        %v931 = vmax.f32 %v899, 0.0
        %v932 = vmax.f32 %v900, 0.0
        %v933 = vmax.f32 %v901, 0.0
        %v934 = vmax.f32 %v902, 0.0
        %v935 = vmax.f32 %v903, 0.0
        %v936 = vmax.f32 %v904, 0.0
        %v937 = vmax.f32 %v905, 0.0
        %v938 = vmax.f32 %v906, 0.0
        %v939 = vmax.f32 %v907, 0.0
        %v940 = vmax.f32 %v908, 0.0
        %v941 = vmax.f32 %v909, 0.0
        %v942 = vmax.f32 %v910, 0.0
        %v943 = vmax.f32 %v911, 0.0
        %vm944 = vcmask 60416
        %945 = vst.msk [vmem:[#allocation2] sm:$0xf] %vm944, 0
        %946 = vst.msk [vmem:[#allocation2 + $0x4] sm:$0xf] %vm944, 0
        %vm947 = vcmask 57344
        %948 = vst.msk [vmem:[#allocation2 + $0x8] sm:$0x1] %vm947, 0
        %s949 = scalar_lea.vmem [#allocation2], 204
        %950 = vst.msk [vmem:[%s949] sm:$0xf] %vm944, 0
        %951 = vst.msk [vmem:[%s949 + $0x4] sm:$0xf] %vm944, 0
        %952 = vst.msk [vmem:[%s949 + $0x8] sm:$0x1] %vm947, 0
        %vm953 = vcmask 57344
        %vm954 = vsmask.f32 256
        %vm955 = vmand %vm953, %vm954
        %v956 = vld [vmem:[#allocation2] sm:$0x1]
        %v957 = vsel %vm955, 0, %v956
        %958 = vst [vmem:[#allocation2] sm:$0x1] %v957
        %v959 = vld [vmem:[#allocation2 + $0xc] sm:$0x1]
        %v960 = vsel %vm955, 0, %v959
        %961 = vst [vmem:[#allocation2 + $0xc] sm:$0x1] %v960
        %v962 = vld [vmem:[#allocation2 + $0x18] sm:$0x1]
        %v963 = vsel %vm955, 0, %v962
        %964 = vst [vmem:[#allocation2 + $0x18] sm:$0x1] %v963
        %v965 = vld [vmem:[#allocation2 + $0x24] sm:$0x1]
        %v966 = vsel %vm955, 0, %v965
        %967 = vst [vmem:[#allocation2 + $0x24] sm:$0x1] %v966
        %v968 = vld [vmem:[#allocation2 + $0x30] sm:$0x1]
        %v969 = vsel %vm955, 0, %v968
        %970 = vst [vmem:[#allocation2 + $0x30] sm:$0x1] %v969
        %v971 = vld [vmem:[#allocation2 + $0x3c] sm:$0x1]
        %v972 = vsel %vm955, 0, %v971
        %973 = vst [vmem:[#allocation2 + $0x3c] sm:$0x1] %v972
        %v974 = vld [vmem:[#allocation2 + $0x48] sm:$0x1]
        %v975 = vsel %vm955, 0, %v974
        %976 = vst [vmem:[#allocation2 + $0x48] sm:$0x1] %v975
        %v977 = vld [vmem:[#allocation2 + $0x54] sm:$0x1]
        %v978 = vsel %vm955, 0, %v977
        %979 = vst [vmem:[#allocation2 + $0x54] sm:$0x1] %v978
        %v980 = vld [vmem:[#allocation2 + $0x60] sm:$0x1]
        %v981 = vsel %vm955, 0, %v980
        %982 = vst [vmem:[#allocation2 + $0x60] sm:$0x1] %v981
        %v983 = vld [vmem:[#allocation2 + $0x6c] sm:$0x1]
        %v984 = vsel %vm955, 0, %v983
        %985 = vst [vmem:[#allocation2 + $0x6c] sm:$0x1] %v984
        %v986 = vld [vmem:[#allocation2 + $0x78] sm:$0x1]
        %v987 = vsel %vm955, 0, %v986
        %988 = vst [vmem:[#allocation2 + $0x78] sm:$0x1] %v987
        %v989 = vld [vmem:[#allocation2 + $0x84] sm:$0x1]
        %v990 = vsel %vm955, 0, %v989
        %991 = vst [vmem:[#allocation2 + $0x84] sm:$0x1] %v990
        %v992 = vld [vmem:[#allocation2 + $0x90] sm:$0x1]
        %v993 = vsel %vm955, 0, %v992
        %994 = vst [vmem:[#allocation2 + $0x90] sm:$0x1] %v993
        %v995 = vld [vmem:[#allocation2 + $0x9c] sm:$0x1]
        %v996 = vsel %vm955, 0, %v995
        %997 = vst [vmem:[#allocation2 + $0x9c] sm:$0x1] %v996
        %v998 = vld [vmem:[#allocation2 + $0xa8] sm:$0x1]
        %v999 = vsel %vm955, 0, %v998
        %1000 = vst [vmem:[#allocation2 + $0xa8] sm:$0x1] %v999
        %v1001 = vld [vmem:[#allocation2 + $0xb4] sm:$0x1]
        %v1002 = vsel %vm955, 0, %v1001
        %1003 = vst [vmem:[#allocation2 + $0xb4] sm:$0x1] %v1002
        %v1004 = vld [vmem:[#allocation2 + $0xc0] sm:$0x1]
        %v1005 = vsel %vm955, 0, %v1004
        %1006 = vst [vmem:[#allocation2 + $0xc0] sm:$0x1] %v1005
        %v1007 = vld [vmem:[#allocation2 + $0xcc] sm:$0x1]
        %v1008 = vsel %vm955, 0, %v1007
        %1009 = vst [vmem:[#allocation2 + $0xcc] sm:$0x1] %v1008
        %vm1010 = vsmask.f32 7938
        %vm1011 = vmand %vm953, %vm1010
        %v1012 = vld [vmem:[#allocation2 + $0x8] sm:$0x1]
        %v1013 = vsel %vm1011, 0, %v1012
        %1014 = vst [vmem:[#allocation2 + $0x8] sm:$0x1] %v1013
        %v1015 = vld [vmem:[#allocation2 + $0x14] sm:$0x1]
        %v1016 = vsel %vm1011, 0, %v1015
        %1017 = vst [vmem:[#allocation2 + $0x14] sm:$0x1] %v1016
        %v1018 = vld [vmem:[#allocation2 + $0x20] sm:$0x1]
        %v1019 = vsel %vm1011, 0, %v1018
        %1020 = vst [vmem:[#allocation2 + $0x20] sm:$0x1] %v1019
        %v1021 = vld [vmem:[#allocation2 + $0x2c] sm:$0x1]
        %v1022 = vsel %vm1011, 0, %v1021
        %1023 = vst [vmem:[#allocation2 + $0x2c] sm:$0x1] %v1022
        %v1024 = vld [vmem:[#allocation2 + $0x38] sm:$0x1]
        %v1025 = vsel %vm1011, 0, %v1024
        %1026 = vst [vmem:[#allocation2 + $0x38] sm:$0x1] %v1025
        %v1027 = vld [vmem:[#allocation2 + $0x44] sm:$0x1]
        %v1028 = vsel %vm1011, 0, %v1027
        %1029 = vst [vmem:[#allocation2 + $0x44] sm:$0x1] %v1028
        %v1030 = vld [vmem:[#allocation2 + $0x50] sm:$0x1]
        %v1031 = vsel %vm1011, 0, %v1030
        %1032 = vst [vmem:[#allocation2 + $0x50] sm:$0x1] %v1031
        %v1033 = vld [vmem:[#allocation2 + $0x5c] sm:$0x1]
        %v1034 = vsel %vm1011, 0, %v1033
        %1035 = vst [vmem:[#allocation2 + $0x5c] sm:$0x1] %v1034
        %v1036 = vld [vmem:[#allocation2 + $0x68] sm:$0x1]
        %v1037 = vsel %vm1011, 0, %v1036
        %1038 = vst [vmem:[#allocation2 + $0x68] sm:$0x1] %v1037
        %v1039 = vld [vmem:[#allocation2 + $0x74] sm:$0x1]
        %v1040 = vsel %vm1011, 0, %v1039
        %1041 = vst [vmem:[#allocation2 + $0x74] sm:$0x1] %v1040
        %v1042 = vld [vmem:[#allocation2 + $0x80] sm:$0x1]
        %v1043 = vsel %vm1011, 0, %v1042
        %1044 = vst [vmem:[#allocation2 + $0x80] sm:$0x1] %v1043
        %v1045 = vld [vmem:[#allocation2 + $0x8c] sm:$0x1]
        %v1046 = vsel %vm1011, 0, %v1045
        %1047 = vst [vmem:[#allocation2 + $0x8c] sm:$0x1] %v1046
        %v1048 = vld [vmem:[#allocation2 + $0x98] sm:$0x1]
        %v1049 = vsel %vm1011, 0, %v1048
        %1050 = vst [vmem:[#allocation2 + $0x98] sm:$0x1] %v1049
        %v1051 = vld [vmem:[#allocation2 + $0xa4] sm:$0x1]
        %v1052 = vsel %vm1011, 0, %v1051
        %1053 = vst [vmem:[#allocation2 + $0xa4] sm:$0x1] %v1052
        %v1054 = vld [vmem:[#allocation2 + $0xb0] sm:$0x1]
        %v1055 = vsel %vm1011, 0, %v1054
        %1056 = vst [vmem:[#allocation2 + $0xb0] sm:$0x1] %v1055
        %v1057 = vld [vmem:[#allocation2 + $0xbc] sm:$0x1]
        %v1058 = vsel %vm1011, 0, %v1057
        %1059 = vst [vmem:[#allocation2 + $0xbc] sm:$0x1] %v1058
        %v1060 = vld [vmem:[#allocation2 + $0xc8] sm:$0x1]
        %v1061 = vsel %vm1011, 0, %v1060
        %1062 = vst [vmem:[#allocation2 + $0xc8] sm:$0x1] %v1061
        %v1063 = vld [vmem:[#allocation2 + $0xd4] sm:$0x1]
        %v1064 = vsel %vm1011, 0, %v1063
        %1065 = vst [vmem:[#allocation2 + $0xd4] sm:$0x1] %v1064
        %v1066 = vpack.c.bf16 %v913, %v912
        %v1067 = vpack.c.bf16 %v915, %v914
        %v1068 = vpack.c.bf16 %v917, %v916
        %v1069 = vpack.c.bf16 %v919, %v918
        %v1070 = vpack.c.bf16 %v921, %v920
        %v1071 = vpack.c.bf16 %v923, %v922
        %v1072 = vpack.c.bf16 %v925, %v924
        %v1073 = vpack.c.bf16 %v927, %v926
        %v1074 = vpack.c.bf16 %v929, %v928
        %v1075 = vpack.c.bf16 %v931, %v930
        %v1076 = vpack.c.bf16 %v933, %v932
        %v1077 = vpack.c.bf16 %v935, %v934
        %v1078 = vpack.c.bf16 %v937, %v936
        %v1079 = vpack.c.bf16 %v939, %v938
        %v1080 = vpack.c.bf16 %v941, %v940
        %v1081 = vpack.c.bf16 %v943, %v942
        %v1098 = vunpack.c.l.b16 %v1066
        %v1099 = vunpack.c.h.b16 %v1066
        %v1100 = vunpack.c.l.b16 %v1067
        %v1101 = vunpack.c.h.b16 %v1067
        %v1102 = vunpack.c.l.b16 %v1068
        %v1103 = vunpack.c.h.b16 %v1068
        %v1104 = vunpack.c.l.b16 %v1069
        %v1105 = vunpack.c.h.b16 %v1069
        %v1106 = vunpack.c.l.b16 %v1070
        %v1107 = vunpack.c.h.b16 %v1070
        %v1108 = vunpack.c.l.b16 %v1071
        %v1109 = vunpack.c.h.b16 %v1071
        %v1110 = vunpack.c.l.b16 %v1072
        %v1111 = vunpack.c.h.b16 %v1072
        %v1112 = vunpack.c.l.b16 %v1073
        %v1113 = vunpack.c.h.b16 %v1073
        %v1114 = vunpack.c.l.b16 %v1074
        %v1115 = vunpack.c.h.b16 %v1074
        %v1116 = vunpack.c.l.b16 %v1075
        %v1117 = vunpack.c.h.b16 %v1075
        %v1118 = vunpack.c.l.b16 %v1076
        %v1119 = vunpack.c.h.b16 %v1076
        %v1120 = vunpack.c.l.b16 %v1077
        %v1121 = vunpack.c.h.b16 %v1077
        %v1122 = vunpack.c.l.b16 %v1078
        %v1123 = vunpack.c.h.b16 %v1078
        %v1124 = vunpack.c.l.b16 %v1079
        %v1125 = vunpack.c.h.b16 %v1079
        %v1126 = vunpack.c.l.b16 %v1080
        %v1127 = vunpack.c.h.b16 %v1080
        %v1128 = vunpack.c.l.b16 %v1081
        %v1129 = vunpack.c.h.b16 %v1081
        %v1130 = vpack.c.b16 %v1098, %v1098
        %v1131 = vpack.c.b16 %v1099, %v1099
        %v1132 = vpack.c.b16 %v1100, %v1100
        %v1133 = vpack.c.b16 %v1101, %v1101
        %v1134 = vpack.c.b16 %v1102, %v1102
        %v1135 = vpack.c.b16 %v1103, %v1103
        %v1136 = vpack.c.b16 %v1104, %v1104
        %v1137 = vpack.c.b16 %v1105, %v1105
        %v1138 = vpack.c.b16 %v1106, %v1106
        %v1139 = vpack.c.b16 %v1107, %v1107
        %v1140 = vpack.c.b16 %v1108, %v1108
        %v1141 = vpack.c.b16 %v1109, %v1109
        %v1142 = vpack.c.b16 %v1110, %v1110
        %v1143 = vpack.c.b16 %v1111, %v1111
        %v1144 = vpack.c.b16 %v1112, %v1112
        %v1145 = vpack.c.b16 %v1113, %v1113
        %v1146 = vpack.c.b16 %v1114, %v1114
        %v1147 = vpack.c.b16 %v1115, %v1115
        %v1148 = vpack.c.b16 %v1116, %v1116
        %v1149 = vpack.c.b16 %v1117, %v1117
        %v1150 = vpack.c.b16 %v1118, %v1118
        %v1151 = vpack.c.b16 %v1119, %v1119
        %v1152 = vpack.c.b16 %v1120, %v1120
        %v1153 = vpack.c.b16 %v1121, %v1121
        %v1154 = vpack.c.b16 %v1122, %v1122
        %v1155 = vpack.c.b16 %v1123, %v1123
        %v1156 = vpack.c.b16 %v1124, %v1124
        %v1157 = vpack.c.b16 %v1125, %v1125
        %v1158 = vpack.c.b16 %v1126, %v1126
        %v1159 = vpack.c.b16 %v1127, %v1127
        %v1160 = vpack.c.b16 %v1128, %v1128
        %v1161 = vpack.c.b16 %v1129, %v1129
        %vm1162 = vsmask.f32 4368
        %vm1163 = vmor %vm954, %vm1162
        %v1165 = vshrl.u32 %v1130, 16
        %v1167 = vrot.slane %v1165, 7
        %v1168 = vshll.u32 %v1130, 16
        %v1170 = vor.u32 %v1167, %v1168
        %v1171 = vrot.slane %v1167, 4
        %v1173 = vshrl.u32 %v1131, 16
        %v1175 = vrot.slane %v1173, 7
        %v1176 = vshll.u32 %v1131, 16
        %v1178 = vor.u32 %v1175, %v1176
        %v1179 = vsel %vm1163, %v1171, %v1178
        %v1180 = vrot.slane %v1175, 4
        %v1182 = vshrl.u32 %v1132, 16
        %v1184 = vrot.slane %v1182, 7
        %v1185 = vshll.u32 %v1132, 16
        %v1187 = vor.u32 %v1184, %v1185
        %v1188 = vrot.slane %v1184, 4
        %v1190 = vshrl.u32 %v1133, 16
        %v1192 = vrot.slane %v1190, 7
        %v1193 = vshll.u32 %v1133, 16
        %v1195 = vor.u32 %v1192, %v1193
        %v1196 = vsel %vm1163, %v1188, %v1195
        %v1197 = vrot.slane %v1192, 4
        %v1199 = vshrl.u32 %v1134, 16
        %v1201 = vrot.slane %v1199, 7
        %v1202 = vshll.u32 %v1134, 16
        %v1204 = vor.u32 %v1201, %v1202
        %v1205 = vrot.slane %v1201, 4
        %v1207 = vshrl.u32 %v1135, 16
        %v1209 = vrot.slane %v1207, 7
        %v1210 = vshll.u32 %v1135, 16
        %v1212 = vor.u32 %v1209, %v1210
        %v1213 = vsel %vm1163, %v1205, %v1212
        %v1214 = vrot.slane %v1209, 4
        %v1216 = vshrl.u32 %v1136, 16
        %v1218 = vrot.slane %v1216, 7
        %v1219 = vshll.u32 %v1136, 16
        %v1221 = vor.u32 %v1218, %v1219
        %v1222 = vrot.slane %v1218, 4
        %v1224 = vshrl.u32 %v1137, 16
        %v1226 = vrot.slane %v1224, 7
        %v1227 = vshll.u32 %v1137, 16
        %v1229 = vor.u32 %v1226, %v1227
        %v1230 = vsel %vm1163, %v1222, %v1229
        %v1231 = vrot.slane %v1226, 4
        %v1233 = vshrl.u32 %v1138, 16
        %v1235 = vrot.slane %v1233, 7
        %v1236 = vshll.u32 %v1138, 16
        %v1238 = vor.u32 %v1235, %v1236
        %v1239 = vrot.slane %v1235, 4
        %v1241 = vshrl.u32 %v1139, 16
        %v1243 = vrot.slane %v1241, 7
        %v1244 = vshll.u32 %v1139, 16
        %v1246 = vor.u32 %v1243, %v1244
        %v1247 = vsel %vm1163, %v1239, %v1246
        %v1248 = vrot.slane %v1243, 4
        %v1250 = vshrl.u32 %v1140, 16
        %v1252 = vrot.slane %v1250, 7
        %v1253 = vshll.u32 %v1140, 16
        %v1255 = vor.u32 %v1252, %v1253
        %v1256 = vrot.slane %v1252, 4
        %v1258 = vshrl.u32 %v1141, 16
        %v1260 = vrot.slane %v1258, 7
        %v1261 = vshll.u32 %v1141, 16
        %v1263 = vor.u32 %v1260, %v1261
        %v1264 = vsel %vm1163, %v1256, %v1263
        %v1265 = vrot.slane %v1260, 4
        %v1267 = vshrl.u32 %v1142, 16
        %v1269 = vrot.slane %v1267, 7
        %v1270 = vshll.u32 %v1142, 16
        %v1272 = vor.u32 %v1269, %v1270
        %v1273 = vrot.slane %v1269, 4
        %v1275 = vshrl.u32 %v1143, 16
        %v1277 = vrot.slane %v1275, 7
        %v1278 = vshll.u32 %v1143, 16
        %v1280 = vor.u32 %v1277, %v1278
        %v1281 = vsel %vm1163, %v1273, %v1280
        %v1282 = vrot.slane %v1277, 4
        %v1284 = vshrl.u32 %v1144, 16
        %v1286 = vrot.slane %v1284, 7
        %v1287 = vshll.u32 %v1144, 16
        %v1289 = vor.u32 %v1286, %v1287
        %v1290 = vrot.slane %v1286, 4
        %v1292 = vshrl.u32 %v1145, 16
        %v1294 = vrot.slane %v1292, 7
        %v1295 = vshll.u32 %v1145, 16
        %v1297 = vor.u32 %v1294, %v1295
        %v1298 = vsel %vm1163, %v1290, %v1297
        %v1299 = vrot.slane %v1294, 4
        %v1301 = vshrl.u32 %v1146, 16
        %v1303 = vrot.slane %v1301, 7
        %v1304 = vshll.u32 %v1146, 16
        %v1306 = vor.u32 %v1303, %v1304
        %v1307 = vrot.slane %v1303, 4
        %v1309 = vshrl.u32 %v1147, 16
        %v1311 = vrot.slane %v1309, 7
        %v1312 = vshll.u32 %v1147, 16
        %v1314 = vor.u32 %v1311, %v1312
        %v1315 = vsel %vm1163, %v1307, %v1314
        %v1316 = vrot.slane %v1311, 4
        %v1318 = vshrl.u32 %v1148, 16
        %v1320 = vrot.slane %v1318, 7
        %v1321 = vshll.u32 %v1148, 16
        %v1323 = vor.u32 %v1320, %v1321
        %v1324 = vrot.slane %v1320, 4
        %v1326 = vshrl.u32 %v1149, 16
        %v1328 = vrot.slane %v1326, 7
        %v1329 = vshll.u32 %v1149, 16
        %v1331 = vor.u32 %v1328, %v1329
        %v1332 = vsel %vm1163, %v1324, %v1331
        %v1333 = vrot.slane %v1328, 4
        %v1335 = vshrl.u32 %v1150, 16
        %v1337 = vrot.slane %v1335, 7
        %v1338 = vshll.u32 %v1150, 16
        %v1340 = vor.u32 %v1337, %v1338
        %v1341 = vrot.slane %v1337, 4
        %v1343 = vshrl.u32 %v1151, 16
        %v1345 = vrot.slane %v1343, 7
        %v1346 = vshll.u32 %v1151, 16
        %v1348 = vor.u32 %v1345, %v1346
        %v1349 = vsel %vm1163, %v1341, %v1348
        %v1350 = vrot.slane %v1345, 4
        %v1352 = vshrl.u32 %v1152, 16
        %v1354 = vrot.slane %v1352, 7
        %v1355 = vshll.u32 %v1152, 16
        %v1357 = vor.u32 %v1354, %v1355
        %v1358 = vrot.slane %v1354, 4
        %v1360 = vshrl.u32 %v1153, 16
        %v1362 = vrot.slane %v1360, 7
        %v1363 = vshll.u32 %v1153, 16
        %v1365 = vor.u32 %v1362, %v1363
        %v1366 = vsel %vm1163, %v1358, %v1365
        %v1367 = vrot.slane %v1362, 4
        %v1369 = vshrl.u32 %v1154, 16
        %v1371 = vrot.slane %v1369, 7
        %v1372 = vshll.u32 %v1154, 16
        %v1374 = vor.u32 %v1371, %v1372
        %v1375 = vrot.slane %v1371, 4
        %v1377 = vshrl.u32 %v1155, 16
        %v1379 = vrot.slane %v1377, 7
        %v1380 = vshll.u32 %v1155, 16
        %v1382 = vor.u32 %v1379, %v1380
        %v1383 = vsel %vm1163, %v1375, %v1382
        %v1384 = vrot.slane %v1379, 4
        %v1386 = vshrl.u32 %v1156, 16
        %v1388 = vrot.slane %v1386, 7
        %v1389 = vshll.u32 %v1156, 16
        %v1391 = vor.u32 %v1388, %v1389
        %v1392 = vrot.slane %v1388, 4
        %v1394 = vshrl.u32 %v1157, 16
        %v1396 = vrot.slane %v1394, 7
        %v1397 = vshll.u32 %v1157, 16
        %v1399 = vor.u32 %v1396, %v1397
        %v1400 = vsel %vm1163, %v1392, %v1399
        %v1401 = vrot.slane %v1396, 4
        %v1403 = vshrl.u32 %v1158, 16
        %v1405 = vrot.slane %v1403, 7
        %v1406 = vshll.u32 %v1158, 16
        %v1408 = vor.u32 %v1405, %v1406
        %v1409 = vrot.slane %v1405, 4
        %v1411 = vshrl.u32 %v1159, 16
        %v1413 = vrot.slane %v1411, 7
        %v1414 = vshll.u32 %v1159, 16
        %v1416 = vor.u32 %v1413, %v1414
        %v1417 = vsel %vm1163, %v1409, %v1416
        %v1418 = vrot.slane %v1413, 4
        %v1420 = vshrl.u32 %v1160, 16
        %v1422 = vrot.slane %v1420, 7
        %v1423 = vshll.u32 %v1160, 16
        %v1425 = vor.u32 %v1422, %v1423
        %v1426 = vrot.slane %v1422, 4
        %v1428 = vshrl.u32 %v1161, 16
        %v1430 = vrot.slane %v1428, 7
        %v1431 = vshll.u32 %v1161, 16
        %v1433 = vor.u32 %v1430, %v1431
        %v1434 = vsel %vm1163, %v1426, %v1433
        %v1435 = vrot.slane %v1430, 4
        %s1484 = scalar_lea.vmem [#allocation2], 12
        %vm1485 = vcmask 60416
        %vm1486 = vmand %vm1485, %vm1010
        %v1487 = vld [vmem:[%s1484] sm:$0xf]
        %v1488 = vsel %vm1486, %v1170, %v1487
        %1489 = vst [vmem:[%s1484] sm:$0xf] %v1488
        %1490 = vst.msk [vmem:[%s1484 + $0x4] sm:$0xf] %vm944, %v1179
        %v1491 = vld [vmem:[%s1484 + $0x8] sm:$0x1]
        %v1492 = vsel %vm955, %v1180, %v1491
        %1493 = vst [vmem:[%s1484 + $0x8] sm:$0x1] %v1492
        %v1494 = vld [vmem:[%s1484 + $0xc] sm:$0xf]
        %v1495 = vsel %vm1486, %v1187, %v1494
        %1496 = vst [vmem:[%s1484 + $0xc] sm:$0xf] %v1495
        %1497 = vst.msk [vmem:[%s1484 + $0x10] sm:$0xf] %vm944, %v1196
        %v1498 = vld [vmem:[%s1484 + $0x14] sm:$0x1]
        %v1499 = vsel %vm955, %v1197, %v1498
        %1500 = vst [vmem:[%s1484 + $0x14] sm:$0x1] %v1499
        %v1501 = vld [vmem:[%s1484 + $0x18] sm:$0xf]
        %v1502 = vsel %vm1486, %v1204, %v1501
        %1503 = vst [vmem:[%s1484 + $0x18] sm:$0xf] %v1502
        %1504 = vst.msk [vmem:[%s1484 + $0x1c] sm:$0xf] %vm944, %v1213
        %v1505 = vld [vmem:[%s1484 + $0x20] sm:$0x1]
        %v1506 = vsel %vm955, %v1214, %v1505
        %1507 = vst [vmem:[%s1484 + $0x20] sm:$0x1] %v1506
        %v1508 = vld [vmem:[%s1484 + $0x24] sm:$0xf]
        %v1509 = vsel %vm1486, %v1221, %v1508
        %1510 = vst [vmem:[%s1484 + $0x24] sm:$0xf] %v1509
        %1511 = vst.msk [vmem:[%s1484 + $0x28] sm:$0xf] %vm944, %v1230
        %v1512 = vld [vmem:[%s1484 + $0x2c] sm:$0x1]
        %v1513 = vsel %vm955, %v1231, %v1512
        %1514 = vst [vmem:[%s1484 + $0x2c] sm:$0x1] %v1513
        %v1515 = vld [vmem:[%s1484 + $0x30] sm:$0xf]
        %v1516 = vsel %vm1486, %v1238, %v1515
        %1517 = vst [vmem:[%s1484 + $0x30] sm:$0xf] %v1516
        %1518 = vst.msk [vmem:[%s1484 + $0x34] sm:$0xf] %vm944, %v1247
        %v1519 = vld [vmem:[%s1484 + $0x38] sm:$0x1]
        %v1520 = vsel %vm955, %v1248, %v1519
        %1521 = vst [vmem:[%s1484 + $0x38] sm:$0x1] %v1520
        %v1522 = vld [vmem:[%s1484 + $0x3c] sm:$0xf]
        %v1523 = vsel %vm1486, %v1255, %v1522
        %1524 = vst [vmem:[%s1484 + $0x3c] sm:$0xf] %v1523
        %1525 = vst.msk [vmem:[%s1484 + $0x40] sm:$0xf] %vm944, %v1264
        %v1526 = vld [vmem:[%s1484 + $0x44] sm:$0x1]
        %v1527 = vsel %vm955, %v1265, %v1526
        %1528 = vst [vmem:[%s1484 + $0x44] sm:$0x1] %v1527
        %v1529 = vld [vmem:[%s1484 + $0x48] sm:$0xf]
        %v1530 = vsel %vm1486, %v1272, %v1529
        %1531 = vst [vmem:[%s1484 + $0x48] sm:$0xf] %v1530
        %1532 = vst.msk [vmem:[%s1484 + $0x4c] sm:$0xf] %vm944, %v1281
        %v1533 = vld [vmem:[%s1484 + $0x50] sm:$0x1]
        %v1534 = vsel %vm955, %v1282, %v1533
        %1535 = vst [vmem:[%s1484 + $0x50] sm:$0x1] %v1534
        %v1536 = vld [vmem:[%s1484 + $0x54] sm:$0xf]
        %v1537 = vsel %vm1486, %v1289, %v1536
        %1538 = vst [vmem:[%s1484 + $0x54] sm:$0xf] %v1537
        %1539 = vst.msk [vmem:[%s1484 + $0x58] sm:$0xf] %vm944, %v1298
        %v1540 = vld [vmem:[%s1484 + $0x5c] sm:$0x1]
        %v1541 = vsel %vm955, %v1299, %v1540
        %1542 = vst [vmem:[%s1484 + $0x5c] sm:$0x1] %v1541
        %v1543 = vld [vmem:[%s1484 + $0x60] sm:$0xf]
        %v1544 = vsel %vm1486, %v1306, %v1543
        %1545 = vst [vmem:[%s1484 + $0x60] sm:$0xf] %v1544
        %1546 = vst.msk [vmem:[%s1484 + $0x64] sm:$0xf] %vm944, %v1315
        %v1547 = vld [vmem:[%s1484 + $0x68] sm:$0x1]
        %v1548 = vsel %vm955, %v1316, %v1547
        %1549 = vst [vmem:[%s1484 + $0x68] sm:$0x1] %v1548
        %v1550 = vld [vmem:[%s1484 + $0x6c] sm:$0xf]
        %v1551 = vsel %vm1486, %v1323, %v1550
        %1552 = vst [vmem:[%s1484 + $0x6c] sm:$0xf] %v1551
        %1553 = vst.msk [vmem:[%s1484 + $0x70] sm:$0xf] %vm944, %v1332
        %v1554 = vld [vmem:[%s1484 + $0x74] sm:$0x1]
        %v1555 = vsel %vm955, %v1333, %v1554
        %1556 = vst [vmem:[%s1484 + $0x74] sm:$0x1] %v1555
        %v1557 = vld [vmem:[%s1484 + $0x78] sm:$0xf]
        %v1558 = vsel %vm1486, %v1340, %v1557
        %1559 = vst [vmem:[%s1484 + $0x78] sm:$0xf] %v1558
        %1560 = vst.msk [vmem:[%s1484 + $0x7c] sm:$0xf] %vm944, %v1349
        %v1561 = vld [vmem:[%s1484 + $0x80] sm:$0x1]
        %v1562 = vsel %vm955, %v1350, %v1561
        %1563 = vst [vmem:[%s1484 + $0x80] sm:$0x1] %v1562
        %v1564 = vld [vmem:[%s1484 + $0x84] sm:$0xf]
        %v1565 = vsel %vm1486, %v1357, %v1564
        %1566 = vst [vmem:[%s1484 + $0x84] sm:$0xf] %v1565
        %1567 = vst.msk [vmem:[%s1484 + $0x88] sm:$0xf] %vm944, %v1366
        %v1568 = vld [vmem:[%s1484 + $0x8c] sm:$0x1]
        %v1569 = vsel %vm955, %v1367, %v1568
        %1570 = vst [vmem:[%s1484 + $0x8c] sm:$0x1] %v1569
        %v1571 = vld [vmem:[%s1484 + $0x90] sm:$0xf]
        %v1572 = vsel %vm1486, %v1374, %v1571
        %1573 = vst [vmem:[%s1484 + $0x90] sm:$0xf] %v1572
        %1574 = vst.msk [vmem:[%s1484 + $0x94] sm:$0xf] %vm944, %v1383
        %v1575 = vld [vmem:[%s1484 + $0x98] sm:$0x1]
        %v1576 = vsel %vm955, %v1384, %v1575
        %1577 = vst [vmem:[%s1484 + $0x98] sm:$0x1] %v1576
        %v1578 = vld [vmem:[%s1484 + $0x9c] sm:$0xf]
        %v1579 = vsel %vm1486, %v1391, %v1578
        %1580 = vst [vmem:[%s1484 + $0x9c] sm:$0xf] %v1579
        %1581 = vst.msk [vmem:[%s1484 + $0xa0] sm:$0xf] %vm944, %v1400
        %v1582 = vld [vmem:[%s1484 + $0xa4] sm:$0x1]
        %v1583 = vsel %vm955, %v1401, %v1582
        %1584 = vst [vmem:[%s1484 + $0xa4] sm:$0x1] %v1583
        %v1585 = vld [vmem:[%s1484 + $0xa8] sm:$0xf]
        %v1586 = vsel %vm1486, %v1408, %v1585
        %1587 = vst [vmem:[%s1484 + $0xa8] sm:$0xf] %v1586
        %1588 = vst.msk [vmem:[%s1484 + $0xac] sm:$0xf] %vm944, %v1417
        %v1589 = vld [vmem:[%s1484 + $0xb0] sm:$0x1]
        %v1590 = vsel %vm955, %v1418, %v1589
        %1591 = vst [vmem:[%s1484 + $0xb0] sm:$0x1] %v1590
        %v1592 = vld [vmem:[%s1484 + $0xb4] sm:$0xf]
        %v1593 = vsel %vm1486, %v1425, %v1592
        %1594 = vst [vmem:[%s1484 + $0xb4] sm:$0xf] %v1593
        %1595 = vst.msk [vmem:[%s1484 + $0xb8] sm:$0xf] %vm944, %v1434
        %v1596 = vld [vmem:[%s1484 + $0xbc] sm:$0x1]
        %v1597 = vsel %vm955, %v1435, %v1596
        %1598 = vst [vmem:[%s1484 + $0xbc] sm:$0x1] %v1597
        %v1599 = vld [vmem:[#allocation2] sm:$0xf]
        %v1600 = vld [vmem:[#allocation2 + $0x4] sm:$0xf]
        %v1601 = vld [vmem:[#allocation2 + $0xc] sm:$0xf]
        %v1602 = vld [vmem:[#allocation2 + $0x10] sm:$0xf]
        %v1603 = vld [vmem:[#allocation2 + $0x18] sm:$0xf]
        %v1604 = vld [vmem:[#allocation2 + $0x1c] sm:$0xf]
        %v1605 = vld [vmem:[#allocation2 + $0x24] sm:$0xf]
        %v1606 = vld [vmem:[#allocation2 + $0x28] sm:$0xf]
        %v1607 = vld [vmem:[#allocation2 + $0x30] sm:$0xf]
        %v1608 = vld [vmem:[#allocation2 + $0x34] sm:$0xf]
        %v1609 = vld [vmem:[#allocation2 + $0x3c] sm:$0xf]
        %v1610 = vld [vmem:[#allocation2 + $0x40] sm:$0xf]
        %v1611 = vld [vmem:[#allocation2 + $0x48] sm:$0xf]
        %v1612 = vld [vmem:[#allocation2 + $0x4c] sm:$0xf]
        %v1613 = vld [vmem:[#allocation2 + $0x54] sm:$0xf]
        %v1614 = vld [vmem:[#allocation2 + $0x58] sm:$0xf]
        %v1615 = vld [vmem:[#allocation2 + $0x60] sm:$0xf]
        %v1616 = vld [vmem:[#allocation2 + $0x64] sm:$0xf]
        %v1617 = vld [vmem:[#allocation2 + $0x6c] sm:$0xf]
        %v1618 = vld [vmem:[#allocation2 + $0x70] sm:$0xf]
        %v1619 = vld [vmem:[#allocation2 + $0x78] sm:$0xf]
        %v1620 = vld [vmem:[#allocation2 + $0x7c] sm:$0xf]
        %v1621 = vld [vmem:[#allocation2 + $0x84] sm:$0xf]
        %v1622 = vld [vmem:[#allocation2 + $0x88] sm:$0xf]
        %v1623 = vld [vmem:[#allocation2 + $0x90] sm:$0xf]
        %v1624 = vld [vmem:[#allocation2 + $0x94] sm:$0xf]
        %v1625 = vld [vmem:[#allocation2 + $0x9c] sm:$0xf]
        %v1626 = vld [vmem:[#allocation2 + $0xa0] sm:$0xf]
        %v1627 = vld [vmem:[#allocation2 + $0xa8] sm:$0xf]
        %v1628 = vld [vmem:[#allocation2 + $0xac] sm:$0xf]
        %v1629 = vld [vmem:[#allocation2 + $0xb4] sm:$0xf]
        %v1630 = vld [vmem:[#allocation2 + $0xb8] sm:$0xf]
        %v1631 = vld [vmem:[#allocation2 + $0x8] sm:$0x1]
        %v1632 = vld [vmem:[#allocation2 + $0x14] sm:$0x1]
        %v1633 = vld [vmem:[#allocation2 + $0x20] sm:$0x1]
        %v1634 = vld [vmem:[#allocation2 + $0x2c] sm:$0x1]
        %v1635 = vld [vmem:[#allocation2 + $0x38] sm:$0x1]
        %v1636 = vld [vmem:[#allocation2 + $0x44] sm:$0x1]
        %v1637 = vld [vmem:[#allocation2 + $0x50] sm:$0x1]
        %v1638 = vld [vmem:[#allocation2 + $0x5c] sm:$0x1]
        %v1639 = vld [vmem:[#allocation2 + $0x68] sm:$0x1]
        %v1640 = vld [vmem:[#allocation2 + $0x74] sm:$0x1]
        %v1641 = vld [vmem:[#allocation2 + $0x80] sm:$0x1]
        %v1642 = vld [vmem:[#allocation2 + $0x8c] sm:$0x1]
        %v1643 = vld [vmem:[#allocation2 + $0x98] sm:$0x1]
        %v1644 = vld [vmem:[#allocation2 + $0xa4] sm:$0x1]
        %v1645 = vld [vmem:[#allocation2 + $0xb0] sm:$0x1]
        %v1646 = vld [vmem:[#allocation2 + $0xbc] sm:$0x1]
        %vm1647 = vsmask.f32 3328
        %vm1648 = vsmask.f32 7440
        %vm1649 = vmor %vm1647, %vm1648
        %v1651 = vshrl.u32 %v1599, 16
        %v1653 = vrot.slane %v1651, 4
        %v1654 = vshll.u32 %v1599, 16
        %v1656 = vrot.slane %v1654, 5
        %v1657 = vor.u32 %v1653, %v1656
        %v1658 = vrot.slane %v1657, 4
        %v1660 = vshll.u32 %v1600, 16
        %v1662 = vrot.slane %v1660, 5
        %v1663 = vsel %vm1649, %v1658, %v1662
        %v1664 = vshrl.u32 %v1600, 16
        %v1666 = vrot.slane %v1664, 4
        %v1667 = vor.u32 %v1666, %v1662
        %v1668 = vrot.slane %v1667, 4
        %v1670 = vshll.u32 %v1631, 16
        %v1672 = vrot.slane %v1670, 5
        %v1673 = vsel %vm1649, %v1668, %v1672
        %v1675 = vshrl.u32 %v1601, 16
        %v1677 = vrot.slane %v1675, 4
        %v1678 = vshll.u32 %v1601, 16
        %v1680 = vrot.slane %v1678, 5
        %v1681 = vor.u32 %v1677, %v1680
        %v1682 = vrot.slane %v1681, 4
        %v1684 = vshll.u32 %v1602, 16
        %v1686 = vrot.slane %v1684, 5
        %v1687 = vsel %vm1649, %v1682, %v1686
        %v1688 = vshrl.u32 %v1602, 16
        %v1690 = vrot.slane %v1688, 4
        %v1691 = vor.u32 %v1690, %v1686
        %v1692 = vrot.slane %v1691, 4
        %v1694 = vshll.u32 %v1632, 16
        %v1696 = vrot.slane %v1694, 5
        %v1697 = vsel %vm1649, %v1692, %v1696
        %v1699 = vshrl.u32 %v1603, 16
        %v1701 = vrot.slane %v1699, 4
        %v1702 = vshll.u32 %v1603, 16
        %v1704 = vrot.slane %v1702, 5
        %v1705 = vor.u32 %v1701, %v1704
        %v1706 = vrot.slane %v1705, 4
        %v1708 = vshll.u32 %v1604, 16
        %v1710 = vrot.slane %v1708, 5
        %v1711 = vsel %vm1649, %v1706, %v1710
        %v1712 = vshrl.u32 %v1604, 16
        %v1714 = vrot.slane %v1712, 4
        %v1715 = vor.u32 %v1714, %v1710
        %v1716 = vrot.slane %v1715, 4
        %v1718 = vshll.u32 %v1633, 16
        %v1720 = vrot.slane %v1718, 5
        %v1721 = vsel %vm1649, %v1716, %v1720
        %v1723 = vshrl.u32 %v1605, 16
        %v1725 = vrot.slane %v1723, 4
        %v1726 = vshll.u32 %v1605, 16
        %v1728 = vrot.slane %v1726, 5
        %v1729 = vor.u32 %v1725, %v1728
        %v1730 = vrot.slane %v1729, 4
        %v1732 = vshll.u32 %v1606, 16
        %v1734 = vrot.slane %v1732, 5
        %v1735 = vsel %vm1649, %v1730, %v1734
        %v1736 = vshrl.u32 %v1606, 16
        %v1738 = vrot.slane %v1736, 4
        %v1739 = vor.u32 %v1738, %v1734
        %v1740 = vrot.slane %v1739, 4
        %v1742 = vshll.u32 %v1634, 16
        %v1744 = vrot.slane %v1742, 5
        %v1745 = vsel %vm1649, %v1740, %v1744
        %v1747 = vshrl.u32 %v1607, 16
        %v1749 = vrot.slane %v1747, 4
        %v1750 = vshll.u32 %v1607, 16
        %v1752 = vrot.slane %v1750, 5
        %v1753 = vor.u32 %v1749, %v1752
        %v1754 = vrot.slane %v1753, 4
        %v1756 = vshll.u32 %v1608, 16
        %v1758 = vrot.slane %v1756, 5
        %v1759 = vsel %vm1649, %v1754, %v1758
        %v1760 = vshrl.u32 %v1608, 16
        %v1762 = vrot.slane %v1760, 4
        %v1763 = vor.u32 %v1762, %v1758
        %v1764 = vrot.slane %v1763, 4
        %v1766 = vshll.u32 %v1635, 16
        %v1768 = vrot.slane %v1766, 5
        %v1769 = vsel %vm1649, %v1764, %v1768
        %v1771 = vshrl.u32 %v1609, 16
        %v1773 = vrot.slane %v1771, 4
        %v1774 = vshll.u32 %v1609, 16
        %v1776 = vrot.slane %v1774, 5
        %v1777 = vor.u32 %v1773, %v1776
        %v1778 = vrot.slane %v1777, 4
        %v1780 = vshll.u32 %v1610, 16
        %v1782 = vrot.slane %v1780, 5
        %v1783 = vsel %vm1649, %v1778, %v1782
        %v1784 = vshrl.u32 %v1610, 16
        %v1786 = vrot.slane %v1784, 4
        %v1787 = vor.u32 %v1786, %v1782
        %v1788 = vrot.slane %v1787, 4
        %v1790 = vshll.u32 %v1636, 16
        %v1792 = vrot.slane %v1790, 5
        %v1793 = vsel %vm1649, %v1788, %v1792
        %v1795 = vshrl.u32 %v1611, 16
        %v1797 = vrot.slane %v1795, 4
        %v1798 = vshll.u32 %v1611, 16
        %v1800 = vrot.slane %v1798, 5
        %v1801 = vor.u32 %v1797, %v1800
        %v1802 = vrot.slane %v1801, 4
        %v1804 = vshll.u32 %v1612, 16
        %v1806 = vrot.slane %v1804, 5
        %v1807 = vsel %vm1649, %v1802, %v1806
        %v1808 = vshrl.u32 %v1612, 16
        %v1810 = vrot.slane %v1808, 4
        %v1811 = vor.u32 %v1810, %v1806
        %v1812 = vrot.slane %v1811, 4
        %v1814 = vshll.u32 %v1637, 16
        %v1816 = vrot.slane %v1814, 5
        %v1817 = vsel %vm1649, %v1812, %v1816
        %v1819 = vshrl.u32 %v1613, 16
        %v1821 = vrot.slane %v1819, 4
        %v1822 = vshll.u32 %v1613, 16
        %v1824 = vrot.slane %v1822, 5
        %v1825 = vor.u32 %v1821, %v1824
        %v1826 = vrot.slane %v1825, 4
        %v1828 = vshll.u32 %v1614, 16
        %v1830 = vrot.slane %v1828, 5
        %v1831 = vsel %vm1649, %v1826, %v1830
        %v1832 = vshrl.u32 %v1614, 16
        %v1834 = vrot.slane %v1832, 4
        %v1835 = vor.u32 %v1834, %v1830
        %v1836 = vrot.slane %v1835, 4
        %v1838 = vshll.u32 %v1638, 16
        %v1840 = vrot.slane %v1838, 5
        %v1841 = vsel %vm1649, %v1836, %v1840
        %v1843 = vshrl.u32 %v1615, 16
        %v1845 = vrot.slane %v1843, 4
        %v1846 = vshll.u32 %v1615, 16
        %v1848 = vrot.slane %v1846, 5
        %v1849 = vor.u32 %v1845, %v1848
        %v1850 = vrot.slane %v1849, 4
        %v1852 = vshll.u32 %v1616, 16
        %v1854 = vrot.slane %v1852, 5
        %v1855 = vsel %vm1649, %v1850, %v1854
        %v1856 = vshrl.u32 %v1616, 16
        %v1858 = vrot.slane %v1856, 4
        %v1859 = vor.u32 %v1858, %v1854
        %v1860 = vrot.slane %v1859, 4
        %v1862 = vshll.u32 %v1639, 16
        %v1864 = vrot.slane %v1862, 5
        %v1865 = vsel %vm1649, %v1860, %v1864
        %v1867 = vshrl.u32 %v1617, 16
        %v1869 = vrot.slane %v1867, 4
        %v1870 = vshll.u32 %v1617, 16
        %v1872 = vrot.slane %v1870, 5
        %v1873 = vor.u32 %v1869, %v1872
        %v1874 = vrot.slane %v1873, 4
        %v1876 = vshll.u32 %v1618, 16
        %v1878 = vrot.slane %v1876, 5
        %v1879 = vsel %vm1649, %v1874, %v1878
        %v1880 = vshrl.u32 %v1618, 16
        %v1882 = vrot.slane %v1880, 4
        %v1883 = vor.u32 %v1882, %v1878
        %v1884 = vrot.slane %v1883, 4
        %v1886 = vshll.u32 %v1640, 16
        %v1888 = vrot.slane %v1886, 5
        %v1889 = vsel %vm1649, %v1884, %v1888
        %v1891 = vshrl.u32 %v1619, 16
        %v1893 = vrot.slane %v1891, 4
        %v1894 = vshll.u32 %v1619, 16
        %v1896 = vrot.slane %v1894, 5
        %v1897 = vor.u32 %v1893, %v1896
        %v1898 = vrot.slane %v1897, 4
        %v1900 = vshll.u32 %v1620, 16
        %v1902 = vrot.slane %v1900, 5
        %v1903 = vsel %vm1649, %v1898, %v1902
        %v1904 = vshrl.u32 %v1620, 16
        %v1906 = vrot.slane %v1904, 4
        %v1907 = vor.u32 %v1906, %v1902
        %v1908 = vrot.slane %v1907, 4
        %v1910 = vshll.u32 %v1641, 16
        %v1912 = vrot.slane %v1910, 5
        %v1913 = vsel %vm1649, %v1908, %v1912
        %v1915 = vshrl.u32 %v1621, 16
        %v1917 = vrot.slane %v1915, 4
        %v1918 = vshll.u32 %v1621, 16
        %v1920 = vrot.slane %v1918, 5
        %v1921 = vor.u32 %v1917, %v1920
        %v1922 = vrot.slane %v1921, 4
        %v1924 = vshll.u32 %v1622, 16
        %v1926 = vrot.slane %v1924, 5
        %v1927 = vsel %vm1649, %v1922, %v1926
        %v1928 = vshrl.u32 %v1622, 16
        %v1930 = vrot.slane %v1928, 4
        %v1931 = vor.u32 %v1930, %v1926
        %v1932 = vrot.slane %v1931, 4
        %v1934 = vshll.u32 %v1642, 16
        %v1936 = vrot.slane %v1934, 5
        %v1937 = vsel %vm1649, %v1932, %v1936
        %v1939 = vshrl.u32 %v1623, 16
        %v1941 = vrot.slane %v1939, 4
        %v1942 = vshll.u32 %v1623, 16
        %v1944 = vrot.slane %v1942, 5
        %v1945 = vor.u32 %v1941, %v1944
        %v1946 = vrot.slane %v1945, 4
        %v1948 = vshll.u32 %v1624, 16
        %v1950 = vrot.slane %v1948, 5
        %v1951 = vsel %vm1649, %v1946, %v1950
        %v1952 = vshrl.u32 %v1624, 16
        %v1954 = vrot.slane %v1952, 4
        %v1955 = vor.u32 %v1954, %v1950
        %v1956 = vrot.slane %v1955, 4
        %v1958 = vshll.u32 %v1643, 16
        %v1960 = vrot.slane %v1958, 5
        %v1961 = vsel %vm1649, %v1956, %v1960
        %v1963 = vshrl.u32 %v1625, 16
        %v1965 = vrot.slane %v1963, 4
        %v1966 = vshll.u32 %v1625, 16
        %v1968 = vrot.slane %v1966, 5
        %v1969 = vor.u32 %v1965, %v1968
        %v1970 = vrot.slane %v1969, 4
        %v1972 = vshll.u32 %v1626, 16
        %v1974 = vrot.slane %v1972, 5
        %v1975 = vsel %vm1649, %v1970, %v1974
        %v1976 = vshrl.u32 %v1626, 16
        %v1978 = vrot.slane %v1976, 4
        %v1979 = vor.u32 %v1978, %v1974
        %v1980 = vrot.slane %v1979, 4
        %v1982 = vshll.u32 %v1644, 16
        %v1984 = vrot.slane %v1982, 5
        %v1985 = vsel %vm1649, %v1980, %v1984
        %v1987 = vshrl.u32 %v1627, 16
        %v1989 = vrot.slane %v1987, 4
        %v1990 = vshll.u32 %v1627, 16
        %v1992 = vrot.slane %v1990, 5
        %v1993 = vor.u32 %v1989, %v1992
        %v1994 = vrot.slane %v1993, 4
        %v1996 = vshll.u32 %v1628, 16
        %v1998 = vrot.slane %v1996, 5
        %v1999 = vsel %vm1649, %v1994, %v1998
        %v2000 = vshrl.u32 %v1628, 16
        %v2002 = vrot.slane %v2000, 4
        %v2003 = vor.u32 %v2002, %v1998
        %v2004 = vrot.slane %v2003, 4
        %v2006 = vshll.u32 %v1645, 16
        %v2008 = vrot.slane %v2006, 5
        %v2009 = vsel %vm1649, %v2004, %v2008
        %v2011 = vshrl.u32 %v1629, 16
        %v2013 = vrot.slane %v2011, 4
        %v2014 = vshll.u32 %v1629, 16
        %v2016 = vrot.slane %v2014, 5
        %v2017 = vor.u32 %v2013, %v2016
        %v2018 = vrot.slane %v2017, 4
        %v2020 = vshll.u32 %v1630, 16
        %v2022 = vrot.slane %v2020, 5
        %v2023 = vsel %vm1649, %v2018, %v2022
        %v2024 = vshrl.u32 %v1630, 16
        %v2026 = vrot.slane %v2024, 4
        %v2027 = vor.u32 %v2026, %v2022
        %v2028 = vrot.slane %v2027, 4
        %v2030 = vshll.u32 %v1646, 16
        %v2032 = vrot.slane %v2030, 5
        %v2033 = vsel %vm1649, %v2028, %v2032
        %v2034 = vld [vmem:[#allocation2] sm:$0xe]
        %v2035 = vld [vmem:[#allocation2 + $0xc] sm:$0xe]
        %v2036 = vld [vmem:[#allocation2 + $0x18] sm:$0xe]
        %v2037 = vld [vmem:[#allocation2 + $0x24] sm:$0xe]
        %v2038 = vld [vmem:[#allocation2 + $0x30] sm:$0xe]
        %v2039 = vld [vmem:[#allocation2 + $0x3c] sm:$0xe]
        %v2040 = vld [vmem:[#allocation2 + $0x48] sm:$0xe]
        %v2041 = vld [vmem:[#allocation2 + $0x54] sm:$0xe]
        %v2042 = vld [vmem:[#allocation2 + $0x60] sm:$0xe]
        %v2043 = vld [vmem:[#allocation2 + $0x6c] sm:$0xe]
        %v2044 = vld [vmem:[#allocation2 + $0x78] sm:$0xe]
        %v2045 = vld [vmem:[#allocation2 + $0x84] sm:$0xe]
        %v2046 = vld [vmem:[#allocation2 + $0x90] sm:$0xe]
        %v2047 = vld [vmem:[#allocation2 + $0x9c] sm:$0xe]
        %v2048 = vld [vmem:[#allocation2 + $0xa8] sm:$0xe]
        %v2049 = vld [vmem:[#allocation2 + $0xb4] sm:$0xe]
        %vm2098 = vcmask 1042432
        %vm2099 = vcmask 1046532
        %vm2100 = vmor %vm2098, %vm2099
        %v2101 = vrot.slane %v2034, 5
        %v2102 = vrot.slane %v2101, 4
        %v2103 = vrot.slane %v1600, 5
        %v2104 = vsel %vm2100, %v2102, %v2103
        %v2105 = vrot.slane %v2103, 4
        %v2106 = vrot.slane %v1631, 5
        %v2107 = vsel %vm2100, %v2105, %v2106
        %v2108 = vrot.slane %v2035, 5
        %v2109 = vrot.slane %v2108, 4
        %v2110 = vrot.slane %v1602, 5
        %v2111 = vsel %vm2100, %v2109, %v2110
        %v2112 = vrot.slane %v2110, 4
        %v2113 = vrot.slane %v1632, 5
        %v2114 = vsel %vm2100, %v2112, %v2113
        %v2115 = vrot.slane %v2036, 5
        %v2116 = vrot.slane %v2115, 4
        %v2117 = vrot.slane %v1604, 5
        %v2118 = vsel %vm2100, %v2116, %v2117
        %v2119 = vrot.slane %v2117, 4
        %v2120 = vrot.slane %v1633, 5
        %v2121 = vsel %vm2100, %v2119, %v2120
        %v2122 = vrot.slane %v2037, 5
        %v2123 = vrot.slane %v2122, 4
        %v2124 = vrot.slane %v1606, 5
        %v2125 = vsel %vm2100, %v2123, %v2124
        %v2126 = vrot.slane %v2124, 4
        %v2127 = vrot.slane %v1634, 5
        %v2128 = vsel %vm2100, %v2126, %v2127
        %v2129 = vrot.slane %v2038, 5
        %v2130 = vrot.slane %v2129, 4
        %v2131 = vrot.slane %v1608, 5
        %v2132 = vsel %vm2100, %v2130, %v2131
        %v2133 = vrot.slane %v2131, 4
        %v2134 = vrot.slane %v1635, 5
        %v2135 = vsel %vm2100, %v2133, %v2134
        %v2136 = vrot.slane %v2039, 5
        %v2137 = vrot.slane %v2136, 4
        %v2138 = vrot.slane %v1610, 5
        %v2139 = vsel %vm2100, %v2137, %v2138
        %v2140 = vrot.slane %v2138, 4
        %v2141 = vrot.slane %v1636, 5
        %v2142 = vsel %vm2100, %v2140, %v2141
        %v2143 = vrot.slane %v2040, 5
        %v2144 = vrot.slane %v2143, 4
        %v2145 = vrot.slane %v1612, 5
        %v2146 = vsel %vm2100, %v2144, %v2145
        %v2147 = vrot.slane %v2145, 4
        %v2148 = vrot.slane %v1637, 5
        %v2149 = vsel %vm2100, %v2147, %v2148
        %v2150 = vrot.slane %v2041, 5
        %v2151 = vrot.slane %v2150, 4
        %v2152 = vrot.slane %v1614, 5
        %v2153 = vsel %vm2100, %v2151, %v2152
        %v2154 = vrot.slane %v2152, 4
        %v2155 = vrot.slane %v1638, 5
        %v2156 = vsel %vm2100, %v2154, %v2155
        %v2157 = vrot.slane %v2042, 5
        %v2158 = vrot.slane %v2157, 4
        %v2159 = vrot.slane %v1616, 5
        %v2160 = vsel %vm2100, %v2158, %v2159
        %v2161 = vrot.slane %v2159, 4
        %v2162 = vrot.slane %v1639, 5
        %v2163 = vsel %vm2100, %v2161, %v2162
        %v2164 = vrot.slane %v2043, 5
        %v2165 = vrot.slane %v2164, 4
        %v2166 = vrot.slane %v1618, 5
        %v2167 = vsel %vm2100, %v2165, %v2166
        %v2168 = vrot.slane %v2166, 4
        %v2169 = vrot.slane %v1640, 5
        %v2170 = vsel %vm2100, %v2168, %v2169
        %v2171 = vrot.slane %v2044, 5
        %v2172 = vrot.slane %v2171, 4
        %v2173 = vrot.slane %v1620, 5
        %v2174 = vsel %vm2100, %v2172, %v2173
        %v2175 = vrot.slane %v2173, 4
        %v2176 = vrot.slane %v1641, 5
        %v2177 = vsel %vm2100, %v2175, %v2176
        %v2178 = vrot.slane %v2045, 5
        %v2179 = vrot.slane %v2178, 4
        %v2180 = vrot.slane %v1622, 5
        %v2181 = vsel %vm2100, %v2179, %v2180
        %v2182 = vrot.slane %v2180, 4
        %v2183 = vrot.slane %v1642, 5
        %v2184 = vsel %vm2100, %v2182, %v2183
        %v2185 = vrot.slane %v2046, 5
        %v2186 = vrot.slane %v2185, 4
        %v2187 = vrot.slane %v1624, 5
        %v2188 = vsel %vm2100, %v2186, %v2187
        %v2189 = vrot.slane %v2187, 4
        %v2190 = vrot.slane %v1643, 5
        %v2191 = vsel %vm2100, %v2189, %v2190
        %v2192 = vrot.slane %v2047, 5
        %v2193 = vrot.slane %v2192, 4
        %v2194 = vrot.slane %v1626, 5
        %v2195 = vsel %vm2100, %v2193, %v2194
        %v2196 = vrot.slane %v2194, 4
        %v2197 = vrot.slane %v1644, 5
        %v2198 = vsel %vm2100, %v2196, %v2197
        %v2199 = vrot.slane %v2048, 5
        %v2200 = vrot.slane %v2199, 4
        %v2201 = vrot.slane %v1628, 5
        %v2202 = vsel %vm2100, %v2200, %v2201
        %v2203 = vrot.slane %v2201, 4
        %v2204 = vrot.slane %v1645, 5
        %v2205 = vsel %vm2100, %v2203, %v2204
        %v2206 = vrot.slane %v2049, 5
        %v2207 = vrot.slane %v2206, 4
        %v2208 = vrot.slane %v1630, 5
        %v2209 = vsel %vm2100, %v2207, %v2208
        %v2210 = vrot.slane %v2208, 4
        %v2211 = vrot.slane %v1646, 5
        %v2212 = vsel %vm2100, %v2210, %v2211
        %v2213 = vld [vmem:[%s1484] sm:$0xf]
        %v2214 = vld [vmem:[%s1484 + $0x4] sm:$0xf]
        %v2215 = vld [vmem:[%s1484 + $0xc] sm:$0xf]
        %v2216 = vld [vmem:[%s1484 + $0x10] sm:$0xf]
        %v2217 = vld [vmem:[%s1484 + $0x18] sm:$0xf]
        %v2218 = vld [vmem:[%s1484 + $0x1c] sm:$0xf]
        %v2219 = vld [vmem:[%s1484 + $0x24] sm:$0xf]
        %v2220 = vld [vmem:[%s1484 + $0x28] sm:$0xf]
        %v2221 = vld [vmem:[%s1484 + $0x30] sm:$0xf]
        %v2222 = vld [vmem:[%s1484 + $0x34] sm:$0xf]
        %v2223 = vld [vmem:[%s1484 + $0x3c] sm:$0xf]
        %v2224 = vld [vmem:[%s1484 + $0x40] sm:$0xf]
        %v2225 = vld [vmem:[%s1484 + $0x48] sm:$0xf]
        %v2226 = vld [vmem:[%s1484 + $0x4c] sm:$0xf]
        %v2227 = vld [vmem:[%s1484 + $0x54] sm:$0xf]
        %v2228 = vld [vmem:[%s1484 + $0x58] sm:$0xf]
        %v2229 = vld [vmem:[%s1484 + $0x60] sm:$0xf]
        %v2230 = vld [vmem:[%s1484 + $0x64] sm:$0xf]
        %v2231 = vld [vmem:[%s1484 + $0x6c] sm:$0xf]
        %v2232 = vld [vmem:[%s1484 + $0x70] sm:$0xf]
        %v2233 = vld [vmem:[%s1484 + $0x78] sm:$0xf]
        %v2234 = vld [vmem:[%s1484 + $0x7c] sm:$0xf]
        %v2235 = vld [vmem:[%s1484 + $0x84] sm:$0xf]
        %v2236 = vld [vmem:[%s1484 + $0x88] sm:$0xf]
        %v2237 = vld [vmem:[%s1484 + $0x90] sm:$0xf]
        %v2238 = vld [vmem:[%s1484 + $0x94] sm:$0xf]
        %v2239 = vld [vmem:[%s1484 + $0x9c] sm:$0xf]
        %v2240 = vld [vmem:[%s1484 + $0xa0] sm:$0xf]
        %v2241 = vld [vmem:[%s1484 + $0xa8] sm:$0xf]
        %v2242 = vld [vmem:[%s1484 + $0xac] sm:$0xf]
        %v2243 = vld [vmem:[%s1484 + $0xb4] sm:$0xf]
        %v2244 = vld [vmem:[%s1484 + $0xb8] sm:$0xf]
        %v2245 = vld [vmem:[%s1484 + $0x8] sm:$0x1]
        %v2246 = vld [vmem:[%s1484 + $0x14] sm:$0x1]
        %v2247 = vld [vmem:[%s1484 + $0x20] sm:$0x1]
        %v2248 = vld [vmem:[%s1484 + $0x2c] sm:$0x1]
        %v2249 = vld [vmem:[%s1484 + $0x38] sm:$0x1]
        %v2250 = vld [vmem:[%s1484 + $0x44] sm:$0x1]
        %v2251 = vld [vmem:[%s1484 + $0x50] sm:$0x1]
        %v2252 = vld [vmem:[%s1484 + $0x5c] sm:$0x1]
        %v2253 = vld [vmem:[%s1484 + $0x68] sm:$0x1]
        %v2254 = vld [vmem:[%s1484 + $0x74] sm:$0x1]
        %v2255 = vld [vmem:[%s1484 + $0x80] sm:$0x1]
        %v2256 = vld [vmem:[%s1484 + $0x8c] sm:$0x1]
        %v2257 = vld [vmem:[%s1484 + $0x98] sm:$0x1]
        %v2258 = vld [vmem:[%s1484 + $0xa4] sm:$0x1]
        %v2259 = vld [vmem:[%s1484 + $0xb0] sm:$0x1]
        %v2260 = vld [vmem:[%s1484 + $0xbc] sm:$0x1]
        %v2262 = vshrl.u32 %v2213, 16
        %v2264 = vrot.slane %v2262, 4
        %v2265 = vshll.u32 %v2213, 16
        %v2267 = vrot.slane %v2265, 5
        %v2268 = vor.u32 %v2264, %v2267
        %v2269 = vrot.slane %v2268, 4
        %v2271 = vshll.u32 %v2214, 16
        %v2273 = vrot.slane %v2271, 5
        %v2274 = vsel %vm1649, %v2269, %v2273
        %v2275 = vshrl.u32 %v2214, 16
        %v2277 = vrot.slane %v2275, 4
        %v2278 = vor.u32 %v2277, %v2273
        %v2279 = vrot.slane %v2278, 4
        %v2281 = vshll.u32 %v2245, 16
        %v2283 = vrot.slane %v2281, 5
        %v2284 = vsel %vm1649, %v2279, %v2283
        %v2286 = vshrl.u32 %v2215, 16
        %v2288 = vrot.slane %v2286, 4
        %v2289 = vshll.u32 %v2215, 16
        %v2291 = vrot.slane %v2289, 5
        %v2292 = vor.u32 %v2288, %v2291
        %v2293 = vrot.slane %v2292, 4
        %v2295 = vshll.u32 %v2216, 16
        %v2297 = vrot.slane %v2295, 5
        %v2298 = vsel %vm1649, %v2293, %v2297
        %v2299 = vshrl.u32 %v2216, 16
        %v2301 = vrot.slane %v2299, 4
        %v2302 = vor.u32 %v2301, %v2297
        %v2303 = vrot.slane %v2302, 4
        %v2305 = vshll.u32 %v2246, 16
        %v2307 = vrot.slane %v2305, 5
        %v2308 = vsel %vm1649, %v2303, %v2307
        %v2310 = vshrl.u32 %v2217, 16
        %v2312 = vrot.slane %v2310, 4
        %v2313 = vshll.u32 %v2217, 16
        %v2315 = vrot.slane %v2313, 5
        %v2316 = vor.u32 %v2312, %v2315
        %v2317 = vrot.slane %v2316, 4
        %v2319 = vshll.u32 %v2218, 16
        %v2321 = vrot.slane %v2319, 5
        %v2322 = vsel %vm1649, %v2317, %v2321
        %v2323 = vshrl.u32 %v2218, 16
        %v2325 = vrot.slane %v2323, 4
        %v2326 = vor.u32 %v2325, %v2321
        %v2327 = vrot.slane %v2326, 4
        %v2329 = vshll.u32 %v2247, 16
        %v2331 = vrot.slane %v2329, 5
        %v2332 = vsel %vm1649, %v2327, %v2331
        %v2334 = vshrl.u32 %v2219, 16
        %v2336 = vrot.slane %v2334, 4
        %v2337 = vshll.u32 %v2219, 16
        %v2339 = vrot.slane %v2337, 5
        %v2340 = vor.u32 %v2336, %v2339
        %v2341 = vrot.slane %v2340, 4
        %v2343 = vshll.u32 %v2220, 16
        %v2345 = vrot.slane %v2343, 5
        %v2346 = vsel %vm1649, %v2341, %v2345
        %v2347 = vshrl.u32 %v2220, 16
        %v2349 = vrot.slane %v2347, 4
        %v2350 = vor.u32 %v2349, %v2345
        %v2351 = vrot.slane %v2350, 4
        %v2353 = vshll.u32 %v2248, 16
        %v2355 = vrot.slane %v2353, 5
        %v2356 = vsel %vm1649, %v2351, %v2355
        %v2358 = vshrl.u32 %v2221, 16
        %v2360 = vrot.slane %v2358, 4
        %v2361 = vshll.u32 %v2221, 16
        %v2363 = vrot.slane %v2361, 5
        %v2364 = vor.u32 %v2360, %v2363
        %v2365 = vrot.slane %v2364, 4
        %v2367 = vshll.u32 %v2222, 16
        %v2369 = vrot.slane %v2367, 5
        %v2370 = vsel %vm1649, %v2365, %v2369
        %v2371 = vshrl.u32 %v2222, 16
        %v2373 = vrot.slane %v2371, 4
        %v2374 = vor.u32 %v2373, %v2369
        %v2375 = vrot.slane %v2374, 4
        %v2377 = vshll.u32 %v2249, 16
        %v2379 = vrot.slane %v2377, 5
        %v2380 = vsel %vm1649, %v2375, %v2379
        %v2382 = vshrl.u32 %v2223, 16
        %v2384 = vrot.slane %v2382, 4
        %v2385 = vshll.u32 %v2223, 16
        %v2387 = vrot.slane %v2385, 5
        %v2388 = vor.u32 %v2384, %v2387
        %v2389 = vrot.slane %v2388, 4
        %v2391 = vshll.u32 %v2224, 16
        %v2393 = vrot.slane %v2391, 5
        %v2394 = vsel %vm1649, %v2389, %v2393
        %v2395 = vshrl.u32 %v2224, 16
        %v2397 = vrot.slane %v2395, 4
        %v2398 = vor.u32 %v2397, %v2393
        %v2399 = vrot.slane %v2398, 4
        %v2401 = vshll.u32 %v2250, 16
        %v2403 = vrot.slane %v2401, 5
        %v2404 = vsel %vm1649, %v2399, %v2403
        %v2406 = vshrl.u32 %v2225, 16
        %v2408 = vrot.slane %v2406, 4
        %v2409 = vshll.u32 %v2225, 16
        %v2411 = vrot.slane %v2409, 5
        %v2412 = vor.u32 %v2408, %v2411
        %v2413 = vrot.slane %v2412, 4
        %v2415 = vshll.u32 %v2226, 16
        %v2417 = vrot.slane %v2415, 5
        %v2418 = vsel %vm1649, %v2413, %v2417
        %v2419 = vshrl.u32 %v2226, 16
        %v2421 = vrot.slane %v2419, 4
        %v2422 = vor.u32 %v2421, %v2417
        %v2423 = vrot.slane %v2422, 4
        %v2425 = vshll.u32 %v2251, 16
        %v2427 = vrot.slane %v2425, 5
        %v2428 = vsel %vm1649, %v2423, %v2427
        %v2430 = vshrl.u32 %v2227, 16
        %v2432 = vrot.slane %v2430, 4
        %v2433 = vshll.u32 %v2227, 16
        %v2435 = vrot.slane %v2433, 5
        %v2436 = vor.u32 %v2432, %v2435
        %v2437 = vrot.slane %v2436, 4
        %v2439 = vshll.u32 %v2228, 16
        %v2441 = vrot.slane %v2439, 5
        %v2442 = vsel %vm1649, %v2437, %v2441
        %v2443 = vshrl.u32 %v2228, 16
        %v2445 = vrot.slane %v2443, 4
        %v2446 = vor.u32 %v2445, %v2441
        %v2447 = vrot.slane %v2446, 4
        %v2449 = vshll.u32 %v2252, 16
        %v2451 = vrot.slane %v2449, 5
        %v2452 = vsel %vm1649, %v2447, %v2451
        %v2454 = vshrl.u32 %v2229, 16
        %v2456 = vrot.slane %v2454, 4
        %v2457 = vshll.u32 %v2229, 16
        %v2459 = vrot.slane %v2457, 5
        %v2460 = vor.u32 %v2456, %v2459
        %v2461 = vrot.slane %v2460, 4
        %v2463 = vshll.u32 %v2230, 16
        %v2465 = vrot.slane %v2463, 5
        %v2466 = vsel %vm1649, %v2461, %v2465
        %v2467 = vshrl.u32 %v2230, 16
        %v2469 = vrot.slane %v2467, 4
        %v2470 = vor.u32 %v2469, %v2465
        %v2471 = vrot.slane %v2470, 4
        %v2473 = vshll.u32 %v2253, 16
        %v2475 = vrot.slane %v2473, 5
        %v2476 = vsel %vm1649, %v2471, %v2475
        %v2478 = vshrl.u32 %v2231, 16
        %v2480 = vrot.slane %v2478, 4
        %v2481 = vshll.u32 %v2231, 16
        %v2483 = vrot.slane %v2481, 5
        %v2484 = vor.u32 %v2480, %v2483
        %v2485 = vrot.slane %v2484, 4
        %v2487 = vshll.u32 %v2232, 16
        %v2489 = vrot.slane %v2487, 5
        %v2490 = vsel %vm1649, %v2485, %v2489
        %v2491 = vshrl.u32 %v2232, 16
        %v2493 = vrot.slane %v2491, 4
        %v2494 = vor.u32 %v2493, %v2489
        %v2495 = vrot.slane %v2494, 4
        %v2497 = vshll.u32 %v2254, 16
        %v2499 = vrot.slane %v2497, 5
        %v2500 = vsel %vm1649, %v2495, %v2499
        %v2502 = vshrl.u32 %v2233, 16
        %v2504 = vrot.slane %v2502, 4
        %v2505 = vshll.u32 %v2233, 16
        %v2507 = vrot.slane %v2505, 5
        %v2508 = vor.u32 %v2504, %v2507
        %v2509 = vrot.slane %v2508, 4
        %v2511 = vshll.u32 %v2234, 16
        %v2513 = vrot.slane %v2511, 5
        %v2514 = vsel %vm1649, %v2509, %v2513
        %v2515 = vshrl.u32 %v2234, 16
        %v2517 = vrot.slane %v2515, 4
        %v2518 = vor.u32 %v2517, %v2513
        %v2519 = vrot.slane %v2518, 4
        %v2521 = vshll.u32 %v2255, 16
        %v2523 = vrot.slane %v2521, 5
        %v2524 = vsel %vm1649, %v2519, %v2523
        %v2526 = vshrl.u32 %v2235, 16
        %v2528 = vrot.slane %v2526, 4
        %v2529 = vshll.u32 %v2235, 16
        %v2531 = vrot.slane %v2529, 5
        %v2532 = vor.u32 %v2528, %v2531
        %v2533 = vrot.slane %v2532, 4
        %v2535 = vshll.u32 %v2236, 16
        %v2537 = vrot.slane %v2535, 5
        %v2538 = vsel %vm1649, %v2533, %v2537
        %v2539 = vshrl.u32 %v2236, 16
        %v2541 = vrot.slane %v2539, 4
        %v2542 = vor.u32 %v2541, %v2537
        %v2543 = vrot.slane %v2542, 4
        %v2545 = vshll.u32 %v2256, 16
        %v2547 = vrot.slane %v2545, 5
        %v2548 = vsel %vm1649, %v2543, %v2547
        %v2550 = vshrl.u32 %v2237, 16
        %v2552 = vrot.slane %v2550, 4
        %v2553 = vshll.u32 %v2237, 16
        %v2555 = vrot.slane %v2553, 5
        %v2556 = vor.u32 %v2552, %v2555
        %v2557 = vrot.slane %v2556, 4
        %v2559 = vshll.u32 %v2238, 16
        %v2561 = vrot.slane %v2559, 5
        %v2562 = vsel %vm1649, %v2557, %v2561
        %v2563 = vshrl.u32 %v2238, 16
        %v2565 = vrot.slane %v2563, 4
        %v2566 = vor.u32 %v2565, %v2561
        %v2567 = vrot.slane %v2566, 4
        %v2569 = vshll.u32 %v2257, 16
        %v2571 = vrot.slane %v2569, 5
        %v2572 = vsel %vm1649, %v2567, %v2571
        %v2574 = vshrl.u32 %v2239, 16
        %v2576 = vrot.slane %v2574, 4
        %v2577 = vshll.u32 %v2239, 16
        %v2579 = vrot.slane %v2577, 5
        %v2580 = vor.u32 %v2576, %v2579
        %v2581 = vrot.slane %v2580, 4
        %v2583 = vshll.u32 %v2240, 16
        %v2585 = vrot.slane %v2583, 5
        %v2586 = vsel %vm1649, %v2581, %v2585
        %v2587 = vshrl.u32 %v2240, 16
        %v2589 = vrot.slane %v2587, 4
        %v2590 = vor.u32 %v2589, %v2585
        %v2591 = vrot.slane %v2590, 4
        %v2593 = vshll.u32 %v2258, 16
        %v2595 = vrot.slane %v2593, 5
        %v2596 = vsel %vm1649, %v2591, %v2595
        %v2598 = vshrl.u32 %v2241, 16
        %v2600 = vrot.slane %v2598, 4
        %v2601 = vshll.u32 %v2241, 16
        %v2603 = vrot.slane %v2601, 5
        %v2604 = vor.u32 %v2600, %v2603
        %v2605 = vrot.slane %v2604, 4
        %v2607 = vshll.u32 %v2242, 16
        %v2609 = vrot.slane %v2607, 5
        %v2610 = vsel %vm1649, %v2605, %v2609
        %v2611 = vshrl.u32 %v2242, 16
        %v2613 = vrot.slane %v2611, 4
        %v2614 = vor.u32 %v2613, %v2609
        %v2615 = vrot.slane %v2614, 4
        %v2617 = vshll.u32 %v2259, 16
        %v2619 = vrot.slane %v2617, 5
        %v2620 = vsel %vm1649, %v2615, %v2619
        %v2622 = vshrl.u32 %v2243, 16
        %v2624 = vrot.slane %v2622, 4
        %v2625 = vshll.u32 %v2243, 16
        %v2627 = vrot.slane %v2625, 5
        %v2628 = vor.u32 %v2624, %v2627
        %v2629 = vrot.slane %v2628, 4
        %v2631 = vshll.u32 %v2244, 16
        %v2633 = vrot.slane %v2631, 5
        %v2634 = vsel %vm1649, %v2629, %v2633
        %v2635 = vshrl.u32 %v2244, 16
        %v2637 = vrot.slane %v2635, 4
        %v2638 = vor.u32 %v2637, %v2633
        %v2639 = vrot.slane %v2638, 4
        %v2641 = vshll.u32 %v2260, 16
        %v2643 = vrot.slane %v2641, 5
        %v2644 = vsel %vm1649, %v2639, %v2643
        %v2645 = vld [vmem:[%s1484] sm:$0xe]
        %v2646 = vld [vmem:[%s1484 + $0xc] sm:$0xe]
        %v2647 = vld [vmem:[%s1484 + $0x18] sm:$0xe]
        %v2648 = vld [vmem:[%s1484 + $0x24] sm:$0xe]
        %v2649 = vld [vmem:[%s1484 + $0x30] sm:$0xe]
        %v2650 = vld [vmem:[%s1484 + $0x3c] sm:$0xe]
        %v2651 = vld [vmem:[%s1484 + $0x48] sm:$0xe]
        %v2652 = vld [vmem:[%s1484 + $0x54] sm:$0xe]
        %v2653 = vld [vmem:[%s1484 + $0x60] sm:$0xe]
        %v2654 = vld [vmem:[%s1484 + $0x6c] sm:$0xe]
        %v2655 = vld [vmem:[%s1484 + $0x78] sm:$0xe]
        %v2656 = vld [vmem:[%s1484 + $0x84] sm:$0xe]
        %v2657 = vld [vmem:[%s1484 + $0x90] sm:$0xe]
        %v2658 = vld [vmem:[%s1484 + $0x9c] sm:$0xe]
        %v2659 = vld [vmem:[%s1484 + $0xa8] sm:$0xe]
        %v2660 = vld [vmem:[%s1484 + $0xb4] sm:$0xe]
        %v2709 = vrot.slane %v2645, 5
        %v2710 = vrot.slane %v2709, 4
        %v2711 = vrot.slane %v2214, 5
        %v2712 = vsel %vm2100, %v2710, %v2711
        %v2713 = vrot.slane %v2711, 4
        %v2714 = vrot.slane %v2245, 5
        %v2715 = vsel %vm2100, %v2713, %v2714
        %v2716 = vrot.slane %v2646, 5
        %v2717 = vrot.slane %v2716, 4
        %v2718 = vrot.slane %v2216, 5
        %v2719 = vsel %vm2100, %v2717, %v2718
        %v2720 = vrot.slane %v2718, 4
        %v2721 = vrot.slane %v2246, 5
        %v2722 = vsel %vm2100, %v2720, %v2721
        %v2723 = vrot.slane %v2647, 5
        %v2724 = vrot.slane %v2723, 4
        %v2725 = vrot.slane %v2218, 5
        %v2726 = vsel %vm2100, %v2724, %v2725
        %v2727 = vrot.slane %v2725, 4
        %v2728 = vrot.slane %v2247, 5
        %v2729 = vsel %vm2100, %v2727, %v2728
        %v2730 = vrot.slane %v2648, 5
        %v2731 = vrot.slane %v2730, 4
        %v2732 = vrot.slane %v2220, 5
        %v2733 = vsel %vm2100, %v2731, %v2732
        %v2734 = vrot.slane %v2732, 4
        %v2735 = vrot.slane %v2248, 5
        %v2736 = vsel %vm2100, %v2734, %v2735
        %v2737 = vrot.slane %v2649, 5
        %v2738 = vrot.slane %v2737, 4
        %v2739 = vrot.slane %v2222, 5
        %v2740 = vsel %vm2100, %v2738, %v2739
        %v2741 = vrot.slane %v2739, 4
        %v2742 = vrot.slane %v2249, 5
        %v2743 = vsel %vm2100, %v2741, %v2742
        %v2744 = vrot.slane %v2650, 5
        %v2745 = vrot.slane %v2744, 4
        %v2746 = vrot.slane %v2224, 5
        %v2747 = vsel %vm2100, %v2745, %v2746
        %v2748 = vrot.slane %v2746, 4
        %v2749 = vrot.slane %v2250, 5
        %v2750 = vsel %vm2100, %v2748, %v2749
        %v2751 = vrot.slane %v2651, 5
        %v2752 = vrot.slane %v2751, 4
        %v2753 = vrot.slane %v2226, 5
        %v2754 = vsel %vm2100, %v2752, %v2753
        %v2755 = vrot.slane %v2753, 4
        %v2756 = vrot.slane %v2251, 5
        %v2757 = vsel %vm2100, %v2755, %v2756
        %v2758 = vrot.slane %v2652, 5
        %v2759 = vrot.slane %v2758, 4
        %v2760 = vrot.slane %v2228, 5
        %v2761 = vsel %vm2100, %v2759, %v2760
        %v2762 = vrot.slane %v2760, 4
        %v2763 = vrot.slane %v2252, 5
        %v2764 = vsel %vm2100, %v2762, %v2763
        %v2765 = vrot.slane %v2653, 5
        %v2766 = vrot.slane %v2765, 4
        %v2767 = vrot.slane %v2230, 5
        %v2768 = vsel %vm2100, %v2766, %v2767
        %v2769 = vrot.slane %v2767, 4
        %v2770 = vrot.slane %v2253, 5
        %v2771 = vsel %vm2100, %v2769, %v2770
        %v2772 = vrot.slane %v2654, 5
        %v2773 = vrot.slane %v2772, 4
        %v2774 = vrot.slane %v2232, 5
        %v2775 = vsel %vm2100, %v2773, %v2774
        %v2776 = vrot.slane %v2774, 4
        %v2777 = vrot.slane %v2254, 5
        %v2778 = vsel %vm2100, %v2776, %v2777
        %v2779 = vrot.slane %v2655, 5
        %v2780 = vrot.slane %v2779, 4
        %v2781 = vrot.slane %v2234, 5
        %v2782 = vsel %vm2100, %v2780, %v2781
        %v2783 = vrot.slane %v2781, 4
        %v2784 = vrot.slane %v2255, 5
        %v2785 = vsel %vm2100, %v2783, %v2784
        %v2786 = vrot.slane %v2656, 5
        %v2787 = vrot.slane %v2786, 4
        %v2788 = vrot.slane %v2236, 5
        %v2789 = vsel %vm2100, %v2787, %v2788
        %v2790 = vrot.slane %v2788, 4
        %v2791 = vrot.slane %v2256, 5
        %v2792 = vsel %vm2100, %v2790, %v2791
        %v2793 = vrot.slane %v2657, 5
        %v2794 = vrot.slane %v2793, 4
        %v2795 = vrot.slane %v2238, 5
        %v2796 = vsel %vm2100, %v2794, %v2795
        %v2797 = vrot.slane %v2795, 4
        %v2798 = vrot.slane %v2257, 5
        %v2799 = vsel %vm2100, %v2797, %v2798
        %v2800 = vrot.slane %v2658, 5
        %v2801 = vrot.slane %v2800, 4
        %v2802 = vrot.slane %v2240, 5
        %v2803 = vsel %vm2100, %v2801, %v2802
        %v2804 = vrot.slane %v2802, 4
        %v2805 = vrot.slane %v2258, 5
        %v2806 = vsel %vm2100, %v2804, %v2805
        %v2807 = vrot.slane %v2659, 5
        %v2808 = vrot.slane %v2807, 4
        %v2809 = vrot.slane %v2242, 5
        %v2810 = vsel %vm2100, %v2808, %v2809
        %v2811 = vrot.slane %v2809, 4
        %v2812 = vrot.slane %v2259, 5
        %v2813 = vsel %vm2100, %v2811, %v2812
        %v2814 = vrot.slane %v2660, 5
        %v2815 = vrot.slane %v2814, 4
        %v2816 = vrot.slane %v2244, 5
        %v2817 = vsel %vm2100, %v2815, %v2816
        %v2818 = vrot.slane %v2816, 4
        %v2819 = vrot.slane %v2260, 5
        %v2820 = vsel %vm2100, %v2818, %v2819
        %s2821 = scalar_lea.vmem [#allocation2], 24
        %v2822 = vld [vmem:[%s2821] sm:$0xf]
        %v2823 = vld [vmem:[%s2821 + $0x4] sm:$0xf]
        %v2824 = vld [vmem:[%s2821 + $0xc] sm:$0xf]
        %v2825 = vld [vmem:[%s2821 + $0x10] sm:$0xf]
        %v2826 = vld [vmem:[%s2821 + $0x18] sm:$0xf]
        %v2827 = vld [vmem:[%s2821 + $0x1c] sm:$0xf]
        %v2828 = vld [vmem:[%s2821 + $0x24] sm:$0xf]
        %v2829 = vld [vmem:[%s2821 + $0x28] sm:$0xf]
        %v2830 = vld [vmem:[%s2821 + $0x30] sm:$0xf]
        %v2831 = vld [vmem:[%s2821 + $0x34] sm:$0xf]
        %v2832 = vld [vmem:[%s2821 + $0x3c] sm:$0xf]
        %v2833 = vld [vmem:[%s2821 + $0x40] sm:$0xf]
        %v2834 = vld [vmem:[%s2821 + $0x48] sm:$0xf]
        %v2835 = vld [vmem:[%s2821 + $0x4c] sm:$0xf]
        %v2836 = vld [vmem:[%s2821 + $0x54] sm:$0xf]
        %v2837 = vld [vmem:[%s2821 + $0x58] sm:$0xf]
        %v2838 = vld [vmem:[%s2821 + $0x60] sm:$0xf]
        %v2839 = vld [vmem:[%s2821 + $0x64] sm:$0xf]
        %v2840 = vld [vmem:[%s2821 + $0x6c] sm:$0xf]
        %v2841 = vld [vmem:[%s2821 + $0x70] sm:$0xf]
        %v2842 = vld [vmem:[%s2821 + $0x78] sm:$0xf]
        %v2843 = vld [vmem:[%s2821 + $0x7c] sm:$0xf]
        %v2844 = vld [vmem:[%s2821 + $0x84] sm:$0xf]
        %v2845 = vld [vmem:[%s2821 + $0x88] sm:$0xf]
        %v2846 = vld [vmem:[%s2821 + $0x90] sm:$0xf]
        %v2847 = vld [vmem:[%s2821 + $0x94] sm:$0xf]
        %v2848 = vld [vmem:[%s2821 + $0x9c] sm:$0xf]
        %v2849 = vld [vmem:[%s2821 + $0xa0] sm:$0xf]
        %v2850 = vld [vmem:[%s2821 + $0xa8] sm:$0xf]
        %v2851 = vld [vmem:[%s2821 + $0xac] sm:$0xf]
        %v2852 = vld [vmem:[%s2821 + $0xb4] sm:$0xf]
        %v2853 = vld [vmem:[%s2821 + $0xb8] sm:$0xf]
        %v2854 = vld [vmem:[%s2821 + $0x8] sm:$0x1]
        %v2855 = vld [vmem:[%s2821 + $0x14] sm:$0x1]
        %v2856 = vld [vmem:[%s2821 + $0x20] sm:$0x1]
        %v2857 = vld [vmem:[%s2821 + $0x2c] sm:$0x1]
        %v2858 = vld [vmem:[%s2821 + $0x38] sm:$0x1]
        %v2859 = vld [vmem:[%s2821 + $0x44] sm:$0x1]
        %v2860 = vld [vmem:[%s2821 + $0x50] sm:$0x1]
        %v2861 = vld [vmem:[%s2821 + $0x5c] sm:$0x1]
        %v2862 = vld [vmem:[%s2821 + $0x68] sm:$0x1]
        %v2863 = vld [vmem:[%s2821 + $0x74] sm:$0x1]
        %v2864 = vld [vmem:[%s2821 + $0x80] sm:$0x1]
        %v2865 = vld [vmem:[%s2821 + $0x8c] sm:$0x1]
        %v2866 = vld [vmem:[%s2821 + $0x98] sm:$0x1]
        %v2867 = vld [vmem:[%s2821 + $0xa4] sm:$0x1]
        %v2868 = vld [vmem:[%s2821 + $0xb0] sm:$0x1]
        %v2869 = vld [vmem:[%s2821 + $0xbc] sm:$0x1]
        %v2871 = vshrl.u32 %v2822, 16
        %v2873 = vrot.slane %v2871, 4
        %v2874 = vshll.u32 %v2822, 16
        %v2876 = vrot.slane %v2874, 5
        %v2877 = vor.u32 %v2873, %v2876
        %v2878 = vrot.slane %v2877, 4
        %v2880 = vshll.u32 %v2823, 16
        %v2882 = vrot.slane %v2880, 5
        %v2883 = vsel %vm1649, %v2878, %v2882
        %v2884 = vshrl.u32 %v2823, 16
        %v2886 = vrot.slane %v2884, 4
        %v2887 = vor.u32 %v2886, %v2882
        %v2888 = vrot.slane %v2887, 4
        %v2890 = vshll.u32 %v2854, 16
        %v2892 = vrot.slane %v2890, 5
        %v2893 = vsel %vm1649, %v2888, %v2892
        %v2895 = vshrl.u32 %v2824, 16
        %v2897 = vrot.slane %v2895, 4
        %v2898 = vshll.u32 %v2824, 16
        %v2900 = vrot.slane %v2898, 5
        %v2901 = vor.u32 %v2897, %v2900
        %v2902 = vrot.slane %v2901, 4
        %v2904 = vshll.u32 %v2825, 16
        %v2906 = vrot.slane %v2904, 5
        %v2907 = vsel %vm1649, %v2902, %v2906
        %v2908 = vshrl.u32 %v2825, 16
        %v2910 = vrot.slane %v2908, 4
        %v2911 = vor.u32 %v2910, %v2906
        %v2912 = vrot.slane %v2911, 4
        %v2914 = vshll.u32 %v2855, 16
        %v2916 = vrot.slane %v2914, 5
        %v2917 = vsel %vm1649, %v2912, %v2916
        %v2919 = vshrl.u32 %v2826, 16
        %v2921 = vrot.slane %v2919, 4
        %v2922 = vshll.u32 %v2826, 16
        %v2924 = vrot.slane %v2922, 5
        %v2925 = vor.u32 %v2921, %v2924
        %v2926 = vrot.slane %v2925, 4
        %v2928 = vshll.u32 %v2827, 16
        %v2930 = vrot.slane %v2928, 5
        %v2931 = vsel %vm1649, %v2926, %v2930
        %v2932 = vshrl.u32 %v2827, 16
        %v2934 = vrot.slane %v2932, 4
        %v2935 = vor.u32 %v2934, %v2930
        %v2936 = vrot.slane %v2935, 4
        %v2938 = vshll.u32 %v2856, 16
        %v2940 = vrot.slane %v2938, 5
        %v2941 = vsel %vm1649, %v2936, %v2940
        %v2943 = vshrl.u32 %v2828, 16
        %v2945 = vrot.slane %v2943, 4
        %v2946 = vshll.u32 %v2828, 16
        %v2948 = vrot.slane %v2946, 5
        %v2949 = vor.u32 %v2945, %v2948
        %v2950 = vrot.slane %v2949, 4
        %v2952 = vshll.u32 %v2829, 16
        %v2954 = vrot.slane %v2952, 5
        %v2955 = vsel %vm1649, %v2950, %v2954
        %v2956 = vshrl.u32 %v2829, 16
        %v2958 = vrot.slane %v2956, 4
        %v2959 = vor.u32 %v2958, %v2954
        %v2960 = vrot.slane %v2959, 4
        %v2962 = vshll.u32 %v2857, 16
        %v2964 = vrot.slane %v2962, 5
        %v2965 = vsel %vm1649, %v2960, %v2964
        %v2967 = vshrl.u32 %v2830, 16
        %v2969 = vrot.slane %v2967, 4
        %v2970 = vshll.u32 %v2830, 16
        %v2972 = vrot.slane %v2970, 5
        %v2973 = vor.u32 %v2969, %v2972
        %v2974 = vrot.slane %v2973, 4
        %v2976 = vshll.u32 %v2831, 16
        %v2978 = vrot.slane %v2976, 5
        %v2979 = vsel %vm1649, %v2974, %v2978
        %v2980 = vshrl.u32 %v2831, 16
        %v2982 = vrot.slane %v2980, 4
        %v2983 = vor.u32 %v2982, %v2978
        %v2984 = vrot.slane %v2983, 4
        %v2986 = vshll.u32 %v2858, 16
        %v2988 = vrot.slane %v2986, 5
        %v2989 = vsel %vm1649, %v2984, %v2988
        %v2991 = vshrl.u32 %v2832, 16
        %v2993 = vrot.slane %v2991, 4
        %v2994 = vshll.u32 %v2832, 16
        %v2996 = vrot.slane %v2994, 5
        %v2997 = vor.u32 %v2993, %v2996
        %v2998 = vrot.slane %v2997, 4
        %v3000 = vshll.u32 %v2833, 16
        %v3002 = vrot.slane %v3000, 5
        %v3003 = vsel %vm1649, %v2998, %v3002
        %v3004 = vshrl.u32 %v2833, 16
        %v3006 = vrot.slane %v3004, 4
        %v3007 = vor.u32 %v3006, %v3002
        %v3008 = vrot.slane %v3007, 4
        %v3010 = vshll.u32 %v2859, 16
        %v3012 = vrot.slane %v3010, 5
        %v3013 = vsel %vm1649, %v3008, %v3012
        %v3015 = vshrl.u32 %v2834, 16
        %v3017 = vrot.slane %v3015, 4
        %v3018 = vshll.u32 %v2834, 16
        %v3020 = vrot.slane %v3018, 5
        %v3021 = vor.u32 %v3017, %v3020
        %v3022 = vrot.slane %v3021, 4
        %v3024 = vshll.u32 %v2835, 16
        %v3026 = vrot.slane %v3024, 5
        %v3027 = vsel %vm1649, %v3022, %v3026
        %v3028 = vshrl.u32 %v2835, 16
        %v3030 = vrot.slane %v3028, 4
        %v3031 = vor.u32 %v3030, %v3026
        %v3032 = vrot.slane %v3031, 4
        %v3034 = vshll.u32 %v2860, 16
        %v3036 = vrot.slane %v3034, 5
        %v3037 = vsel %vm1649, %v3032, %v3036
        %v3039 = vshrl.u32 %v2836, 16
        %v3041 = vrot.slane %v3039, 4
        %v3042 = vshll.u32 %v2836, 16
        %v3044 = vrot.slane %v3042, 5
        %v3045 = vor.u32 %v3041, %v3044
        %v3046 = vrot.slane %v3045, 4
        %v3048 = vshll.u32 %v2837, 16
        %v3050 = vrot.slane %v3048, 5
        %v3051 = vsel %vm1649, %v3046, %v3050
        %v3052 = vshrl.u32 %v2837, 16
        %v3054 = vrot.slane %v3052, 4
        %v3055 = vor.u32 %v3054, %v3050
        %v3056 = vrot.slane %v3055, 4
        %v3058 = vshll.u32 %v2861, 16
        %v3060 = vrot.slane %v3058, 5
        %v3061 = vsel %vm1649, %v3056, %v3060
        %v3063 = vshrl.u32 %v2838, 16
        %v3065 = vrot.slane %v3063, 4
        %v3066 = vshll.u32 %v2838, 16
        %v3068 = vrot.slane %v3066, 5
        %v3069 = vor.u32 %v3065, %v3068
        %v3070 = vrot.slane %v3069, 4
        %v3072 = vshll.u32 %v2839, 16
        %v3074 = vrot.slane %v3072, 5
        %v3075 = vsel %vm1649, %v3070, %v3074
        %v3076 = vshrl.u32 %v2839, 16
        %v3078 = vrot.slane %v3076, 4
        %v3079 = vor.u32 %v3078, %v3074
        %v3080 = vrot.slane %v3079, 4
        %v3082 = vshll.u32 %v2862, 16
        %v3084 = vrot.slane %v3082, 5
        %v3085 = vsel %vm1649, %v3080, %v3084
        %v3087 = vshrl.u32 %v2840, 16
        %v3089 = vrot.slane %v3087, 4
        %v3090 = vshll.u32 %v2840, 16
        %v3092 = vrot.slane %v3090, 5
        %v3093 = vor.u32 %v3089, %v3092
        %v3094 = vrot.slane %v3093, 4
        %v3096 = vshll.u32 %v2841, 16
        %v3098 = vrot.slane %v3096, 5
        %v3099 = vsel %vm1649, %v3094, %v3098
        %v3100 = vshrl.u32 %v2841, 16
        %v3102 = vrot.slane %v3100, 4
        %v3103 = vor.u32 %v3102, %v3098
        %v3104 = vrot.slane %v3103, 4
        %v3106 = vshll.u32 %v2863, 16
        %v3108 = vrot.slane %v3106, 5
        %v3109 = vsel %vm1649, %v3104, %v3108
        %v3111 = vshrl.u32 %v2842, 16
        %v3113 = vrot.slane %v3111, 4
        %v3114 = vshll.u32 %v2842, 16
        %v3116 = vrot.slane %v3114, 5
        %v3117 = vor.u32 %v3113, %v3116
        %v3118 = vrot.slane %v3117, 4
        %v3120 = vshll.u32 %v2843, 16
        %v3122 = vrot.slane %v3120, 5
        %v3123 = vsel %vm1649, %v3118, %v3122
        %v3124 = vshrl.u32 %v2843, 16
        %v3126 = vrot.slane %v3124, 4
        %v3127 = vor.u32 %v3126, %v3122
        %v3128 = vrot.slane %v3127, 4
        %v3130 = vshll.u32 %v2864, 16
        %v3132 = vrot.slane %v3130, 5
        %v3133 = vsel %vm1649, %v3128, %v3132
        %v3135 = vshrl.u32 %v2844, 16
        %v3137 = vrot.slane %v3135, 4
        %v3138 = vshll.u32 %v2844, 16
        %v3140 = vrot.slane %v3138, 5
        %v3141 = vor.u32 %v3137, %v3140
        %v3142 = vrot.slane %v3141, 4
        %v3144 = vshll.u32 %v2845, 16
        %v3146 = vrot.slane %v3144, 5
        %v3147 = vsel %vm1649, %v3142, %v3146
        %v3148 = vshrl.u32 %v2845, 16
        %v3150 = vrot.slane %v3148, 4
        %v3151 = vor.u32 %v3150, %v3146
        %v3152 = vrot.slane %v3151, 4
        %v3154 = vshll.u32 %v2865, 16
        %v3156 = vrot.slane %v3154, 5
        %v3157 = vsel %vm1649, %v3152, %v3156
        %v3159 = vshrl.u32 %v2846, 16
        %v3161 = vrot.slane %v3159, 4
        %v3162 = vshll.u32 %v2846, 16
        %v3164 = vrot.slane %v3162, 5
        %v3165 = vor.u32 %v3161, %v3164
        %v3166 = vrot.slane %v3165, 4
        %v3168 = vshll.u32 %v2847, 16
        %v3170 = vrot.slane %v3168, 5
        %v3171 = vsel %vm1649, %v3166, %v3170
        %v3172 = vshrl.u32 %v2847, 16
        %v3174 = vrot.slane %v3172, 4
        %v3175 = vor.u32 %v3174, %v3170
        %v3176 = vrot.slane %v3175, 4
        %v3178 = vshll.u32 %v2866, 16
        %v3180 = vrot.slane %v3178, 5
        %v3181 = vsel %vm1649, %v3176, %v3180
        %v3183 = vshrl.u32 %v2848, 16
        %v3185 = vrot.slane %v3183, 4
        %v3186 = vshll.u32 %v2848, 16
        %v3188 = vrot.slane %v3186, 5
        %v3189 = vor.u32 %v3185, %v3188
        %v3190 = vrot.slane %v3189, 4
        %v3192 = vshll.u32 %v2849, 16
        %v3194 = vrot.slane %v3192, 5
        %v3195 = vsel %vm1649, %v3190, %v3194
        %v3196 = vshrl.u32 %v2849, 16
        %v3198 = vrot.slane %v3196, 4
        %v3199 = vor.u32 %v3198, %v3194
        %v3200 = vrot.slane %v3199, 4
        %v3202 = vshll.u32 %v2867, 16
        %v3204 = vrot.slane %v3202, 5
        %v3205 = vsel %vm1649, %v3200, %v3204
        %v3207 = vshrl.u32 %v2850, 16
        %v3209 = vrot.slane %v3207, 4
        %v3210 = vshll.u32 %v2850, 16
        %v3212 = vrot.slane %v3210, 5
        %v3213 = vor.u32 %v3209, %v3212
        %v3214 = vrot.slane %v3213, 4
        %v3216 = vshll.u32 %v2851, 16
        %v3218 = vrot.slane %v3216, 5
        %v3219 = vsel %vm1649, %v3214, %v3218
        %v3220 = vshrl.u32 %v2851, 16
        %v3222 = vrot.slane %v3220, 4
        %v3223 = vor.u32 %v3222, %v3218
        %v3224 = vrot.slane %v3223, 4
        %v3226 = vshll.u32 %v2868, 16
        %v3228 = vrot.slane %v3226, 5
        %v3229 = vsel %vm1649, %v3224, %v3228
        %v3231 = vshrl.u32 %v2852, 16
        %v3233 = vrot.slane %v3231, 4
        %v3234 = vshll.u32 %v2852, 16
        %v3236 = vrot.slane %v3234, 5
        %v3237 = vor.u32 %v3233, %v3236
        %v3238 = vrot.slane %v3237, 4
        %v3240 = vshll.u32 %v2853, 16
        %v3242 = vrot.slane %v3240, 5
        %v3243 = vsel %vm1649, %v3238, %v3242
        %v3244 = vshrl.u32 %v2853, 16
        %v3246 = vrot.slane %v3244, 4
        %v3247 = vor.u32 %v3246, %v3242
        %v3248 = vrot.slane %v3247, 4
        %v3250 = vshll.u32 %v2869, 16
        %v3252 = vrot.slane %v3250, 5
        %v3253 = vsel %vm1649, %v3248, %v3252
        %v3254 = vld [vmem:[%s2821] sm:$0xe]
        %v3255 = vld [vmem:[%s2821 + $0xc] sm:$0xe]
        %v3256 = vld [vmem:[%s2821 + $0x18] sm:$0xe]
        %v3257 = vld [vmem:[%s2821 + $0x24] sm:$0xe]
        %v3258 = vld [vmem:[%s2821 + $0x30] sm:$0xe]
        %v3259 = vld [vmem:[%s2821 + $0x3c] sm:$0xe]
        %v3260 = vld [vmem:[%s2821 + $0x48] sm:$0xe]
        %v3261 = vld [vmem:[%s2821 + $0x54] sm:$0xe]
        %v3262 = vld [vmem:[%s2821 + $0x60] sm:$0xe]
        %v3263 = vld [vmem:[%s2821 + $0x6c] sm:$0xe]
        %v3264 = vld [vmem:[%s2821 + $0x78] sm:$0xe]
        %v3265 = vld [vmem:[%s2821 + $0x84] sm:$0xe]
        %v3266 = vld [vmem:[%s2821 + $0x90] sm:$0xe]
        %v3267 = vld [vmem:[%s2821 + $0x9c] sm:$0xe]
        %v3268 = vld [vmem:[%s2821 + $0xa8] sm:$0xe]
        %v3269 = vld [vmem:[%s2821 + $0xb4] sm:$0xe]
        %v3318 = vrot.slane %v3254, 5
        %v3319 = vrot.slane %v3318, 4
        %v3320 = vrot.slane %v2823, 5
        %v3321 = vsel %vm2100, %v3319, %v3320
        %v3322 = vrot.slane %v3320, 4
        %v3323 = vrot.slane %v2854, 5
        %v3324 = vsel %vm2100, %v3322, %v3323
        %v3325 = vrot.slane %v3255, 5
        %v3326 = vrot.slane %v3325, 4
        %v3327 = vrot.slane %v2825, 5
        %v3328 = vsel %vm2100, %v3326, %v3327
        %v3329 = vrot.slane %v3327, 4
        %v3330 = vrot.slane %v2855, 5
        %v3331 = vsel %vm2100, %v3329, %v3330
        %v3332 = vrot.slane %v3256, 5
        %v3333 = vrot.slane %v3332, 4
        %v3334 = vrot.slane %v2827, 5
        %v3335 = vsel %vm2100, %v3333, %v3334
        %v3336 = vrot.slane %v3334, 4
        %v3337 = vrot.slane %v2856, 5
        %v3338 = vsel %vm2100, %v3336, %v3337
        %v3339 = vrot.slane %v3257, 5
        %v3340 = vrot.slane %v3339, 4
        %v3341 = vrot.slane %v2829, 5
        %v3342 = vsel %vm2100, %v3340, %v3341
        %v3343 = vrot.slane %v3341, 4
        %v3344 = vrot.slane %v2857, 5
        %v3345 = vsel %vm2100, %v3343, %v3344
        %v3346 = vrot.slane %v3258, 5
        %v3347 = vrot.slane %v3346, 4
        %v3348 = vrot.slane %v2831, 5
        %v3349 = vsel %vm2100, %v3347, %v3348
        %v3350 = vrot.slane %v3348, 4
        %v3351 = vrot.slane %v2858, 5
        %v3352 = vsel %vm2100, %v3350, %v3351
        %v3353 = vrot.slane %v3259, 5
        %v3354 = vrot.slane %v3353, 4
        %v3355 = vrot.slane %v2833, 5
        %v3356 = vsel %vm2100, %v3354, %v3355
        %v3357 = vrot.slane %v3355, 4
        %v3358 = vrot.slane %v2859, 5
        %v3359 = vsel %vm2100, %v3357, %v3358
        %v3360 = vrot.slane %v3260, 5
        %v3361 = vrot.slane %v3360, 4
        %v3362 = vrot.slane %v2835, 5
        %v3363 = vsel %vm2100, %v3361, %v3362
        %v3364 = vrot.slane %v3362, 4
        %v3365 = vrot.slane %v2860, 5
        %v3366 = vsel %vm2100, %v3364, %v3365
        %v3367 = vrot.slane %v3261, 5
        %v3368 = vrot.slane %v3367, 4
        %v3369 = vrot.slane %v2837, 5
        %v3370 = vsel %vm2100, %v3368, %v3369
        %v3371 = vrot.slane %v3369, 4
        %v3372 = vrot.slane %v2861, 5
        %v3373 = vsel %vm2100, %v3371, %v3372
        %v3374 = vrot.slane %v3262, 5
        %v3375 = vrot.slane %v3374, 4
        %v3376 = vrot.slane %v2839, 5
        %v3377 = vsel %vm2100, %v3375, %v3376
        %v3378 = vrot.slane %v3376, 4
        %v3379 = vrot.slane %v2862, 5
        %v3380 = vsel %vm2100, %v3378, %v3379
        %v3381 = vrot.slane %v3263, 5
        %v3382 = vrot.slane %v3381, 4
        %v3383 = vrot.slane %v2841, 5
        %v3384 = vsel %vm2100, %v3382, %v3383
        %v3385 = vrot.slane %v3383, 4
        %v3386 = vrot.slane %v2863, 5
        %v3387 = vsel %vm2100, %v3385, %v3386
        %v3388 = vrot.slane %v3264, 5
        %v3389 = vrot.slane %v3388, 4
        %v3390 = vrot.slane %v2843, 5
        %v3391 = vsel %vm2100, %v3389, %v3390
        %v3392 = vrot.slane %v3390, 4
        %v3393 = vrot.slane %v2864, 5
        %v3394 = vsel %vm2100, %v3392, %v3393
        %v3395 = vrot.slane %v3265, 5
        %v3396 = vrot.slane %v3395, 4
        %v3397 = vrot.slane %v2845, 5
        %v3398 = vsel %vm2100, %v3396, %v3397
        %v3399 = vrot.slane %v3397, 4
        %v3400 = vrot.slane %v2865, 5
        %v3401 = vsel %vm2100, %v3399, %v3400
        %v3402 = vrot.slane %v3266, 5
        %v3403 = vrot.slane %v3402, 4
        %v3404 = vrot.slane %v2847, 5
        %v3405 = vsel %vm2100, %v3403, %v3404
        %v3406 = vrot.slane %v3404, 4
        %v3407 = vrot.slane %v2866, 5
        %v3408 = vsel %vm2100, %v3406, %v3407
        %v3409 = vrot.slane %v3267, 5
        %v3410 = vrot.slane %v3409, 4
        %v3411 = vrot.slane %v2849, 5
        %v3412 = vsel %vm2100, %v3410, %v3411
        %v3413 = vrot.slane %v3411, 4
        %v3414 = vrot.slane %v2867, 5
        %v3415 = vsel %vm2100, %v3413, %v3414
        %v3416 = vrot.slane %v3268, 5
        %v3417 = vrot.slane %v3416, 4
        %v3418 = vrot.slane %v2851, 5
        %v3419 = vsel %vm2100, %v3417, %v3418
        %v3420 = vrot.slane %v3418, 4
        %v3421 = vrot.slane %v2868, 5
        %v3422 = vsel %vm2100, %v3420, %v3421
        %v3423 = vrot.slane %v3269, 5
        %v3424 = vrot.slane %v3423, 4
        %v3425 = vrot.slane %v2853, 5
        %v3426 = vsel %vm2100, %v3424, %v3425
        %v3427 = vrot.slane %v3425, 4
        %v3428 = vrot.slane %v2869, 5
        %v3429 = vsel %vm2100, %v3427, %v3428
        %v3446 = vunpack.c.l.b16 %v1599
        %v3447 = vunpack.c.l.b16 %v1600
        %v3448 = vunpack.c.l.b16 %v1601
        %v3449 = vunpack.c.l.b16 %v1602
        %v3450 = vunpack.c.l.b16 %v1603
        %v3451 = vunpack.c.l.b16 %v1604
        %v3452 = vunpack.c.l.b16 %v1605
        %v3453 = vunpack.c.l.b16 %v1606
        %v3454 = vunpack.c.l.b16 %v1607
        %v3455 = vunpack.c.l.b16 %v1608
        %v3456 = vunpack.c.l.b16 %v1609
        %v3457 = vunpack.c.l.b16 %v1610
        %v3458 = vunpack.c.l.b16 %v1611
        %v3459 = vunpack.c.l.b16 %v1612
        %v3460 = vunpack.c.l.b16 %v1613
        %v3461 = vunpack.c.l.b16 %v1614
        %v3462 = vunpack.c.l.b16 %v1615
        %v3463 = vunpack.c.l.b16 %v1616
        %v3464 = vunpack.c.l.b16 %v1617
        %v3465 = vunpack.c.l.b16 %v1618
        %v3466 = vunpack.c.l.b16 %v1619
        %v3467 = vunpack.c.l.b16 %v1620
        %v3468 = vunpack.c.l.b16 %v1621
        %v3469 = vunpack.c.l.b16 %v1622
        %v3470 = vunpack.c.l.b16 %v1623
        %v3471 = vunpack.c.l.b16 %v1624
        %v3472 = vunpack.c.l.b16 %v1625
        %v3473 = vunpack.c.l.b16 %v1626
        %v3474 = vunpack.c.l.b16 %v1627
        %v3475 = vunpack.c.l.b16 %v1628
        %v3476 = vunpack.c.l.b16 %v1629
        %v3477 = vunpack.c.l.b16 %v1630
        %v3478 = vpack.c.b16 %v3447, %v3446
        %v3479 = vpack.c.b16 %v3449, %v3448
        %v3480 = vpack.c.b16 %v3451, %v3450
        %v3481 = vpack.c.b16 %v3453, %v3452
        %v3482 = vpack.c.b16 %v3455, %v3454
        %v3483 = vpack.c.b16 %v3457, %v3456
        %v3484 = vpack.c.b16 %v3459, %v3458
        %v3485 = vpack.c.b16 %v3461, %v3460
        %v3486 = vpack.c.b16 %v3463, %v3462
        %v3487 = vpack.c.b16 %v3465, %v3464
        %v3488 = vpack.c.b16 %v3467, %v3466
        %v3489 = vpack.c.b16 %v3469, %v3468
        %v3490 = vpack.c.b16 %v3471, %v3470
        %v3491 = vpack.c.b16 %v3473, %v3472
        %v3492 = vpack.c.b16 %v3475, %v3474
        %v3493 = vpack.c.b16 %v3477, %v3476
        %v3494 = vunpack.c.l.b16 %v1663
        %v3495 = vunpack.c.l.b16 %v1673
        %v3496 = vunpack.c.l.b16 %v1687
        %v3497 = vunpack.c.l.b16 %v1697
        %v3498 = vunpack.c.l.b16 %v1711
        %v3499 = vunpack.c.l.b16 %v1721
        %v3500 = vunpack.c.l.b16 %v1735
        %v3501 = vunpack.c.l.b16 %v1745
        %v3502 = vunpack.c.l.b16 %v1759
        %v3503 = vunpack.c.l.b16 %v1769
        %v3504 = vunpack.c.l.b16 %v1783
        %v3505 = vunpack.c.l.b16 %v1793
        %v3506 = vunpack.c.l.b16 %v1807
        %v3507 = vunpack.c.l.b16 %v1817
        %v3508 = vunpack.c.l.b16 %v1831
        %v3509 = vunpack.c.l.b16 %v1841
        %v3510 = vunpack.c.l.b16 %v1855
        %v3511 = vunpack.c.l.b16 %v1865
        %v3512 = vunpack.c.l.b16 %v1879
        %v3513 = vunpack.c.l.b16 %v1889
        %v3514 = vunpack.c.l.b16 %v1903
        %v3515 = vunpack.c.l.b16 %v1913
        %v3516 = vunpack.c.l.b16 %v1927
        %v3517 = vunpack.c.l.b16 %v1937
        %v3518 = vunpack.c.l.b16 %v1951
        %v3519 = vunpack.c.l.b16 %v1961
        %v3520 = vunpack.c.l.b16 %v1975
        %v3521 = vunpack.c.l.b16 %v1985
        %v3522 = vunpack.c.l.b16 %v1999
        %v3523 = vunpack.c.l.b16 %v2009
        %v3524 = vunpack.c.l.b16 %v2023
        %v3525 = vunpack.c.l.b16 %v2033
        %v3526 = vpack.c.b16 %v3495, %v3494
        %v3527 = vpack.c.b16 %v3497, %v3496
        %v3528 = vpack.c.b16 %v3499, %v3498
        %v3529 = vpack.c.b16 %v3501, %v3500
        %v3530 = vpack.c.b16 %v3503, %v3502
        %v3531 = vpack.c.b16 %v3505, %v3504
        %v3532 = vpack.c.b16 %v3507, %v3506
        %v3533 = vpack.c.b16 %v3509, %v3508
        %v3534 = vpack.c.b16 %v3511, %v3510
        %v3535 = vpack.c.b16 %v3513, %v3512
        %v3536 = vpack.c.b16 %v3515, %v3514
        %v3537 = vpack.c.b16 %v3517, %v3516
        %v3538 = vpack.c.b16 %v3519, %v3518
        %v3539 = vpack.c.b16 %v3521, %v3520
        %v3540 = vpack.c.b16 %v3523, %v3522
        %v3541 = vpack.c.b16 %v3525, %v3524
        %3542 = vrot.lane.b32.xlu0 %v3526, 8
        %v3543 = vpop.permute.xlu0 %3542
        %3544 = vrot.lane.b32.xlu0 %v3527, 8
        %v3545 = vpop.permute.xlu0 %3544
        %3546 = vrot.lane.b32.xlu0 %v3528, 8
        %v3547 = vpop.permute.xlu0 %3546
        %3548 = vrot.lane.b32.xlu0 %v3529, 8
        %v3549 = vpop.permute.xlu0 %3548
        %3550 = vrot.lane.b32.xlu0 %v3530, 8
        %v3551 = vpop.permute.xlu0 %3550
        %3552 = vrot.lane.b32.xlu0 %v3531, 8
        %v3553 = vpop.permute.xlu0 %3552
        %3554 = vrot.lane.b32.xlu0 %v3532, 8
        %v3555 = vpop.permute.xlu0 %3554
        %3556 = vrot.lane.b32.xlu0 %v3533, 8
        %v3557 = vpop.permute.xlu0 %3556
        %3558 = vrot.lane.b32.xlu0 %v3534, 8
        %v3559 = vpop.permute.xlu0 %3558
        %3560 = vrot.lane.b32.xlu0 %v3535, 8
        %v3561 = vpop.permute.xlu0 %3560
        %3562 = vrot.lane.b32.xlu0 %v3536, 8
        %v3563 = vpop.permute.xlu0 %3562
        %3564 = vrot.lane.b32.xlu0 %v3537, 8
        %v3565 = vpop.permute.xlu0 %3564
        %3566 = vrot.lane.b32.xlu0 %v3538, 8
        %v3567 = vpop.permute.xlu0 %3566
        %3568 = vrot.lane.b32.xlu0 %v3539, 8
        %v3569 = vpop.permute.xlu0 %3568
        %3570 = vrot.lane.b32.xlu0 %v3540, 8
        %v3571 = vpop.permute.xlu0 %3570
        %3572 = vrot.lane.b32.xlu0 %v3541, 8
        %v3573 = vpop.permute.xlu0 %3572
        %v3574 = vunpack.c.l.b16 %v2104
        %v3575 = vunpack.c.l.b16 %v2107
        %v3576 = vunpack.c.l.b16 %v2111
        %v3577 = vunpack.c.l.b16 %v2114
        %v3578 = vunpack.c.l.b16 %v2118
        %v3579 = vunpack.c.l.b16 %v2121
        %v3580 = vunpack.c.l.b16 %v2125
        %v3581 = vunpack.c.l.b16 %v2128
        %v3582 = vunpack.c.l.b16 %v2132
        %v3583 = vunpack.c.l.b16 %v2135
        %v3584 = vunpack.c.l.b16 %v2139
        %v3585 = vunpack.c.l.b16 %v2142
        %v3586 = vunpack.c.l.b16 %v2146
        %v3587 = vunpack.c.l.b16 %v2149
        %v3588 = vunpack.c.l.b16 %v2153
        %v3589 = vunpack.c.l.b16 %v2156
        %v3590 = vunpack.c.l.b16 %v2160
        %v3591 = vunpack.c.l.b16 %v2163
        %v3592 = vunpack.c.l.b16 %v2167
        %v3593 = vunpack.c.l.b16 %v2170
        %v3594 = vunpack.c.l.b16 %v2174
        %v3595 = vunpack.c.l.b16 %v2177
        %v3596 = vunpack.c.l.b16 %v2181
        %v3597 = vunpack.c.l.b16 %v2184
        %v3598 = vunpack.c.l.b16 %v2188
        %v3599 = vunpack.c.l.b16 %v2191
        %v3600 = vunpack.c.l.b16 %v2195
        %v3601 = vunpack.c.l.b16 %v2198
        %v3602 = vunpack.c.l.b16 %v2202
        %v3603 = vunpack.c.l.b16 %v2205
        %v3604 = vunpack.c.l.b16 %v2209
        %v3605 = vunpack.c.l.b16 %v2212
        %v3606 = vpack.c.b16 %v3575, %v3574
        %v3607 = vpack.c.b16 %v3577, %v3576
        %v3608 = vpack.c.b16 %v3579, %v3578
        %v3609 = vpack.c.b16 %v3581, %v3580
        %v3610 = vpack.c.b16 %v3583, %v3582
        %v3611 = vpack.c.b16 %v3585, %v3584
        %v3612 = vpack.c.b16 %v3587, %v3586
        %v3613 = vpack.c.b16 %v3589, %v3588
        %v3614 = vpack.c.b16 %v3591, %v3590
        %v3615 = vpack.c.b16 %v3593, %v3592
        %v3616 = vpack.c.b16 %v3595, %v3594
        %v3617 = vpack.c.b16 %v3597, %v3596
        %v3618 = vpack.c.b16 %v3599, %v3598
        %v3619 = vpack.c.b16 %v3601, %v3600
        %v3620 = vpack.c.b16 %v3603, %v3602
        %v3621 = vpack.c.b16 %v3605, %v3604
        %3622 = vrot.lane.b32.xlu0 %v3606, 16
        %v3623 = vpop.permute.xlu0 %3622
        %3624 = vrot.lane.b32.xlu0 %v3607, 16
        %v3625 = vpop.permute.xlu0 %3624
        %3626 = vrot.lane.b32.xlu0 %v3608, 16
        %v3627 = vpop.permute.xlu0 %3626
        %3628 = vrot.lane.b32.xlu0 %v3609, 16
        %v3629 = vpop.permute.xlu0 %3628
        %3630 = vrot.lane.b32.xlu0 %v3610, 16
        %v3631 = vpop.permute.xlu0 %3630
        %3632 = vrot.lane.b32.xlu0 %v3611, 16
        %v3633 = vpop.permute.xlu0 %3632
        %3634 = vrot.lane.b32.xlu0 %v3612, 16
        %v3635 = vpop.permute.xlu0 %3634
        %3636 = vrot.lane.b32.xlu0 %v3613, 16
        %v3637 = vpop.permute.xlu0 %3636
        %3638 = vrot.lane.b32.xlu0 %v3614, 16
        %v3639 = vpop.permute.xlu0 %3638
        %3640 = vrot.lane.b32.xlu0 %v3615, 16
        %v3641 = vpop.permute.xlu0 %3640
        %3642 = vrot.lane.b32.xlu0 %v3616, 16
        %v3643 = vpop.permute.xlu0 %3642
        %3644 = vrot.lane.b32.xlu0 %v3617, 16
        %v3645 = vpop.permute.xlu0 %3644
        %3646 = vrot.lane.b32.xlu0 %v3618, 16
        %v3647 = vpop.permute.xlu0 %3646
        %3648 = vrot.lane.b32.xlu0 %v3619, 16
        %v3649 = vpop.permute.xlu0 %3648
        %3650 = vrot.lane.b32.xlu0 %v3620, 16
        %v3651 = vpop.permute.xlu0 %3650
        %3652 = vrot.lane.b32.xlu0 %v3621, 16
        %v3653 = vpop.permute.xlu0 %3652
        %v3670 = vunpack.c.l.b16 %v2213
        %v3671 = vunpack.c.l.b16 %v2214
        %v3672 = vunpack.c.l.b16 %v2215
        %v3673 = vunpack.c.l.b16 %v2216
        %v3674 = vunpack.c.l.b16 %v2217
        %v3675 = vunpack.c.l.b16 %v2218
        %v3676 = vunpack.c.l.b16 %v2219
        %v3677 = vunpack.c.l.b16 %v2220
        %v3678 = vunpack.c.l.b16 %v2221
        %v3679 = vunpack.c.l.b16 %v2222
        %v3680 = vunpack.c.l.b16 %v2223
        %v3681 = vunpack.c.l.b16 %v2224
        %v3682 = vunpack.c.l.b16 %v2225
        %v3683 = vunpack.c.l.b16 %v2226
        %v3684 = vunpack.c.l.b16 %v2227
        %v3685 = vunpack.c.l.b16 %v2228
        %v3686 = vunpack.c.l.b16 %v2229
        %v3687 = vunpack.c.l.b16 %v2230
        %v3688 = vunpack.c.l.b16 %v2231
        %v3689 = vunpack.c.l.b16 %v2232
        %v3690 = vunpack.c.l.b16 %v2233
        %v3691 = vunpack.c.l.b16 %v2234
        %v3692 = vunpack.c.l.b16 %v2235
        %v3693 = vunpack.c.l.b16 %v2236
        %v3694 = vunpack.c.l.b16 %v2237
        %v3695 = vunpack.c.l.b16 %v2238
        %v3696 = vunpack.c.l.b16 %v2239
        %v3697 = vunpack.c.l.b16 %v2240
        %v3698 = vunpack.c.l.b16 %v2241
        %v3699 = vunpack.c.l.b16 %v2242
        %v3700 = vunpack.c.l.b16 %v2243
        %v3701 = vunpack.c.l.b16 %v2244
        %v3702 = vpack.c.b16 %v3671, %v3670
        %v3703 = vpack.c.b16 %v3673, %v3672
        %v3704 = vpack.c.b16 %v3675, %v3674
        %v3705 = vpack.c.b16 %v3677, %v3676
        %v3706 = vpack.c.b16 %v3679, %v3678
        %v3707 = vpack.c.b16 %v3681, %v3680
        %v3708 = vpack.c.b16 %v3683, %v3682
        %v3709 = vpack.c.b16 %v3685, %v3684
        %v3710 = vpack.c.b16 %v3687, %v3686
        %v3711 = vpack.c.b16 %v3689, %v3688
        %v3712 = vpack.c.b16 %v3691, %v3690
        %v3713 = vpack.c.b16 %v3693, %v3692
        %v3714 = vpack.c.b16 %v3695, %v3694
        %v3715 = vpack.c.b16 %v3697, %v3696
        %v3716 = vpack.c.b16 %v3699, %v3698
        %v3717 = vpack.c.b16 %v3701, %v3700
        %3718 = vrot.lane.b32.xlu0 %v3702, 24
        %v3719 = vpop.permute.xlu0 %3718
        %3720 = vrot.lane.b32.xlu0 %v3703, 24
        %v3721 = vpop.permute.xlu0 %3720
        %3722 = vrot.lane.b32.xlu0 %v3704, 24
        %v3723 = vpop.permute.xlu0 %3722
        %3724 = vrot.lane.b32.xlu0 %v3705, 24
        %v3725 = vpop.permute.xlu0 %3724
        %3726 = vrot.lane.b32.xlu0 %v3706, 24
        %v3727 = vpop.permute.xlu0 %3726
        %3728 = vrot.lane.b32.xlu0 %v3707, 24
        %v3729 = vpop.permute.xlu0 %3728
        %3730 = vrot.lane.b32.xlu0 %v3708, 24
        %v3731 = vpop.permute.xlu0 %3730
        %3732 = vrot.lane.b32.xlu0 %v3709, 24
        %v3733 = vpop.permute.xlu0 %3732
        %3734 = vrot.lane.b32.xlu0 %v3710, 24
        %v3735 = vpop.permute.xlu0 %3734
        %3736 = vrot.lane.b32.xlu0 %v3711, 24
        %v3737 = vpop.permute.xlu0 %3736
        %3738 = vrot.lane.b32.xlu0 %v3712, 24
        %v3739 = vpop.permute.xlu0 %3738
        %3740 = vrot.lane.b32.xlu0 %v3713, 24
        %v3741 = vpop.permute.xlu0 %3740
        %3742 = vrot.lane.b32.xlu0 %v3714, 24
        %v3743 = vpop.permute.xlu0 %3742
        %3744 = vrot.lane.b32.xlu0 %v3715, 24
        %v3745 = vpop.permute.xlu0 %3744
        %3746 = vrot.lane.b32.xlu0 %v3716, 24
        %v3747 = vpop.permute.xlu0 %3746
        %3748 = vrot.lane.b32.xlu0 %v3717, 24
        %v3749 = vpop.permute.xlu0 %3748
        %v3750 = vunpack.c.l.b16 %v2274
        %v3751 = vunpack.c.l.b16 %v2284
        %v3752 = vunpack.c.l.b16 %v2298
        %v3753 = vunpack.c.l.b16 %v2308
        %v3754 = vunpack.c.l.b16 %v2322
        %v3755 = vunpack.c.l.b16 %v2332
        %v3756 = vunpack.c.l.b16 %v2346
        %v3757 = vunpack.c.l.b16 %v2356
        %v3758 = vunpack.c.l.b16 %v2370
        %v3759 = vunpack.c.l.b16 %v2380
        %v3760 = vunpack.c.l.b16 %v2394
        %v3761 = vunpack.c.l.b16 %v2404
        %v3762 = vunpack.c.l.b16 %v2418
        %v3763 = vunpack.c.l.b16 %v2428
        %v3764 = vunpack.c.l.b16 %v2442
        %v3765 = vunpack.c.l.b16 %v2452
        %v3766 = vunpack.c.l.b16 %v2466
        %v3767 = vunpack.c.l.b16 %v2476
        %v3768 = vunpack.c.l.b16 %v2490
        %v3769 = vunpack.c.l.b16 %v2500
        %v3770 = vunpack.c.l.b16 %v2514
        %v3771 = vunpack.c.l.b16 %v2524
        %v3772 = vunpack.c.l.b16 %v2538
        %v3773 = vunpack.c.l.b16 %v2548
        %v3774 = vunpack.c.l.b16 %v2562
        %v3775 = vunpack.c.l.b16 %v2572
        %v3776 = vunpack.c.l.b16 %v2586
        %v3777 = vunpack.c.l.b16 %v2596
        %v3778 = vunpack.c.l.b16 %v2610
        %v3779 = vunpack.c.l.b16 %v2620
        %v3780 = vunpack.c.l.b16 %v2634
        %v3781 = vunpack.c.l.b16 %v2644
        %v3782 = vpack.c.b16 %v3751, %v3750
        %v3783 = vpack.c.b16 %v3753, %v3752
        %v3784 = vpack.c.b16 %v3755, %v3754
        %v3785 = vpack.c.b16 %v3757, %v3756
        %v3786 = vpack.c.b16 %v3759, %v3758
        %v3787 = vpack.c.b16 %v3761, %v3760
        %v3788 = vpack.c.b16 %v3763, %v3762
        %v3789 = vpack.c.b16 %v3765, %v3764
        %v3790 = vpack.c.b16 %v3767, %v3766
        %v3791 = vpack.c.b16 %v3769, %v3768
        %v3792 = vpack.c.b16 %v3771, %v3770
        %v3793 = vpack.c.b16 %v3773, %v3772
        %v3794 = vpack.c.b16 %v3775, %v3774
        %v3795 = vpack.c.b16 %v3777, %v3776
        %v3796 = vpack.c.b16 %v3779, %v3778
        %v3797 = vpack.c.b16 %v3781, %v3780
        %3798 = vrot.lane.b32.xlu0 %v3782, 32
        %v3799 = vpop.permute.xlu0 %3798
        %3800 = vrot.lane.b32.xlu0 %v3783, 32
        %v3801 = vpop.permute.xlu0 %3800
        %3802 = vrot.lane.b32.xlu0 %v3784, 32
        %v3803 = vpop.permute.xlu0 %3802
        %3804 = vrot.lane.b32.xlu0 %v3785, 32
        %v3805 = vpop.permute.xlu0 %3804
        %3806 = vrot.lane.b32.xlu0 %v3786, 32
        %v3807 = vpop.permute.xlu0 %3806
        %3808 = vrot.lane.b32.xlu0 %v3787, 32
        %v3809 = vpop.permute.xlu0 %3808
        %3810 = vrot.lane.b32.xlu0 %v3788, 32
        %v3811 = vpop.permute.xlu0 %3810
        %3812 = vrot.lane.b32.xlu0 %v3789, 32
        %v3813 = vpop.permute.xlu0 %3812
        %3814 = vrot.lane.b32.xlu0 %v3790, 32
        %v3815 = vpop.permute.xlu0 %3814
        %3816 = vrot.lane.b32.xlu0 %v3791, 32
        %v3817 = vpop.permute.xlu0 %3816
        %3818 = vrot.lane.b32.xlu0 %v3792, 32
        %v3819 = vpop.permute.xlu0 %3818
        %3820 = vrot.lane.b32.xlu0 %v3793, 32
        %v3821 = vpop.permute.xlu0 %3820
        %3822 = vrot.lane.b32.xlu0 %v3794, 32
        %v3823 = vpop.permute.xlu0 %3822
        %3824 = vrot.lane.b32.xlu0 %v3795, 32
        %v3825 = vpop.permute.xlu0 %3824
        %3826 = vrot.lane.b32.xlu0 %v3796, 32
        %v3827 = vpop.permute.xlu0 %3826
        %3828 = vrot.lane.b32.xlu0 %v3797, 32
        %v3829 = vpop.permute.xlu0 %3828
        %v3830 = vunpack.c.l.b16 %v2712
        %v3831 = vunpack.c.l.b16 %v2715
        %v3832 = vunpack.c.l.b16 %v2719
        %v3833 = vunpack.c.l.b16 %v2722
        %v3834 = vunpack.c.l.b16 %v2726
        %v3835 = vunpack.c.l.b16 %v2729
        %v3836 = vunpack.c.l.b16 %v2733
        %v3837 = vunpack.c.l.b16 %v2736
        %v3838 = vunpack.c.l.b16 %v2740
        %v3839 = vunpack.c.l.b16 %v2743
        %v3840 = vunpack.c.l.b16 %v2747
        %v3841 = vunpack.c.l.b16 %v2750
        %v3842 = vunpack.c.l.b16 %v2754
        %v3843 = vunpack.c.l.b16 %v2757
        %v3844 = vunpack.c.l.b16 %v2761
        %v3845 = vunpack.c.l.b16 %v2764
        %v3846 = vunpack.c.l.b16 %v2768
        %v3847 = vunpack.c.l.b16 %v2771
        %v3848 = vunpack.c.l.b16 %v2775
        %v3849 = vunpack.c.l.b16 %v2778
        %v3850 = vunpack.c.l.b16 %v2782
        %v3851 = vunpack.c.l.b16 %v2785
        %v3852 = vunpack.c.l.b16 %v2789
        %v3853 = vunpack.c.l.b16 %v2792
        %v3854 = vunpack.c.l.b16 %v2796
        %v3855 = vunpack.c.l.b16 %v2799
        %v3856 = vunpack.c.l.b16 %v2803
        %v3857 = vunpack.c.l.b16 %v2806
        %v3858 = vunpack.c.l.b16 %v2810
        %v3859 = vunpack.c.l.b16 %v2813
        %v3860 = vunpack.c.l.b16 %v2817
        %v3861 = vunpack.c.l.b16 %v2820
        %v3862 = vpack.c.b16 %v3831, %v3830
        %v3863 = vpack.c.b16 %v3833, %v3832
        %v3864 = vpack.c.b16 %v3835, %v3834
        %v3865 = vpack.c.b16 %v3837, %v3836
        %v3866 = vpack.c.b16 %v3839, %v3838
        %v3867 = vpack.c.b16 %v3841, %v3840
        %v3868 = vpack.c.b16 %v3843, %v3842
        %v3869 = vpack.c.b16 %v3845, %v3844
        %v3870 = vpack.c.b16 %v3847, %v3846
        %v3871 = vpack.c.b16 %v3849, %v3848
        %v3872 = vpack.c.b16 %v3851, %v3850
        %v3873 = vpack.c.b16 %v3853, %v3852
        %v3874 = vpack.c.b16 %v3855, %v3854
        %v3875 = vpack.c.b16 %v3857, %v3856
        %v3876 = vpack.c.b16 %v3859, %v3858
        %v3877 = vpack.c.b16 %v3861, %v3860
        %3878 = vrot.lane.b32.xlu0 %v3862, 40
        %v3879 = vpop.permute.xlu0 %3878
        %3880 = vrot.lane.b32.xlu0 %v3863, 40
        %v3881 = vpop.permute.xlu0 %3880
        %3882 = vrot.lane.b32.xlu0 %v3864, 40
        %v3883 = vpop.permute.xlu0 %3882
        %3884 = vrot.lane.b32.xlu0 %v3865, 40
        %v3885 = vpop.permute.xlu0 %3884
        %3886 = vrot.lane.b32.xlu0 %v3866, 40
        %v3887 = vpop.permute.xlu0 %3886
        %3888 = vrot.lane.b32.xlu0 %v3867, 40
        %v3889 = vpop.permute.xlu0 %3888
        %3890 = vrot.lane.b32.xlu0 %v3868, 40
        %v3891 = vpop.permute.xlu0 %3890
        %3892 = vrot.lane.b32.xlu0 %v3869, 40
        %v3893 = vpop.permute.xlu0 %3892
        %3894 = vrot.lane.b32.xlu0 %v3870, 40
        %v3895 = vpop.permute.xlu0 %3894
        %3896 = vrot.lane.b32.xlu0 %v3871, 40
        %v3897 = vpop.permute.xlu0 %3896
        %3898 = vrot.lane.b32.xlu0 %v3872, 40
        %v3899 = vpop.permute.xlu0 %3898
        %3900 = vrot.lane.b32.xlu0 %v3873, 40
        %v3901 = vpop.permute.xlu0 %3900
        %3902 = vrot.lane.b32.xlu0 %v3874, 40
        %v3903 = vpop.permute.xlu0 %3902
        %3904 = vrot.lane.b32.xlu0 %v3875, 40
        %v3905 = vpop.permute.xlu0 %3904
        %3906 = vrot.lane.b32.xlu0 %v3876, 40
        %v3907 = vpop.permute.xlu0 %3906
        %3908 = vrot.lane.b32.xlu0 %v3877, 40
        %v3909 = vpop.permute.xlu0 %3908
        %v3926 = vunpack.c.l.b16 %v2822
        %v3927 = vunpack.c.l.b16 %v2823
        %v3928 = vunpack.c.l.b16 %v2824
        %v3929 = vunpack.c.l.b16 %v2825
        %v3930 = vunpack.c.l.b16 %v2826
        %v3931 = vunpack.c.l.b16 %v2827
        %v3932 = vunpack.c.l.b16 %v2828
        %v3933 = vunpack.c.l.b16 %v2829
        %v3934 = vunpack.c.l.b16 %v2830
        %v3935 = vunpack.c.l.b16 %v2831
        %v3936 = vunpack.c.l.b16 %v2832
        %v3937 = vunpack.c.l.b16 %v2833
        %v3938 = vunpack.c.l.b16 %v2834
        %v3939 = vunpack.c.l.b16 %v2835
        %v3940 = vunpack.c.l.b16 %v2836
        %v3941 = vunpack.c.l.b16 %v2837
        %v3942 = vunpack.c.l.b16 %v2838
        %v3943 = vunpack.c.l.b16 %v2839
        %v3944 = vunpack.c.l.b16 %v2840
        %v3945 = vunpack.c.l.b16 %v2841
        %v3946 = vunpack.c.l.b16 %v2842
        %v3947 = vunpack.c.l.b16 %v2843
        %v3948 = vunpack.c.l.b16 %v2844
        %v3949 = vunpack.c.l.b16 %v2845
        %v3950 = vunpack.c.l.b16 %v2846
        %v3951 = vunpack.c.l.b16 %v2847
        %v3952 = vunpack.c.l.b16 %v2848
        %v3953 = vunpack.c.l.b16 %v2849
        %v3954 = vunpack.c.l.b16 %v2850
        %v3955 = vunpack.c.l.b16 %v2851
        %v3956 = vunpack.c.l.b16 %v2852
        %v3957 = vunpack.c.l.b16 %v2853
        %v3958 = vpack.c.b16 %v3927, %v3926
        %v3959 = vpack.c.b16 %v3929, %v3928
        %v3960 = vpack.c.b16 %v3931, %v3930
        %v3961 = vpack.c.b16 %v3933, %v3932
        %v3962 = vpack.c.b16 %v3935, %v3934
        %v3963 = vpack.c.b16 %v3937, %v3936
        %v3964 = vpack.c.b16 %v3939, %v3938
        %v3965 = vpack.c.b16 %v3941, %v3940
        %v3966 = vpack.c.b16 %v3943, %v3942
        %v3967 = vpack.c.b16 %v3945, %v3944
        %v3968 = vpack.c.b16 %v3947, %v3946
        %v3969 = vpack.c.b16 %v3949, %v3948
        %v3970 = vpack.c.b16 %v3951, %v3950
        %v3971 = vpack.c.b16 %v3953, %v3952
        %v3972 = vpack.c.b16 %v3955, %v3954
        %v3973 = vpack.c.b16 %v3957, %v3956
        %3974 = vrot.lane.b32.xlu0 %v3958, 48
        %v3975 = vpop.permute.xlu0 %3974
        %3976 = vrot.lane.b32.xlu0 %v3959, 48
        %v3977 = vpop.permute.xlu0 %3976
        %3978 = vrot.lane.b32.xlu0 %v3960, 48
        %v3979 = vpop.permute.xlu0 %3978
        %3980 = vrot.lane.b32.xlu0 %v3961, 48
        %v3981 = vpop.permute.xlu0 %3980
        %3982 = vrot.lane.b32.xlu0 %v3962, 48
        %v3983 = vpop.permute.xlu0 %3982
        %3984 = vrot.lane.b32.xlu0 %v3963, 48
        %v3985 = vpop.permute.xlu0 %3984
        %3986 = vrot.lane.b32.xlu0 %v3964, 48
        %v3987 = vpop.permute.xlu0 %3986
        %3988 = vrot.lane.b32.xlu0 %v3965, 48
        %v3989 = vpop.permute.xlu0 %3988
        %3990 = vrot.lane.b32.xlu0 %v3966, 48
        %v3991 = vpop.permute.xlu0 %3990
        %3992 = vrot.lane.b32.xlu0 %v3967, 48
        %v3993 = vpop.permute.xlu0 %3992
        %3994 = vrot.lane.b32.xlu0 %v3968, 48
        %v3995 = vpop.permute.xlu0 %3994
        %3996 = vrot.lane.b32.xlu0 %v3969, 48
        %v3997 = vpop.permute.xlu0 %3996
        %3998 = vrot.lane.b32.xlu0 %v3970, 48
        %v3999 = vpop.permute.xlu0 %3998
        %4000 = vrot.lane.b32.xlu0 %v3971, 48
        %v4001 = vpop.permute.xlu0 %4000
        %4002 = vrot.lane.b32.xlu0 %v3972, 48
        %v4003 = vpop.permute.xlu0 %4002
        %4004 = vrot.lane.b32.xlu0 %v3973, 48
        %v4005 = vpop.permute.xlu0 %4004
        %v4006 = vunpack.c.l.b16 %v2883
        %v4007 = vunpack.c.l.b16 %v2893
        %v4008 = vunpack.c.l.b16 %v2907
        %v4009 = vunpack.c.l.b16 %v2917
        %v4010 = vunpack.c.l.b16 %v2931
        %v4011 = vunpack.c.l.b16 %v2941
        %v4012 = vunpack.c.l.b16 %v2955
        %v4013 = vunpack.c.l.b16 %v2965
        %v4014 = vunpack.c.l.b16 %v2979
        %v4015 = vunpack.c.l.b16 %v2989
        %v4016 = vunpack.c.l.b16 %v3003
        %v4017 = vunpack.c.l.b16 %v3013
        %v4018 = vunpack.c.l.b16 %v3027
        %v4019 = vunpack.c.l.b16 %v3037
        %v4020 = vunpack.c.l.b16 %v3051
        %v4021 = vunpack.c.l.b16 %v3061
        %v4022 = vunpack.c.l.b16 %v3075
        %v4023 = vunpack.c.l.b16 %v3085
        %v4024 = vunpack.c.l.b16 %v3099
        %v4025 = vunpack.c.l.b16 %v3109
        %v4026 = vunpack.c.l.b16 %v3123
        %v4027 = vunpack.c.l.b16 %v3133
        %v4028 = vunpack.c.l.b16 %v3147
        %v4029 = vunpack.c.l.b16 %v3157
        %v4030 = vunpack.c.l.b16 %v3171
        %v4031 = vunpack.c.l.b16 %v3181
        %v4032 = vunpack.c.l.b16 %v3195
        %v4033 = vunpack.c.l.b16 %v3205
        %v4034 = vunpack.c.l.b16 %v3219
        %v4035 = vunpack.c.l.b16 %v3229
        %v4036 = vunpack.c.l.b16 %v3243
        %v4037 = vunpack.c.l.b16 %v3253
        %v4038 = vpack.c.b16 %v4007, %v4006
        %v4039 = vpack.c.b16 %v4009, %v4008
        %v4040 = vpack.c.b16 %v4011, %v4010
        %v4041 = vpack.c.b16 %v4013, %v4012
        %v4042 = vpack.c.b16 %v4015, %v4014
        %v4043 = vpack.c.b16 %v4017, %v4016
        %v4044 = vpack.c.b16 %v4019, %v4018
        %v4045 = vpack.c.b16 %v4021, %v4020
        %v4046 = vpack.c.b16 %v4023, %v4022
        %v4047 = vpack.c.b16 %v4025, %v4024
        %v4048 = vpack.c.b16 %v4027, %v4026
        %v4049 = vpack.c.b16 %v4029, %v4028
        %v4050 = vpack.c.b16 %v4031, %v4030
        %v4051 = vpack.c.b16 %v4033, %v4032
        %v4052 = vpack.c.b16 %v4035, %v4034
        %v4053 = vpack.c.b16 %v4037, %v4036
        %4054 = vrot.lane.b32.xlu0 %v4038, 56
        %v4055 = vpop.permute.xlu0 %4054
        %4056 = vrot.lane.b32.xlu0 %v4039, 56
        %v4057 = vpop.permute.xlu0 %4056
        %4058 = vrot.lane.b32.xlu0 %v4040, 56
        %v4059 = vpop.permute.xlu0 %4058
        %4060 = vrot.lane.b32.xlu0 %v4041, 56
        %v4061 = vpop.permute.xlu0 %4060
        %4062 = vrot.lane.b32.xlu0 %v4042, 56
        %v4063 = vpop.permute.xlu0 %4062
        %4064 = vrot.lane.b32.xlu0 %v4043, 56
        %v4065 = vpop.permute.xlu0 %4064
        %4066 = vrot.lane.b32.xlu0 %v4044, 56
        %v4067 = vpop.permute.xlu0 %4066
        %4068 = vrot.lane.b32.xlu0 %v4045, 56
        %v4069 = vpop.permute.xlu0 %4068
        %4070 = vrot.lane.b32.xlu0 %v4046, 56
        %v4071 = vpop.permute.xlu0 %4070
        %4072 = vrot.lane.b32.xlu0 %v4047, 56
        %v4073 = vpop.permute.xlu0 %4072
        %4074 = vrot.lane.b32.xlu0 %v4048, 56
        %v4075 = vpop.permute.xlu0 %4074
        %4076 = vrot.lane.b32.xlu0 %v4049, 56
        %v4077 = vpop.permute.xlu0 %4076
        %4078 = vrot.lane.b32.xlu0 %v4050, 56
        %v4079 = vpop.permute.xlu0 %4078
        %4080 = vrot.lane.b32.xlu0 %v4051, 56
        %v4081 = vpop.permute.xlu0 %4080
        %4082 = vrot.lane.b32.xlu0 %v4052, 56
        %v4083 = vpop.permute.xlu0 %4082
        %4084 = vrot.lane.b32.xlu0 %v4053, 56
        %v4085 = vpop.permute.xlu0 %4084
        %v4086 = vunpack.c.l.b16 %v3321
        %v4087 = vunpack.c.l.b16 %v3324
        %v4088 = vunpack.c.l.b16 %v3328
        %v4089 = vunpack.c.l.b16 %v3331
        %v4090 = vunpack.c.l.b16 %v3335
        %v4091 = vunpack.c.l.b16 %v3338
        %v4092 = vunpack.c.l.b16 %v3342
        %v4093 = vunpack.c.l.b16 %v3345
        %v4094 = vunpack.c.l.b16 %v3349
        %v4095 = vunpack.c.l.b16 %v3352
        %v4096 = vunpack.c.l.b16 %v3356
        %v4097 = vunpack.c.l.b16 %v3359
        %v4098 = vunpack.c.l.b16 %v3363
        %v4099 = vunpack.c.l.b16 %v3366
        %v4100 = vunpack.c.l.b16 %v3370
        %v4101 = vunpack.c.l.b16 %v3373
        %v4102 = vunpack.c.l.b16 %v3377
        %v4103 = vunpack.c.l.b16 %v3380
        %v4104 = vunpack.c.l.b16 %v3384
        %v4105 = vunpack.c.l.b16 %v3387
        %v4106 = vunpack.c.l.b16 %v3391
        %v4107 = vunpack.c.l.b16 %v3394
        %v4108 = vunpack.c.l.b16 %v3398
        %v4109 = vunpack.c.l.b16 %v3401
        %v4110 = vunpack.c.l.b16 %v3405
        %v4111 = vunpack.c.l.b16 %v3408
        %v4112 = vunpack.c.l.b16 %v3412
        %v4113 = vunpack.c.l.b16 %v3415
        %v4114 = vunpack.c.l.b16 %v3419
        %v4115 = vunpack.c.l.b16 %v3422
        %v4116 = vunpack.c.l.b16 %v3426
        %v4117 = vunpack.c.l.b16 %v3429
        %v4118 = vpack.c.b16 %v4087, %v4086
        %v4119 = vpack.c.b16 %v4089, %v4088
        %v4120 = vpack.c.b16 %v4091, %v4090
        %v4121 = vpack.c.b16 %v4093, %v4092
        %v4122 = vpack.c.b16 %v4095, %v4094
        %v4123 = vpack.c.b16 %v4097, %v4096
        %v4124 = vpack.c.b16 %v4099, %v4098
        %v4125 = vpack.c.b16 %v4101, %v4100
        %v4126 = vpack.c.b16 %v4103, %v4102
        %v4127 = vpack.c.b16 %v4105, %v4104
        %v4128 = vpack.c.b16 %v4107, %v4106
        %v4129 = vpack.c.b16 %v4109, %v4108
        %v4130 = vpack.c.b16 %v4111, %v4110
        %v4131 = vpack.c.b16 %v4113, %v4112
        %v4132 = vpack.c.b16 %v4115, %v4114
        %v4133 = vpack.c.b16 %v4117, %v4116
        %4134 = vrot.lane.b32.xlu0 %v4118, 64
        %v4135 = vpop.permute.xlu0 %4134
        %4136 = vrot.lane.b32.xlu0 %v4119, 64
        %v4137 = vpop.permute.xlu0 %4136
        %4138 = vrot.lane.b32.xlu0 %v4120, 64
        %v4139 = vpop.permute.xlu0 %4138
        %4140 = vrot.lane.b32.xlu0 %v4121, 64
        %v4141 = vpop.permute.xlu0 %4140
        %4142 = vrot.lane.b32.xlu0 %v4122, 64
        %v4143 = vpop.permute.xlu0 %4142
        %4144 = vrot.lane.b32.xlu0 %v4123, 64
        %v4145 = vpop.permute.xlu0 %4144
        %4146 = vrot.lane.b32.xlu0 %v4124, 64
        %v4147 = vpop.permute.xlu0 %4146
        %4148 = vrot.lane.b32.xlu0 %v4125, 64
        %v4149 = vpop.permute.xlu0 %4148
        %4150 = vrot.lane.b32.xlu0 %v4126, 64
        %v4151 = vpop.permute.xlu0 %4150
        %4152 = vrot.lane.b32.xlu0 %v4127, 64
        %v4153 = vpop.permute.xlu0 %4152
        %4154 = vrot.lane.b32.xlu0 %v4128, 64
        %v4155 = vpop.permute.xlu0 %4154
        %4156 = vrot.lane.b32.xlu0 %v4129, 64
        %v4157 = vpop.permute.xlu0 %4156
        %4158 = vrot.lane.b32.xlu0 %v4130, 64
        %v4159 = vpop.permute.xlu0 %4158
        %4160 = vrot.lane.b32.xlu0 %v4131, 64
        %v4161 = vpop.permute.xlu0 %4160
        %4162 = vrot.lane.b32.xlu0 %v4132, 64
        %v4163 = vpop.permute.xlu0 %4162
        %4164 = vrot.lane.b32.xlu0 %v4133, 64
        %v4165 = vpop.permute.xlu0 %4164
        %vm4166 = vcmask 64512
        %v4169 = vsel %vm4166, %v3478, %v3543
        %v4172 = vsel %vm4166, %v3479, %v3545
        %v4175 = vsel %vm4166, %v3480, %v3547
        %v4178 = vsel %vm4166, %v3481, %v3549
        %v4181 = vsel %vm4166, %v3482, %v3551
        %v4184 = vsel %vm4166, %v3483, %v3553
        %v4187 = vsel %vm4166, %v3484, %v3555
        %v4190 = vsel %vm4166, %v3485, %v3557
        %v4193 = vsel %vm4166, %v3486, %v3559
        %v4196 = vsel %vm4166, %v3487, %v3561
        %v4199 = vsel %vm4166, %v3488, %v3563
        %v4202 = vsel %vm4166, %v3489, %v3565
        %v4205 = vsel %vm4166, %v3490, %v3567
        %v4208 = vsel %vm4166, %v3491, %v3569
        %v4211 = vsel %vm4166, %v3492, %v3571
        %v4214 = vsel %vm4166, %v3493, %v3573
        %vm4215 = vcmask 130048
        %v4217 = vsel %vm4215, %v4169, %v3623
        %v4219 = vsel %vm4215, %v4172, %v3625
        %v4221 = vsel %vm4215, %v4175, %v3627
        %v4223 = vsel %vm4215, %v4178, %v3629
        %v4225 = vsel %vm4215, %v4181, %v3631
        %v4227 = vsel %vm4215, %v4184, %v3633
        %v4229 = vsel %vm4215, %v4187, %v3635
        %v4231 = vsel %vm4215, %v4190, %v3637
        %v4233 = vsel %vm4215, %v4193, %v3639
        %v4235 = vsel %vm4215, %v4196, %v3641
        %v4237 = vsel %vm4215, %v4199, %v3643
        %v4239 = vsel %vm4215, %v4202, %v3645
        %v4241 = vsel %vm4215, %v4205, %v3647
        %v4243 = vsel %vm4215, %v4208, %v3649
        %v4245 = vsel %vm4215, %v4211, %v3651
        %v4247 = vsel %vm4215, %v4214, %v3653
        %vm4248 = vcmask 195584
        %v4250 = vsel %vm4248, %v4217, %v3719
        %v4252 = vsel %vm4248, %v4219, %v3721
        %v4254 = vsel %vm4248, %v4221, %v3723
        %v4256 = vsel %vm4248, %v4223, %v3725
        %v4258 = vsel %vm4248, %v4225, %v3727
        %v4260 = vsel %vm4248, %v4227, %v3729
        %v4262 = vsel %vm4248, %v4229, %v3731
        %v4264 = vsel %vm4248, %v4231, %v3733
        %v4266 = vsel %vm4248, %v4233, %v3735
        %v4268 = vsel %vm4248, %v4235, %v3737
        %v4270 = vsel %vm4248, %v4237, %v3739
        %v4272 = vsel %vm4248, %v4239, %v3741
        %v4274 = vsel %vm4248, %v4241, %v3743
        %v4276 = vsel %vm4248, %v4243, %v3745
        %v4278 = vsel %vm4248, %v4245, %v3747
        %v4280 = vsel %vm4248, %v4247, %v3749
        %v4282 = vsel %vm624, %v4250, %v3799
        %v4284 = vsel %vm624, %v4252, %v3801
        %v4286 = vsel %vm624, %v4254, %v3803
        %v4288 = vsel %vm624, %v4256, %v3805
        %v4290 = vsel %vm624, %v4258, %v3807
        %v4292 = vsel %vm624, %v4260, %v3809
        %v4294 = vsel %vm624, %v4262, %v3811
        %v4296 = vsel %vm624, %v4264, %v3813
        %v4298 = vsel %vm624, %v4266, %v3815
        %v4300 = vsel %vm624, %v4268, %v3817
        %v4302 = vsel %vm624, %v4270, %v3819
        %v4304 = vsel %vm624, %v4272, %v3821
        %v4306 = vsel %vm624, %v4274, %v3823
        %v4308 = vsel %vm624, %v4276, %v3825
        %v4310 = vsel %vm624, %v4278, %v3827
        %v4312 = vsel %vm624, %v4280, %v3829
        %vm4313 = vcmask 326656
        %v4315 = vsel %vm4313, %v4282, %v3879
        %v4317 = vsel %vm4313, %v4284, %v3881
        %v4319 = vsel %vm4313, %v4286, %v3883
        %v4321 = vsel %vm4313, %v4288, %v3885
        %v4323 = vsel %vm4313, %v4290, %v3887
        %v4325 = vsel %vm4313, %v4292, %v3889
        %v4327 = vsel %vm4313, %v4294, %v3891
        %v4329 = vsel %vm4313, %v4296, %v3893
        %v4331 = vsel %vm4313, %v4298, %v3895
        %v4333 = vsel %vm4313, %v4300, %v3897
        %v4335 = vsel %vm4313, %v4302, %v3899
        %v4337 = vsel %vm4313, %v4304, %v3901
        %v4339 = vsel %vm4313, %v4306, %v3903
        %v4341 = vsel %vm4313, %v4308, %v3905
        %v4343 = vsel %vm4313, %v4310, %v3907
        %v4345 = vsel %vm4313, %v4312, %v3909
        %vm4346 = vcmask 392192
        %v4348 = vsel %vm4346, %v4315, %v3975
        %v4350 = vsel %vm4346, %v4317, %v3977
        %v4352 = vsel %vm4346, %v4319, %v3979
        %v4354 = vsel %vm4346, %v4321, %v3981
        %v4356 = vsel %vm4346, %v4323, %v3983
        %v4358 = vsel %vm4346, %v4325, %v3985
        %v4360 = vsel %vm4346, %v4327, %v3987
        %v4362 = vsel %vm4346, %v4329, %v3989
        %v4364 = vsel %vm4346, %v4331, %v3991
        %v4366 = vsel %vm4346, %v4333, %v3993
        %v4368 = vsel %vm4346, %v4335, %v3995
        %v4370 = vsel %vm4346, %v4337, %v3997
        %v4372 = vsel %vm4346, %v4339, %v3999
        %v4374 = vsel %vm4346, %v4341, %v4001
        %v4376 = vsel %vm4346, %v4343, %v4003
        %v4378 = vsel %vm4346, %v4345, %v4005
        %vm4379 = vcmask 457728
        %v4381 = vsel %vm4379, %v4348, %v4055
        %v4383 = vsel %vm4379, %v4350, %v4057
        %v4385 = vsel %vm4379, %v4352, %v4059
        %v4387 = vsel %vm4379, %v4354, %v4061
        %v4389 = vsel %vm4379, %v4356, %v4063
        %v4391 = vsel %vm4379, %v4358, %v4065
        %v4393 = vsel %vm4379, %v4360, %v4067
        %v4395 = vsel %vm4379, %v4362, %v4069
        %v4397 = vsel %vm4379, %v4364, %v4071
        %v4399 = vsel %vm4379, %v4366, %v4073
        %v4401 = vsel %vm4379, %v4368, %v4075
        %v4403 = vsel %vm4379, %v4370, %v4077
        %v4405 = vsel %vm4379, %v4372, %v4079
        %v4407 = vsel %vm4379, %v4374, %v4081
        %v4409 = vsel %vm4379, %v4376, %v4083
        %v4411 = vsel %vm4379, %v4378, %v4085
        %vm4412 = vcmask 523264
        %v4414 = vsel %vm4412, %v4381, %v4135
        %v4416 = vsel %vm4412, %v4383, %v4137
        %v4418 = vsel %vm4412, %v4385, %v4139
        %v4420 = vsel %vm4412, %v4387, %v4141
        %v4422 = vsel %vm4412, %v4389, %v4143
        %v4424 = vsel %vm4412, %v4391, %v4145
        %v4426 = vsel %vm4412, %v4393, %v4147
        %v4428 = vsel %vm4412, %v4395, %v4149
        %v4430 = vsel %vm4412, %v4397, %v4151
        %v4432 = vsel %vm4412, %v4399, %v4153
        %v4434 = vsel %vm4412, %v4401, %v4155
        %v4436 = vsel %vm4412, %v4403, %v4157
        %v4438 = vsel %vm4412, %v4405, %v4159
        %v4440 = vsel %vm4412, %v4407, %v4161
        %v4442 = vsel %vm4412, %v4409, %v4163
        %v4444 = vsel %vm4412, %v4411, %v4165
        %v4445 = vld [vmem:[#allocation11] sm:$0xf]
        %v4446 = vld [vmem:[#allocation11 + $0x4] sm:$0xf]
        %v4447 = vld [vmem:[#allocation11 + $0x8] sm:$0xf]
        %v4448 = vld [vmem:[#allocation11 + $0xc] sm:$0xf]
        %v4449 = vld [vmem:[#allocation11 + $0x10] sm:$0xf]
        %v4450 = vld [vmem:[#allocation11 + $0x14] sm:$0xf]
        %v4451 = vld [vmem:[#allocation11 + $0x18] sm:$0xf]
        %v4452 = vld [vmem:[#allocation11 + $0x1c] sm:$0xf]
        %v4453 = vld [vmem:[#allocation11 + $0x20] sm:$0xf]
        %v4463 = vunpack.c.l.b16 %v4445
        %v4464 = vunpack.c.l.b16 %v4446
        %v4465 = vunpack.c.l.b16 %v4447
        %v4466 = vunpack.c.l.b16 %v4448
        %v4467 = vunpack.c.l.b16 %v4449
        %v4468 = vunpack.c.l.b16 %v4450
        %v4469 = vunpack.c.l.b16 %v4451
        %v4470 = vunpack.c.l.b16 %v4452
        %v4471 = vunpack.c.l.b16 %v4453
        %v4472 = vpack.c.b16 %v4464, %v4463
        %v4473 = vpack.c.b16 %v4466, %v4465
        %v4474 = vpack.c.b16 %v4468, %v4467
        %v4475 = vpack.c.b16 %v4470, %v4469
        %v4476 = vpack.c.b16 %v4471, %v4471
        %vm4481 = vcmask 588800
        %v4482 = vsel %vm4481, %v4414, 0
        %v4484 = vsel %vm4481, %v4416, 0
        %v4486 = vsel %vm4481, %v4418, 0
        %v4488 = vsel %vm4481, %v4420, 0
        %v4490 = vsel %vm4481, %v4422, 0
        %v4492 = vsel %vm4481, %v4424, 0
        %v4494 = vsel %vm4481, %v4426, 0
        %v4496 = vsel %vm4481, %v4428, 0
        %v4498 = vsel %vm4481, %v4430, 0
        %v4500 = vsel %vm4481, %v4432, 0
        %v4502 = vsel %vm4481, %v4434, 0
        %v4504 = vsel %vm4481, %v4436, 0
        %v4506 = vsel %vm4481, %v4438, 0
        %v4508 = vsel %vm4481, %v4440, 0
        %v4510 = vsel %vm4481, %v4442, 0
        %v4512 = vsel %vm4481, %v4444, 0
        %vm4514 = vcmask 1043456
        %v4516 = vsel %vm4514, %v4476, 0
        %4518 = vmatprep.subr.bf16.mxu0 0
        %4519 = vmatpush1.bf16.msra.mxu0 %v4472
        %4520 = vmatprep.subr.bf16.mxu0 0
        %4521 = vmatpush1.bf16.msra.mxu0 %v4473
        %4522 = vmatprep.subr.bf16.mxu0 0
        %4523 = vmatpush1.bf16.msra.mxu0 %v4474
        %4524 = vmatprep.subr.bf16.mxu0 0
        %4525 = vmatpush1.bf16.msra.mxu0 %v4475
        %4526 = vmatprep.subr.bf16.mxu0 0
        %4527 = vmatpush1.bf16.msra.mxu0 %v4516
        %4528 = vmatprep.subr.bf16.mxu0 0
        %4529 = vmatpush1.bf16.msra.mxu0 0
        %4530 = vmatprep.subr.bf16.mxu0 0
        %4531 = vmatpush1.bf16.msra.mxu0 0
        %4532 = vmatprep.subr.bf16.mxu0 0
        %4533 = vmatpush1.bf16.msra.mxu0 0
        %4534 = vmatprep.subr.bf16.mxu0 0
        %4535 = vmatpush1.bf16.msra.mxu0 0
        %4536 = vmatprep.subr.bf16.mxu0 0
        %4537 = vmatpush1.bf16.msra.mxu0 0
        %4538 = vmatprep.subr.bf16.mxu0 0
        %4539 = vmatpush1.bf16.msra.mxu0 0
        %4540 = vmatprep.subr.bf16.mxu0 0
        %4541 = vmatpush1.bf16.msra.mxu0 0
        %4542 = vmatprep.subr.bf16.mxu0 0
        %4543 = vmatpush1.bf16.msra.mxu0 0
        %4544 = vmatprep.subr.bf16.mxu0 0
        %4545 = vmatpush1.bf16.msra.mxu0 0
        %4546 = vmatprep.subr.bf16.mxu0 0
        %4547 = vmatpush1.bf16.msra.mxu0 0
        %4548 = vmatprep.subr.bf16.mxu0 0
        %4549 = vmatpush1.bf16.msra.mxu0 0
        %4550 = vmatprep.mubr.bf16.mxu0 0
        %4551 = vmatmul.mubr.bf16.gmra.mrb[0].mxu0 %v4482
        %v4552 = vpop.f32.mrb[0].mxu0
        %v4553 = vadd.f32 0.0, %v4552
        %v4554 = vpop.f32.mrb[0].mxu0
        %v4555 = vpop.f32.mrb[0].mxu0
        %v4556 = vadd.f32 0.0, %v4555
        %v4557 = vpop.f32.mrb[0].mxu0
        %4558 = vmatprep.mubr.bf16.mxu0 0
        %4559 = vmatmul.mubr.bf16.gmra.mrb[0].mxu0 %v4484
        %v4560 = vpop.f32.mrb[0].mxu0
        %v4561 = vadd.f32 0.0, %v4560
        %v4562 = vpop.f32.mrb[0].mxu0
        %v4563 = vpop.f32.mrb[0].mxu0
        %v4564 = vadd.f32 0.0, %v4563
        %v4565 = vpop.f32.mrb[0].mxu0
        %4566 = vmatprep.mubr.bf16.mxu0 0
        %4567 = vmatmul.mubr.bf16.gmra.mrb[0].mxu0 %v4486
        %v4568 = vpop.f32.mrb[0].mxu0
        %v4569 = vadd.f32 0.0, %v4568
        %v4570 = vpop.f32.mrb[0].mxu0
        %v4571 = vpop.f32.mrb[0].mxu0
        %v4572 = vadd.f32 0.0, %v4571
        %v4573 = vpop.f32.mrb[0].mxu0
        %4574 = vmatprep.mubr.bf16.mxu0 0
        %4575 = vmatmul.mubr.bf16.gmra.mrb[0].mxu0 %v4488
        %v4576 = vpop.f32.mrb[0].mxu0
        %v4577 = vadd.f32 0.0, %v4576
        %v4578 = vpop.f32.mrb[0].mxu0
        %v4579 = vpop.f32.mrb[0].mxu0
        %v4580 = vadd.f32 0.0, %v4579
        %v4581 = vpop.f32.mrb[0].mxu0
        %4582 = vmatprep.mubr.bf16.mxu0 0
        %4583 = vmatmul.mubr.bf16.gmra.mrb[0].mxu0 %v4490
        %v4584 = vpop.f32.mrb[0].mxu0
        %v4585 = vadd.f32 0.0, %v4584
        %v4586 = vpop.f32.mrb[0].mxu0
        %v4587 = vpop.f32.mrb[0].mxu0
        %v4588 = vadd.f32 0.0, %v4587
        %v4589 = vpop.f32.mrb[0].mxu0
        %4590 = vmatprep.mubr.bf16.mxu0 0
        %4591 = vmatmul.mubr.bf16.gmra.mrb[0].mxu0 %v4492
        %v4592 = vpop.f32.mrb[0].mxu0
        %v4593 = vadd.f32 0.0, %v4592
        %v4594 = vpop.f32.mrb[0].mxu0
        %v4595 = vpop.f32.mrb[0].mxu0
        %v4596 = vadd.f32 0.0, %v4595
        %v4597 = vpop.f32.mrb[0].mxu0
        %4598 = vmatprep.mubr.bf16.mxu0 0
        %4599 = vmatmul.mubr.bf16.gmra.mrb[0].mxu0 %v4494
        %v4600 = vpop.f32.mrb[0].mxu0
        %v4601 = vadd.f32 0.0, %v4600
        %v4602 = vpop.f32.mrb[0].mxu0
        %v4603 = vpop.f32.mrb[0].mxu0
        %v4604 = vadd.f32 0.0, %v4603
        %v4605 = vpop.f32.mrb[0].mxu0
        %4606 = vmatprep.mubr.bf16.mxu0 0
        %4607 = vmatmul.mubr.bf16.gmra.mrb[0].mxu0 %v4496
        %v4608 = vpop.f32.mrb[0].mxu0
        %v4609 = vadd.f32 0.0, %v4608
        %v4610 = vpop.f32.mrb[0].mxu0
        %v4611 = vpop.f32.mrb[0].mxu0
        %v4612 = vadd.f32 0.0, %v4611
        %v4613 = vpop.f32.mrb[0].mxu0
        %4614 = vmatprep.mubr.bf16.mxu0 0
        %4615 = vmatmul.mubr.bf16.gmra.mrb[0].mxu0 %v4498
        %v4616 = vpop.f32.mrb[0].mxu0
        %v4617 = vadd.f32 0.0, %v4616
        %v4618 = vpop.f32.mrb[0].mxu0
        %v4619 = vpop.f32.mrb[0].mxu0
        %v4620 = vadd.f32 0.0, %v4619
        %v4621 = vpop.f32.mrb[0].mxu0
        %4622 = vmatprep.mubr.bf16.mxu0 0
        %4623 = vmatmul.mubr.bf16.gmra.mrb[0].mxu0 %v4500
        %v4624 = vpop.f32.mrb[0].mxu0
        %v4625 = vadd.f32 0.0, %v4624
        %v4626 = vpop.f32.mrb[0].mxu0
        %v4627 = vpop.f32.mrb[0].mxu0
        %v4628 = vadd.f32 0.0, %v4627
        %v4629 = vpop.f32.mrb[0].mxu0
        %4630 = vmatprep.mubr.bf16.mxu0 0
        %4631 = vmatmul.mubr.bf16.gmra.mrb[0].mxu0 %v4502
        %v4632 = vpop.f32.mrb[0].mxu0
        %v4633 = vadd.f32 0.0, %v4632
        %v4634 = vpop.f32.mrb[0].mxu0
        %v4635 = vpop.f32.mrb[0].mxu0
        %v4636 = vadd.f32 0.0, %v4635
        %v4637 = vpop.f32.mrb[0].mxu0
        %4638 = vmatprep.mubr.bf16.mxu0 0
        %4639 = vmatmul.mubr.bf16.gmra.mrb[0].mxu0 %v4504
        %v4640 = vpop.f32.mrb[0].mxu0
        %v4641 = vadd.f32 0.0, %v4640
        %v4642 = vpop.f32.mrb[0].mxu0
        %v4643 = vpop.f32.mrb[0].mxu0
        %v4644 = vadd.f32 0.0, %v4643
        %v4645 = vpop.f32.mrb[0].mxu0
        %4646 = vmatprep.mubr.bf16.mxu0 0
        %4647 = vmatmul.mubr.bf16.gmra.mrb[0].mxu0 %v4506
        %v4648 = vpop.f32.mrb[0].mxu0
        %v4649 = vadd.f32 0.0, %v4648
        %v4650 = vpop.f32.mrb[0].mxu0
        %v4651 = vpop.f32.mrb[0].mxu0
        %v4652 = vadd.f32 0.0, %v4651
        %v4653 = vpop.f32.mrb[0].mxu0
        %4654 = vmatprep.mubr.bf16.mxu0 0
        %4655 = vmatmul.mubr.bf16.gmra.mrb[0].mxu0 %v4508
        %v4656 = vpop.f32.mrb[0].mxu0
        %v4657 = vadd.f32 0.0, %v4656
        %v4658 = vpop.f32.mrb[0].mxu0
        %v4659 = vpop.f32.mrb[0].mxu0
        %v4660 = vadd.f32 0.0, %v4659
        %v4661 = vpop.f32.mrb[0].mxu0
        %4662 = vmatprep.mubr.bf16.mxu0 0
        %4663 = vmatmul.mubr.bf16.gmra.mrb[0].mxu0 %v4510
        %v4664 = vpop.f32.mrb[0].mxu0
        %v4665 = vadd.f32 0.0, %v4664
        %v4666 = vpop.f32.mrb[0].mxu0
        %v4667 = vpop.f32.mrb[0].mxu0
        %v4668 = vadd.f32 0.0, %v4667
        %v4669 = vpop.f32.mrb[0].mxu0
        %4670 = vmatprep.mubr.bf16.mxu0 0
        %4671 = vmatmul.mubr.bf16.gmra.mrb[0].mxu0 %v4512
        %v4672 = vpop.f32.mrb[0].mxu0
        %v4673 = vadd.f32 0.0, %v4672
        %v4674 = vpop.f32.mrb[0].mxu0
        %v4675 = vpop.f32.mrb[0].mxu0
        %v4676 = vadd.f32 0.0, %v4675
        %v4677 = vpop.f32.mrb[0].mxu0
        %4678 = vdwg.mxu0
        %v4679 = vld [vmem:[#allocation12] sm:$0x1]
        %v4681 = vlaneseq
        %v4682 = vshrl.u32 %v4681, 7
        %v4683 = vsub.s32 0, %v4682
        %v4684 = vrot.slane %v4679, %v4683
        %v4686 = vmul.f32 %v4553, %v4684
        %v4687 = vmul.f32 %v4556, %v4684
        %v4688 = vmul.f32 %v4561, %v4684
        %v4689 = vmul.f32 %v4564, %v4684
        %v4690 = vmul.f32 %v4569, %v4684
        %v4691 = vmul.f32 %v4572, %v4684
        %v4692 = vmul.f32 %v4577, %v4684
        %v4693 = vmul.f32 %v4580, %v4684
        %v4694 = vmul.f32 %v4585, %v4684
        %v4695 = vmul.f32 %v4588, %v4684
        %v4696 = vmul.f32 %v4593, %v4684
        %v4697 = vmul.f32 %v4596, %v4684
        %v4698 = vmul.f32 %v4601, %v4684
        %v4699 = vmul.f32 %v4604, %v4684
        %v4700 = vmul.f32 %v4609, %v4684
        %v4701 = vmul.f32 %v4612, %v4684
        %v4702 = vmul.f32 %v4617, %v4684
        %v4703 = vmul.f32 %v4620, %v4684
        %v4704 = vmul.f32 %v4625, %v4684
        %v4705 = vmul.f32 %v4628, %v4684
        %v4706 = vmul.f32 %v4633, %v4684
        %v4707 = vmul.f32 %v4636, %v4684
        %v4708 = vmul.f32 %v4641, %v4684
        %v4709 = vmul.f32 %v4644, %v4684
        %v4710 = vmul.f32 %v4649, %v4684
        %v4711 = vmul.f32 %v4652, %v4684
        %v4712 = vmul.f32 %v4657, %v4684
        %v4713 = vmul.f32 %v4660, %v4684
        %v4714 = vmul.f32 %v4665, %v4684
        %v4715 = vmul.f32 %v4668, %v4684
        %v4716 = vmul.f32 %v4673, %v4684
        %v4717 = vmul.f32 %v4676, %v4684
        %v4718 = vld [vmem:[#allocation14] sm:$0x1]
        %v4720 = vlaneseq
        %v4721 = vshrl.u32 %v4720, 7
        %v4722 = vsub.s32 0, %v4721
        %v4723 = vrot.slane %v4718, %v4722
        %v4725 = vadd.f32 %v4686, %v4723
        %v4726 = vadd.f32 %v4687, %v4723
        %v4727 = vadd.f32 %v4688, %v4723
        %v4728 = vadd.f32 %v4689, %v4723
        %v4729 = vadd.f32 %v4690, %v4723
        %v4730 = vadd.f32 %v4691, %v4723
        %v4731 = vadd.f32 %v4692, %v4723
        %v4732 = vadd.f32 %v4693, %v4723
        %v4733 = vadd.f32 %v4694, %v4723
        %v4734 = vadd.f32 %v4695, %v4723
        %v4735 = vadd.f32 %v4696, %v4723
        %v4736 = vadd.f32 %v4697, %v4723
        %v4737 = vadd.f32 %v4698, %v4723
        %v4738 = vadd.f32 %v4699, %v4723
        %v4739 = vadd.f32 %v4700, %v4723
        %v4740 = vadd.f32 %v4701, %v4723
        %v4741 = vadd.f32 %v4702, %v4723
        %v4742 = vadd.f32 %v4703, %v4723
        %v4743 = vadd.f32 %v4704, %v4723
        %v4744 = vadd.f32 %v4705, %v4723
        %v4745 = vadd.f32 %v4706, %v4723
        %v4746 = vadd.f32 %v4707, %v4723
        %v4747 = vadd.f32 %v4708, %v4723
        %v4748 = vadd.f32 %v4709, %v4723
        %v4749 = vadd.f32 %v4710, %v4723
        %v4750 = vadd.f32 %v4711, %v4723
        %v4751 = vadd.f32 %v4712, %v4723
        %v4752 = vadd.f32 %v4713, %v4723
        %v4753 = vadd.f32 %v4714, %v4723
        %v4754 = vadd.f32 %v4715, %v4723
        %v4755 = vadd.f32 %v4716, %v4723
        %v4756 = vadd.f32 %v4717, %v4723
        %v4757 = vmax.f32 %v4725, 0.0
        %v4758 = vmax.f32 %v4726, 0.0
        %v4759 = vmax.f32 %v4727, 0.0
        %v4760 = vmax.f32 %v4728, 0.0
        %v4761 = vmax.f32 %v4729, 0.0
        %v4762 = vmax.f32 %v4730, 0.0
        %v4763 = vmax.f32 %v4731, 0.0
        %v4764 = vmax.f32 %v4732, 0.0
        %v4765 = vmax.f32 %v4733, 0.0
        %v4766 = vmax.f32 %v4734, 0.0
        %v4767 = vmax.f32 %v4735, 0.0
        %v4768 = vmax.f32 %v4736, 0.0
        %v4769 = vmax.f32 %v4737, 0.0
        %v4770 = vmax.f32 %v4738, 0.0
        %v4771 = vmax.f32 %v4739, 0.0
        %v4772 = vmax.f32 %v4740, 0.0
        %v4773 = vmax.f32 %v4741, 0.0
        %v4774 = vmax.f32 %v4742, 0.0
        %v4775 = vmax.f32 %v4743, 0.0
        %v4776 = vmax.f32 %v4744, 0.0
        %v4777 = vmax.f32 %v4745, 0.0
        %v4778 = vmax.f32 %v4746, 0.0
        %v4779 = vmax.f32 %v4747, 0.0
        %v4780 = vmax.f32 %v4748, 0.0
        %v4781 = vmax.f32 %v4749, 0.0
        %v4782 = vmax.f32 %v4750, 0.0
        %v4783 = vmax.f32 %v4751, 0.0
        %v4784 = vmax.f32 %v4752, 0.0
        %v4785 = vmax.f32 %v4753, 0.0
        %v4786 = vmax.f32 %v4754, 0.0
        %v4787 = vmax.f32 %v4755, 0.0
        %v4788 = vmax.f32 %v4756, 0.0
        %v4789 = vpack.c.bf16 %v4758, %v4757
        %v4790 = vpack.c.bf16 %v4760, %v4759
        %v4791 = vpack.c.bf16 %v4762, %v4761
        %v4792 = vpack.c.bf16 %v4764, %v4763
        %v4793 = vpack.c.bf16 %v4766, %v4765
        %v4794 = vpack.c.bf16 %v4768, %v4767
        %v4795 = vpack.c.bf16 %v4770, %v4769
        %v4796 = vpack.c.bf16 %v4772, %v4771
        %v4797 = vpack.c.bf16 %v4774, %v4773
        %v4798 = vpack.c.bf16 %v4776, %v4775
        %v4799 = vpack.c.bf16 %v4778, %v4777
        %v4800 = vpack.c.bf16 %v4780, %v4779
        %v4801 = vpack.c.bf16 %v4782, %v4781
        %v4802 = vpack.c.bf16 %v4784, %v4783
        %v4803 = vpack.c.bf16 %v4786, %v4785
        %v4804 = vpack.c.bf16 %v4788, %v4787
        %v4805 = vld [vmem:[#allocation15] sm:$0xf]
        %v4807 = vsel %vm4166, %v4789, 0
        %v4810 = vsel %vm4166, %v4790, 0
        %v4813 = vsel %vm4166, %v4791, 0
        %v4816 = vsel %vm4166, %v4792, 0
        %v4819 = vsel %vm4166, %v4793, 0
        %v4822 = vsel %vm4166, %v4794, 0
        %v4825 = vsel %vm4166, %v4795, 0
        %v4828 = vsel %vm4166, %v4796, 0
        %v4831 = vsel %vm4166, %v4797, 0
        %v4834 = vsel %vm4166, %v4798, 0
        %v4837 = vsel %vm4166, %v4799, 0
        %v4840 = vsel %vm4166, %v4800, 0
        %v4843 = vsel %vm4166, %v4801, 0
        %v4846 = vsel %vm4166, %v4802, 0
        %v4849 = vsel %vm4166, %v4803, 0
        %v4852 = vsel %vm4166, %v4804, 0
        %v4855 = vsel %vm4514, %v4805, 0
        %4857 = vmatprep.subr.bf16.mxu0 0
        %4858 = vmatpush1.bf16.msra.mxu0 %v4855
        %4859 = vmatprep.subr.bf16.mxu0 0
        %4860 = vmatpush1.bf16.msra.mxu0 0
        %4861 = vmatprep.subr.bf16.mxu0 0
        %4862 = vmatpush1.bf16.msra.mxu0 0
        %4863 = vmatprep.subr.bf16.mxu0 0
        %4864 = vmatpush1.bf16.msra.mxu0 0
        %4865 = vmatprep.subr.bf16.mxu0 0
        %4866 = vmatpush1.bf16.msra.mxu0 0
        %4867 = vmatprep.subr.bf16.mxu0 0
        %4868 = vmatpush1.bf16.msra.mxu0 0
        %4869 = vmatprep.subr.bf16.mxu0 0
        %4870 = vmatpush1.bf16.msra.mxu0 0
        %4871 = vmatprep.subr.bf16.mxu0 0
        %4872 = vmatpush1.bf16.msra.mxu0 0
        %4873 = vmatprep.subr.bf16.mxu0 0
        %4874 = vmatpush1.bf16.msra.mxu0 0
        %4875 = vmatprep.subr.bf16.mxu0 0
        %4876 = vmatpush1.bf16.msra.mxu0 0
        %4877 = vmatprep.subr.bf16.mxu0 0
        %4878 = vmatpush1.bf16.msra.mxu0 0
        %4879 = vmatprep.subr.bf16.mxu0 0
        %4880 = vmatpush1.bf16.msra.mxu0 0
        %4881 = vmatprep.subr.bf16.mxu0 0
        %4882 = vmatpush1.bf16.msra.mxu0 0
        %4883 = vmatprep.subr.bf16.mxu0 0
        %4884 = vmatpush1.bf16.msra.mxu0 0
        %4885 = vmatprep.subr.bf16.mxu0 0
        %4886 = vmatpush1.bf16.msra.mxu0 0
        %4887 = vmatprep.subr.bf16.mxu0 0
        %4888 = vmatpush1.bf16.msra.mxu0 0
        %4889 = vmatprep.mubr.bf16.mxu0 0
        %4890 = vmatmul.mubr.bf16.gmra.mrb[0].mxu0 %v4807
        %v4891 = vpop.f32.mrb[0].mxu0
        %v4892 = vadd.f32 0.0, %v4891
        %v4893 = vpop.f32.mrb[0].mxu0
        %v4894 = vpop.f32.mrb[0].mxu0
        %v4895 = vadd.f32 0.0, %v4894
        %v4896 = vpop.f32.mrb[0].mxu0
        %4897 = vmatprep.mubr.bf16.mxu0 0
        %4898 = vmatmul.mubr.bf16.gmra.mrb[0].mxu0 %v4810
        %v4899 = vpop.f32.mrb[0].mxu0
        %v4900 = vadd.f32 0.0, %v4899
        %v4901 = vpop.f32.mrb[0].mxu0
        %v4902 = vpop.f32.mrb[0].mxu0
        %v4903 = vadd.f32 0.0, %v4902
        %v4904 = vpop.f32.mrb[0].mxu0
        %4905 = vmatprep.mubr.bf16.mxu0 0
        %4906 = vmatmul.mubr.bf16.gmra.mrb[0].mxu0 %v4813
        %v4907 = vpop.f32.mrb[0].mxu0
        %v4908 = vadd.f32 0.0, %v4907
        %v4909 = vpop.f32.mrb[0].mxu0
        %v4910 = vpop.f32.mrb[0].mxu0
        %v4911 = vadd.f32 0.0, %v4910
        %v4912 = vpop.f32.mrb[0].mxu0
        %4913 = vmatprep.mubr.bf16.mxu0 0
        %4914 = vmatmul.mubr.bf16.gmra.mrb[0].mxu0 %v4816
        %v4915 = vpop.f32.mrb[0].mxu0
        %v4916 = vadd.f32 0.0, %v4915
        %v4917 = vpop.f32.mrb[0].mxu0
        %v4918 = vpop.f32.mrb[0].mxu0
        %v4919 = vadd.f32 0.0, %v4918
        %v4920 = vpop.f32.mrb[0].mxu0
        %4921 = vmatprep.mubr.bf16.mxu0 0
        %4922 = vmatmul.mubr.bf16.gmra.mrb[0].mxu0 %v4819
        %v4923 = vpop.f32.mrb[0].mxu0
        %v4924 = vadd.f32 0.0, %v4923
        %v4925 = vpop.f32.mrb[0].mxu0
        %v4926 = vpop.f32.mrb[0].mxu0
        %v4927 = vadd.f32 0.0, %v4926
        %v4928 = vpop.f32.mrb[0].mxu0
        %4929 = vmatprep.mubr.bf16.mxu0 0
        %4930 = vmatmul.mubr.bf16.gmra.mrb[0].mxu0 %v4822
        %v4931 = vpop.f32.mrb[0].mxu0
        %v4932 = vadd.f32 0.0, %v4931
        %v4933 = vpop.f32.mrb[0].mxu0
        %v4934 = vpop.f32.mrb[0].mxu0
        %v4935 = vadd.f32 0.0, %v4934
        %v4936 = vpop.f32.mrb[0].mxu0
        %4937 = vmatprep.mubr.bf16.mxu0 0
        %4938 = vmatmul.mubr.bf16.gmra.mrb[0].mxu0 %v4825
        %v4939 = vpop.f32.mrb[0].mxu0
        %v4940 = vadd.f32 0.0, %v4939
        %v4941 = vpop.f32.mrb[0].mxu0
        %v4942 = vpop.f32.mrb[0].mxu0
        %v4943 = vadd.f32 0.0, %v4942
        %v4944 = vpop.f32.mrb[0].mxu0
        %4945 = vmatprep.mubr.bf16.mxu0 0
        %4946 = vmatmul.mubr.bf16.gmra.mrb[0].mxu0 %v4828
        %v4947 = vpop.f32.mrb[0].mxu0
        %v4948 = vadd.f32 0.0, %v4947
        %v4949 = vpop.f32.mrb[0].mxu0
        %v4950 = vpop.f32.mrb[0].mxu0
        %v4951 = vadd.f32 0.0, %v4950
        %v4952 = vpop.f32.mrb[0].mxu0
        %4953 = vmatprep.mubr.bf16.mxu0 0
        %4954 = vmatmul.mubr.bf16.gmra.mrb[0].mxu0 %v4831
        %v4955 = vpop.f32.mrb[0].mxu0
        %v4956 = vadd.f32 0.0, %v4955
        %v4957 = vpop.f32.mrb[0].mxu0
        %v4958 = vpop.f32.mrb[0].mxu0
        %v4959 = vadd.f32 0.0, %v4958
        %v4960 = vpop.f32.mrb[0].mxu0
        %4961 = vmatprep.mubr.bf16.mxu0 0
        %4962 = vmatmul.mubr.bf16.gmra.mrb[0].mxu0 %v4834
        %v4963 = vpop.f32.mrb[0].mxu0
        %v4964 = vadd.f32 0.0, %v4963
        %v4965 = vpop.f32.mrb[0].mxu0
        %v4966 = vpop.f32.mrb[0].mxu0
        %v4967 = vadd.f32 0.0, %v4966
        %v4968 = vpop.f32.mrb[0].mxu0
        %4969 = vmatprep.mubr.bf16.mxu0 0
        %4970 = vmatmul.mubr.bf16.gmra.mrb[0].mxu0 %v4837
        %v4971 = vpop.f32.mrb[0].mxu0
        %v4972 = vadd.f32 0.0, %v4971
        %v4973 = vpop.f32.mrb[0].mxu0
        %v4974 = vpop.f32.mrb[0].mxu0
        %v4975 = vadd.f32 0.0, %v4974
        %v4976 = vpop.f32.mrb[0].mxu0
        %4977 = vmatprep.mubr.bf16.mxu0 0
        %4978 = vmatmul.mubr.bf16.gmra.mrb[0].mxu0 %v4840
        %v4979 = vpop.f32.mrb[0].mxu0
        %v4980 = vadd.f32 0.0, %v4979
        %v4981 = vpop.f32.mrb[0].mxu0
        %v4982 = vpop.f32.mrb[0].mxu0
        %v4983 = vadd.f32 0.0, %v4982
        %v4984 = vpop.f32.mrb[0].mxu0
        %4985 = vmatprep.mubr.bf16.mxu0 0
        %4986 = vmatmul.mubr.bf16.gmra.mrb[0].mxu0 %v4843
        %v4987 = vpop.f32.mrb[0].mxu0
        %v4988 = vadd.f32 0.0, %v4987
        %v4989 = vpop.f32.mrb[0].mxu0
        %v4990 = vpop.f32.mrb[0].mxu0
        %v4991 = vadd.f32 0.0, %v4990
        %v4992 = vpop.f32.mrb[0].mxu0
        %4993 = vmatprep.mubr.bf16.mxu0 0
        %4994 = vmatmul.mubr.bf16.gmra.mrb[0].mxu0 %v4846
        %v4995 = vpop.f32.mrb[0].mxu0
        %v4996 = vadd.f32 0.0, %v4995
        %v4997 = vpop.f32.mrb[0].mxu0
        %v4998 = vpop.f32.mrb[0].mxu0
        %v4999 = vadd.f32 0.0, %v4998
        %v5000 = vpop.f32.mrb[0].mxu0
        %5001 = vmatprep.mubr.bf16.mxu0 0
        %5002 = vmatmul.mubr.bf16.gmra.mrb[0].mxu0 %v4849
        %v5003 = vpop.f32.mrb[0].mxu0
        %v5004 = vadd.f32 0.0, %v5003
        %v5005 = vpop.f32.mrb[0].mxu0
        %v5006 = vpop.f32.mrb[0].mxu0
        %v5007 = vadd.f32 0.0, %v5006
        %v5008 = vpop.f32.mrb[0].mxu0
        %5009 = vmatprep.mubr.bf16.mxu0 0
        %5010 = vmatmul.mubr.bf16.gmra.mrb[0].mxu0 %v4852
        %v5011 = vpop.f32.mrb[0].mxu0
        %v5012 = vadd.f32 0.0, %v5011
        %v5013 = vpop.f32.mrb[0].mxu0
        %v5014 = vpop.f32.mrb[0].mxu0
        %v5015 = vadd.f32 0.0, %v5014
        %v5016 = vpop.f32.mrb[0].mxu0
        %5017 = vdwg.mxu0
        %v5018 = vld [vmem:[#allocation17] sm:$0x1]
        %v5020 = vlaneseq
        %v5021 = vshrl.u32 %v5020, 7
        %v5022 = vsub.s32 0, %v5021
        %v5023 = vrot.slane %v5018, %v5022
        %v5025 = vmul.f32 %v4892, %v5023
        %v5026 = vmul.f32 %v4895, %v5023
        %v5027 = vmul.f32 %v4900, %v5023
        %v5028 = vmul.f32 %v4903, %v5023
        %v5029 = vmul.f32 %v4908, %v5023
        %v5030 = vmul.f32 %v4911, %v5023
        %v5031 = vmul.f32 %v4916, %v5023
        %v5032 = vmul.f32 %v4919, %v5023
        %v5033 = vmul.f32 %v4924, %v5023
        %v5034 = vmul.f32 %v4927, %v5023
        %v5035 = vmul.f32 %v4932, %v5023
        %v5036 = vmul.f32 %v4935, %v5023
        %v5037 = vmul.f32 %v4940, %v5023
        %v5038 = vmul.f32 %v4943, %v5023
        %v5039 = vmul.f32 %v4948, %v5023
        %v5040 = vmul.f32 %v4951, %v5023
        %v5041 = vmul.f32 %v4956, %v5023
        %v5042 = vmul.f32 %v4959, %v5023
        %v5043 = vmul.f32 %v4964, %v5023
        %v5044 = vmul.f32 %v4967, %v5023
        %v5045 = vmul.f32 %v4972, %v5023
        %v5046 = vmul.f32 %v4975, %v5023
        %v5047 = vmul.f32 %v4980, %v5023
        %v5048 = vmul.f32 %v4983, %v5023
        %v5049 = vmul.f32 %v4988, %v5023
        %v5050 = vmul.f32 %v4991, %v5023
        %v5051 = vmul.f32 %v4996, %v5023
        %v5052 = vmul.f32 %v4999, %v5023
        %v5053 = vmul.f32 %v5004, %v5023
        %v5054 = vmul.f32 %v5007, %v5023
        %v5055 = vmul.f32 %v5012, %v5023
        %v5056 = vmul.f32 %v5015, %v5023
        %v5057 = vld [vmem:[#allocation18] sm:$0x1]
        %v5059 = vlaneseq
        %v5060 = vshrl.u32 %v5059, 7
        %v5061 = vsub.s32 0, %v5060
        %v5062 = vrot.slane %v5057, %v5061
        %v5064 = vadd.f32 %v5025, %v5062
        %v5065 = vadd.f32 %v5026, %v5062
        %v5066 = vadd.f32 %v5027, %v5062
        %v5067 = vadd.f32 %v5028, %v5062
        %v5068 = vadd.f32 %v5029, %v5062
        %v5069 = vadd.f32 %v5030, %v5062
        %v5070 = vadd.f32 %v5031, %v5062
        %v5071 = vadd.f32 %v5032, %v5062
        %v5072 = vadd.f32 %v5033, %v5062
        %v5073 = vadd.f32 %v5034, %v5062
        %v5074 = vadd.f32 %v5035, %v5062
        %v5075 = vadd.f32 %v5036, %v5062
        %v5076 = vadd.f32 %v5037, %v5062
        %v5077 = vadd.f32 %v5038, %v5062
        %v5078 = vadd.f32 %v5039, %v5062
        %v5079 = vadd.f32 %v5040, %v5062
        %v5080 = vadd.f32 %v5041, %v5062
        %v5081 = vadd.f32 %v5042, %v5062
        %v5082 = vadd.f32 %v5043, %v5062
        %v5083 = vadd.f32 %v5044, %v5062
        %v5084 = vadd.f32 %v5045, %v5062
        %v5085 = vadd.f32 %v5046, %v5062
        %v5086 = vadd.f32 %v5047, %v5062
        %v5087 = vadd.f32 %v5048, %v5062
        %v5088 = vadd.f32 %v5049, %v5062
        %v5089 = vadd.f32 %v5050, %v5062
        %v5090 = vadd.f32 %v5051, %v5062
        %v5091 = vadd.f32 %v5052, %v5062
        %v5092 = vadd.f32 %v5053, %v5062
        %v5093 = vadd.f32 %v5054, %v5062
        %v5094 = vadd.f32 %v5055, %v5062
        %v5095 = vadd.f32 %v5056, %v5062
        %v5096 = vld [vmem:[%s422] sm:$0xf]
        %v5097 = vld [vmem:[%s422 + $0x4] sm:$0xf]
        %v5098 = vld [vmem:[%s422 + $0x8] sm:$0xf]
        %v5099 = vld [vmem:[%s422 + $0xc] sm:$0xf]
        %v5100 = vld [vmem:[%s422 + $0x10] sm:$0xf]
        %v5101 = vld [vmem:[%s422 + $0x14] sm:$0xf]
        %v5102 = vld [vmem:[%s422 + $0x18] sm:$0xf]
        %v5103 = vld [vmem:[%s422 + $0x1c] sm:$0xf]
        %v5104 = vld [vmem:[%s422 + $0x20] sm:$0xf]
        %v5105 = vld [vmem:[%s422 + $0x24] sm:$0xf]
        %v5106 = vld [vmem:[%s422 + $0x28] sm:$0xf]
        %v5107 = vld [vmem:[%s422 + $0x2c] sm:$0xf]
        %v5108 = vld [vmem:[%s422 + $0x30] sm:$0xf]
        %v5109 = vld [vmem:[%s422 + $0x34] sm:$0xf]
        %v5110 = vld [vmem:[%s422 + $0x38] sm:$0xf]
        %v5111 = vld [vmem:[%s422 + $0x3c] sm:$0xf]
        %v5112 = vld [vmem:[%s422 + $0x40] sm:$0xf]
        %v5113 = vld [vmem:[%s422 + $0x44] sm:$0xf]
        %v5114 = vld [vmem:[%s422 + $0x48] sm:$0xf]
        %v5115 = vld [vmem:[%s422 + $0x4c] sm:$0xf]
        %v5116 = vld [vmem:[%s422 + $0x50] sm:$0xf]
        %v5117 = vld [vmem:[%s422 + $0x54] sm:$0xf]
        %v5118 = vld [vmem:[%s422 + $0x58] sm:$0xf]
        %v5119 = vld [vmem:[%s422 + $0x5c] sm:$0xf]
        %v5120 = vld [vmem:[%s422 + $0x60] sm:$0xf]
        %v5121 = vld [vmem:[%s422 + $0x64] sm:$0xf]
        %v5122 = vld [vmem:[%s422 + $0x68] sm:$0xf]
        %v5123 = vld [vmem:[%s422 + $0x6c] sm:$0xf]
        %v5124 = vld [vmem:[%s422 + $0x70] sm:$0xf]
        %v5125 = vld [vmem:[%s422 + $0x74] sm:$0xf]
        %v5126 = vld [vmem:[%s422 + $0x78] sm:$0xf]
        %v5127 = vld [vmem:[%s422 + $0x7c] sm:$0xf]
        %v5128 = vunpack.c.l.bf16 %v5096
        %v5129 = vunpack.c.l.bf16 %v5097
        %v5130 = vunpack.c.l.bf16 %v5098
        %v5131 = vunpack.c.l.bf16 %v5099
        %v5132 = vunpack.c.l.bf16 %v5100
        %v5133 = vunpack.c.l.bf16 %v5101
        %v5134 = vunpack.c.l.bf16 %v5102
        %v5135 = vunpack.c.l.bf16 %v5103
        %v5136 = vunpack.c.l.bf16 %v5104
        %v5137 = vunpack.c.l.bf16 %v5105
        %v5138 = vunpack.c.l.bf16 %v5106
        %v5139 = vunpack.c.l.bf16 %v5107
        %v5140 = vunpack.c.l.bf16 %v5108
        %v5141 = vunpack.c.l.bf16 %v5109
        %v5142 = vunpack.c.l.bf16 %v5110
        %v5143 = vunpack.c.l.bf16 %v5111
        %v5144 = vunpack.c.l.bf16 %v5112
        %v5145 = vunpack.c.l.bf16 %v5113
        %v5146 = vunpack.c.l.bf16 %v5114
        %v5147 = vunpack.c.l.bf16 %v5115
        %v5148 = vunpack.c.l.bf16 %v5116
        %v5149 = vunpack.c.l.bf16 %v5117
        %v5150 = vunpack.c.l.bf16 %v5118
        %v5151 = vunpack.c.l.bf16 %v5119
        %v5152 = vunpack.c.l.bf16 %v5120
        %v5153 = vunpack.c.l.bf16 %v5121
        %v5154 = vunpack.c.l.bf16 %v5122
        %v5155 = vunpack.c.l.bf16 %v5123
        %v5156 = vunpack.c.l.bf16 %v5124
        %v5157 = vunpack.c.l.bf16 %v5125
        %v5158 = vunpack.c.l.bf16 %v5126
        %v5159 = vunpack.c.l.bf16 %v5127
        %v5160 = vadd.f32 %v5064, %v5128
        %v5161 = vadd.f32 %v5065, %v5129
        %v5162 = vadd.f32 %v5066, %v5130
        %v5163 = vadd.f32 %v5067, %v5131
        %v5164 = vadd.f32 %v5068, %v5132
        %v5165 = vadd.f32 %v5069, %v5133
        %v5166 = vadd.f32 %v5070, %v5134
        %v5167 = vadd.f32 %v5071, %v5135
        %v5168 = vadd.f32 %v5072, %v5136
        %v5169 = vadd.f32 %v5073, %v5137
        %v5170 = vadd.f32 %v5074, %v5138
        %v5171 = vadd.f32 %v5075, %v5139
        %v5172 = vadd.f32 %v5076, %v5140
        %v5173 = vadd.f32 %v5077, %v5141
        %v5174 = vadd.f32 %v5078, %v5142
        %v5175 = vadd.f32 %v5079, %v5143
        %v5176 = vadd.f32 %v5080, %v5144
        %v5177 = vadd.f32 %v5081, %v5145
        %v5178 = vadd.f32 %v5082, %v5146
        %v5179 = vadd.f32 %v5083, %v5147
        %v5180 = vadd.f32 %v5084, %v5148
        %v5181 = vadd.f32 %v5085, %v5149
        %v5182 = vadd.f32 %v5086, %v5150
        %v5183 = vadd.f32 %v5087, %v5151
        %v5184 = vadd.f32 %v5088, %v5152
        %v5185 = vadd.f32 %v5089, %v5153
        %v5186 = vadd.f32 %v5090, %v5154
        %v5187 = vadd.f32 %v5091, %v5155
        %v5188 = vadd.f32 %v5092, %v5156
        %v5189 = vadd.f32 %v5093, %v5157
        %v5190 = vadd.f32 %v5094, %v5158
        %v5191 = vadd.f32 %v5095, %v5159
        %v5192 = vmax.f32 %v5160, 0.0
        %v5193 = vmax.f32 %v5161, 0.0
        %v5194 = vmax.f32 %v5162, 0.0
        %v5195 = vmax.f32 %v5163, 0.0
        %v5196 = vmax.f32 %v5164, 0.0
        %v5197 = vmax.f32 %v5165, 0.0
        %v5198 = vmax.f32 %v5166, 0.0
        %v5199 = vmax.f32 %v5167, 0.0
        %v5200 = vmax.f32 %v5168, 0.0
        %v5201 = vmax.f32 %v5169, 0.0
        %v5202 = vmax.f32 %v5170, 0.0
        %v5203 = vmax.f32 %v5171, 0.0
        %v5204 = vmax.f32 %v5172, 0.0
        %v5205 = vmax.f32 %v5173, 0.0
        %v5206 = vmax.f32 %v5174, 0.0
        %v5207 = vmax.f32 %v5175, 0.0
        %v5208 = vmax.f32 %v5176, 0.0
        %v5209 = vmax.f32 %v5177, 0.0
        %v5210 = vmax.f32 %v5178, 0.0
        %v5211 = vmax.f32 %v5179, 0.0
        %v5212 = vmax.f32 %v5180, 0.0
        %v5213 = vmax.f32 %v5181, 0.0
        %v5214 = vmax.f32 %v5182, 0.0
        %v5215 = vmax.f32 %v5183, 0.0
        %v5216 = vmax.f32 %v5184, 0.0
        %v5217 = vmax.f32 %v5185, 0.0
        %v5218 = vmax.f32 %v5186, 0.0
        %v5219 = vmax.f32 %v5187, 0.0
        %v5220 = vmax.f32 %v5188, 0.0
        %v5221 = vmax.f32 %v5189, 0.0
        %v5222 = vmax.f32 %v5190, 0.0
        %v5223 = vmax.f32 %v5191, 0.0
        %v5224 = vpack.c.bf16 %v5193, %v5192
        %v5225 = vpack.c.bf16 %v5195, %v5194
        %v5226 = vpack.c.bf16 %v5197, %v5196
        %v5227 = vpack.c.bf16 %v5199, %v5198
        %v5228 = vpack.c.bf16 %v5201, %v5200
        %v5229 = vpack.c.bf16 %v5203, %v5202
        %v5230 = vpack.c.bf16 %v5205, %v5204
        %v5231 = vpack.c.bf16 %v5207, %v5206
        %v5232 = vpack.c.bf16 %v5209, %v5208
        %v5233 = vpack.c.bf16 %v5211, %v5210
        %v5234 = vpack.c.bf16 %v5213, %v5212
        %v5235 = vpack.c.bf16 %v5215, %v5214
        %v5236 = vpack.c.bf16 %v5217, %v5216
        %v5237 = vpack.c.bf16 %v5219, %v5218
        %v5238 = vpack.c.bf16 %v5221, %v5220
        %v5239 = vpack.c.bf16 %v5223, %v5222
        %v5256 = vunpack.c.l.b16 %v5224
        %v5257 = vunpack.c.h.b16 %v5224
        %v5258 = vunpack.c.l.b16 %v5225
        %v5259 = vunpack.c.h.b16 %v5225
        %v5260 = vunpack.c.l.b16 %v5226
        %v5261 = vunpack.c.h.b16 %v5226
        %v5262 = vunpack.c.l.b16 %v5227
        %v5263 = vunpack.c.h.b16 %v5227
        %v5264 = vunpack.c.l.b16 %v5228
        %v5265 = vunpack.c.h.b16 %v5228
        %v5266 = vunpack.c.l.b16 %v5229
        %v5267 = vunpack.c.h.b16 %v5229
        %v5268 = vunpack.c.l.b16 %v5230
        %v5269 = vunpack.c.h.b16 %v5230
        %v5270 = vunpack.c.l.b16 %v5231
        %v5271 = vunpack.c.h.b16 %v5231
        %v5272 = vunpack.c.l.b16 %v5232
        %v5273 = vunpack.c.h.b16 %v5232
        %v5274 = vunpack.c.l.b16 %v5233
        %v5275 = vunpack.c.h.b16 %v5233
        %v5276 = vunpack.c.l.b16 %v5234
        %v5277 = vunpack.c.h.b16 %v5234
        %v5278 = vunpack.c.l.b16 %v5235
        %v5279 = vunpack.c.h.b16 %v5235
        %v5280 = vunpack.c.l.b16 %v5236
        %v5281 = vunpack.c.h.b16 %v5236
        %v5282 = vunpack.c.l.b16 %v5237
        %v5283 = vunpack.c.h.b16 %v5237
        %v5284 = vunpack.c.l.b16 %v5238
        %v5285 = vunpack.c.h.b16 %v5238
        %v5286 = vunpack.c.l.b16 %v5239
        %v5287 = vunpack.c.h.b16 %v5239
        %v5288 = vpack.c.b16 %v5256, %v5256
        %v5289 = vpack.c.b16 %v5257, %v5257
        %v5290 = vpack.c.b16 %v5258, %v5258
        %v5291 = vpack.c.b16 %v5259, %v5259
        %v5292 = vpack.c.b16 %v5260, %v5260
        %v5293 = vpack.c.b16 %v5261, %v5261
        %v5294 = vpack.c.b16 %v5262, %v5262
        %v5295 = vpack.c.b16 %v5263, %v5263
        %v5296 = vpack.c.b16 %v5264, %v5264
        %v5297 = vpack.c.b16 %v5265, %v5265
        %v5298 = vpack.c.b16 %v5266, %v5266
        %v5299 = vpack.c.b16 %v5267, %v5267
        %v5300 = vpack.c.b16 %v5268, %v5268
        %v5301 = vpack.c.b16 %v5269, %v5269
        %v5302 = vpack.c.b16 %v5270, %v5270
        %v5303 = vpack.c.b16 %v5271, %v5271
        %v5304 = vpack.c.b16 %v5272, %v5272
        %v5305 = vpack.c.b16 %v5273, %v5273
        %v5306 = vpack.c.b16 %v5274, %v5274
        %v5307 = vpack.c.b16 %v5275, %v5275
        %v5308 = vpack.c.b16 %v5276, %v5276
        %v5309 = vpack.c.b16 %v5277, %v5277
        %v5310 = vpack.c.b16 %v5278, %v5278
        %v5311 = vpack.c.b16 %v5279, %v5279
        %v5312 = vpack.c.b16 %v5280, %v5280
        %v5313 = vpack.c.b16 %v5281, %v5281
        %v5314 = vpack.c.b16 %v5282, %v5282
        %v5315 = vpack.c.b16 %v5283, %v5283
        %v5316 = vpack.c.b16 %v5284, %v5284
        %v5317 = vpack.c.b16 %v5285, %v5285
        %v5318 = vpack.c.b16 %v5286, %v5286
        %v5319 = vpack.c.b16 %v5287, %v5287
        %vm5352 = vcmask 257024
        %5353 = vst.msk [vmem:[%s494] sm:$0xf] %vm5352, %v5288
        %5354 = vst.msk [vmem:[%s494 + $0x4] sm:$0xf] %vm5352, %v5289
        %5355 = vst.msk [vmem:[%s494 + $0x8] sm:$0xf] %vm5352, %v5290
        %5356 = vst.msk [vmem:[%s494 + $0xc] sm:$0xf] %vm5352, %v5291
        %5357 = vst.msk [vmem:[%s494 + $0x10] sm:$0xf] %vm5352, %v5292
        %5358 = vst.msk [vmem:[%s494 + $0x14] sm:$0xf] %vm5352, %v5293
        %5359 = vst.msk [vmem:[%s494 + $0x18] sm:$0xf] %vm5352, %v5294
        %5360 = vst.msk [vmem:[%s494 + $0x1c] sm:$0xf] %vm5352, %v5295
        %5361 = vst.msk [vmem:[%s494 + $0x20] sm:$0xf] %vm5352, %v5296
        %5362 = vst.msk [vmem:[%s494 + $0x24] sm:$0xf] %vm5352, %v5297
        %5363 = vst.msk [vmem:[%s494 + $0x28] sm:$0xf] %vm5352, %v5298
        %5364 = vst.msk [vmem:[%s494 + $0x2c] sm:$0xf] %vm5352, %v5299
        %5365 = vst.msk [vmem:[%s494 + $0x30] sm:$0xf] %vm5352, %v5300
        %5366 = vst.msk [vmem:[%s494 + $0x34] sm:$0xf] %vm5352, %v5301
        %5367 = vst.msk [vmem:[%s494 + $0x38] sm:$0xf] %vm5352, %v5302
        %5368 = vst.msk [vmem:[%s494 + $0x3c] sm:$0xf] %vm5352, %v5303
        %5369 = vst.msk [vmem:[%s494 + $0x40] sm:$0xf] %vm5352, %v5304
        %5370 = vst.msk [vmem:[%s494 + $0x44] sm:$0xf] %vm5352, %v5305
        %5371 = vst.msk [vmem:[%s494 + $0x48] sm:$0xf] %vm5352, %v5306
        %5372 = vst.msk [vmem:[%s494 + $0x4c] sm:$0xf] %vm5352, %v5307
        %5373 = vst.msk [vmem:[%s494 + $0x50] sm:$0xf] %vm5352, %v5308
        %5374 = vst.msk [vmem:[%s494 + $0x54] sm:$0xf] %vm5352, %v5309
        %5375 = vst.msk [vmem:[%s494 + $0x58] sm:$0xf] %vm5352, %v5310
        %5376 = vst.msk [vmem:[%s494 + $0x5c] sm:$0xf] %vm5352, %v5311
        %5377 = vst.msk [vmem:[%s494 + $0x60] sm:$0xf] %vm5352, %v5312
        %5378 = vst.msk [vmem:[%s494 + $0x64] sm:$0xf] %vm5352, %v5313
        %5379 = vst.msk [vmem:[%s494 + $0x68] sm:$0xf] %vm5352, %v5314
        %5380 = vst.msk [vmem:[%s494 + $0x6c] sm:$0xf] %vm5352, %v5315
        %5381 = vst.msk [vmem:[%s494 + $0x70] sm:$0xf] %vm5352, %v5316
        %5382 = vst.msk [vmem:[%s494 + $0x74] sm:$0xf] %vm5352, %v5317
        %5383 = vst.msk [vmem:[%s494 + $0x78] sm:$0xf] %vm5352, %v5318
        %5384 = vst.msk [vmem:[%s494 + $0x7c] sm:$0xf] %vm5352, %v5319
        %s5385 = sand.u32 %s255, 1
        %s5386 = scalar_lea.sflag [#allocation5], %s5385
        %s5387 = sand.u32 %s255, 1
        %s5388 = smul.addr %s5387, 128
        %s5389 = scalar_lea.vmem [#allocation20], %s5388
        // Predicated region
        $region101: #{tpu_custom_call.1} parent=59 // pred_check
          %p5390 = pneg %p265
        $region102: #{tpu_custom_call.1} parent=59 // pred_check_branch
          %5392 = sbr.rel (%p5390) target = $region104
        $region103: #{tpu_custom_call.1} parent=59 // pred_region
          %s5394 = ssub.s32 2048, 2048
          %5395 = vsyncadd %s5386, %s5394
          %s5396 = smul.addr %s32, 32
          %s5397 = smul.addr %s5396, 64
          %s5398 = scalar_lea.hbm %s10, %s5397
          %s5399 = sshll.u32 %s5389, 4
          %s5400 = int_to_ptr.vmem [resolvable:$true] %s5399
          %5405 = dma.vmem_to_hbm [thread:$0]  %s5400, 2048, %s5398, %s5386, 64, 64, 4
        $region104: #{tpu_custom_call.1} parent=59 // pred_fallthru
          _
      $region60: #{tpu_custom_call.1} parent=5 // pred_fallthru
        _
      %p5406 = scmp.le.s32.totalorder 2, %s27
      // Predicated region
      $region105: #{tpu_custom_call.1} parent=5 // pred_check
        %p5407 = pneg %p5406
      $region106: #{tpu_custom_call.1} parent=5 // pred_check_branch
        %5409 = sbr.rel (%p5407) target = $region108
      $region107: #{tpu_custom_call.1} parent=5 // pred_region
        %s5410 = ssub.s32 %s27, 2
        // Predicated region
        $region109: #{tpu_custom_call.1} parent=107 // pred_check
          %p5411 = pneg %p271
        $region110: #{tpu_custom_call.1} parent=107 // pred_check_branch
          %5413 = sbr.rel (%p5411) target = $region112
        $region111: #{tpu_custom_call.1} parent=107 // pred_region
          %s5414 = sand.u32 %s256, 1
          %s5415 = scalar_lea.sflag [#allocation5], %s5414
          %s5416 = sand.u32 %s256, 1
          %s5417 = smul.addr %s5416, 128
          %s5418 = scalar_lea.vmem [#allocation20], %s5417
          %5419 = dma.done %s5415, 2048
        $region112: #{tpu_custom_call.1} parent=107 // pred_fallthru
          _
      $region108: #{tpu_custom_call.1} parent=5 // pred_fallthru
        _
    $region6: #{tpu_custom_call.1} parent=1 // loop_footer
      %s31 = sadd.s32 1, %s27
    $region7: #{tpu_custom_call.1} parent=1 // loop_footer_branch
      %26 = sbr.rel target = $region3
    $region8: #{tpu_custom_call.1} parent=1 // loop_exit
      _
    %5420 = vsyncpa [#allocation4], 1
    %s5421 = scalar_lea.sflag [#allocation4], 1
    %5422 = vsyncpa %s5421, 1
    %5423 = vsyncpa [#allocation7], 1
    %5424 = vsyncpa [#allocation10], 1
    %5425 = vsyncpa [#allocation13], 1
    %5426 = vsyncpa [#allocation16], 1
    %5427 = vsyncpa [#allocation19], 1
    %5428 = vsyncpa [#allocation5], 1
    %s5429 = scalar_lea.sflag [#allocation5], 1
    %5430 = vsyncpa %s5429, 1

</llo_original>
